<compile_context>
chip_gen: v7x
topology: tpu7x:2x2x1
jax: 0.10.0
libtpu: 0.0.40
codegen_flags: <defaults>
</compile_context>

<pallas_src>
import functools

import jax
import jax.numpy as jnp
from jax.experimental import pallas as pl
from jax.experimental.pallas import tpu as pltpu


BN_EPS = 1e-5
LANE = 128
MATMUL_DTYPE = jnp.bfloat16          # jnp.float32 for exact-parity debugging
VMEM_LIMIT_BYTES = 32 * 1024 * 1024  # >= v5e default (16 MiB), == v6e/v7x default


def _round_up(x, m):
    return (x + m - 1) // m * m


def conv_stats_kernel(x_ref, w_ref, b_ref, o_ref, stats_ref, *, KH, KW, Ho, Wo):
    """Conv (KH*KW shifted matmuls over Cin) + bias, plus per-channel partial stats.

    x_ref:     (Hp, Wp, Cin_pad)          padded NHWC input for one image (MATMUL_DTYPE)
    w_ref:     (KH*KW, Cin_pad, Cout_pad) conv weight (MATMUL_DTYPE)
    b_ref:     (1, Cout_pad)              conv bias (f32)
    o_ref:     (Ho*Wo, Cout_pad)          pre-BN conv output tile (f32)
    stats_ref: (2, Cout_pad)              row 0 = sum, row 1 = sum of squares
    """
    acc = None
    # Statically unrolled KH*KW loop: each iteration is a lane-dense
    # (Ho*Wo, Cin_pad) x (Cin_pad, Cout_pad) MXU matmul with f32 accumulation.
    for kh in range(KH):
        for kw in range(KW):
            patch = x_ref[kh:kh + Ho, kw:kw + Wo, :]            # (Ho, Wo, Cin_pad)
            patch2d = patch.reshape(Ho * Wo, patch.shape[-1])   # lane dim unchanged
            contrib = jnp.dot(patch2d, w_ref[kh * KW + kw],
                              preferred_element_type=jnp.float32)
            acc = contrib if acc is None else acc + contrib
    acc = acc + b_ref[...]
    o_ref[...] = acc
    # Partial BN statistics for this tile (combined across the grid in the wrapper,
    # which keeps this grid axis "parallel").
    stats_ref[0:1, :] = jnp.sum(acc, axis=0, keepdims=True)
    stats_ref[1:2, :] = jnp.sum(acc * acc, axis=0, keepdims=True)


def bn_relu_kernel(y_ref, scale_ref, shift_ref, o_ref):
    """Streaming normalize: y = x*scale + shift, then ReLU (one mul-add + max per elem)."""
    y = y_ref[...] * scale_ref[...] + shift_ref[...]
    o_ref[...] = jnp.maximum(y, 0.0).astype(o_ref.dtype)


@functools.partial(jax.jit, static_argnames=("kernel_size", "padding"))
def conv_block(x_nchw, weight, bias, gamma, beta, *, kernel_size, padding):
    """x_nchw: (N, Cin, H, W); weight: (Cout, Cin, KH, KW) (PyTorch layouts)."""
    N, Cin, H, W = x_nchw.shape
    Cout = weight.shape[0]
    KH = KW = kernel_size
    p = padding
    Ho = H + 2 * p - KH + 1
    Wo = W + 2 * p - KW + 1
    Hp, Wp = H + 2 * p, W + 2 * p
    Cin_p = _round_up(Cin, LANE)
    Cout_p = _round_up(Cout, LANE)
    HoWo = Ho * Wo
    m_total = N * HoWo
    itemsize = jnp.dtype(MATMUL_DTYPE).itemsize

    # --- layout glue: NCHW -> padded NHWC (spatial + channel zero-pad), matmul dtype ---
    x_nhwc = jnp.transpose(x_nchw, (0, 2, 3, 1))
    x_pad = jnp.pad(x_nhwc, ((0, 0), (p, p), (p, p), (0, Cin_p - Cin)))
    x_pad = x_pad.astype(MATMUL_DTYPE)

    # Weight (Cout, Cin, KH, KW) -> (KH*KW, Cin_p, Cout_p), zero-padded channels.
    w = jnp.transpose(weight, (2, 3, 1, 0))                       # (KH, KW, Cin, Cout)
    w = jnp.pad(w, ((0, 0), (0, 0), (0, Cin_p - Cin), (0, Cout_p - Cout)))
    w = w.reshape(KH * KW, Cin_p, Cout_p).astype(MATMUL_DTYPE)

    b_row = jnp.pad(bias.astype(jnp.float32), (0, Cout_p - Cout)).reshape(1, Cout_p)
    g_row = jnp.pad(gamma.astype(jnp.float32), (0, Cout_p - Cout)).reshape(1, Cout_p)
    bt_row = jnp.pad(beta.astype(jnp.float32), (0, Cout_p - Cout)).reshape(1, Cout_p)

    # --- pass 1: conv + bias + partial BN stats, grid over batch ("parallel") ---
    # For very large spatial dims, additionally tile Ho into row blocks with a
    # (KH-1)-row halo (manual DMA); not needed at these sizes.
    kern1 = functools.partial(conv_stats_kernel, KH=KH, KW=KW, Ho=Ho, Wo=Wo)
    flops = 2 * m_total * (KH * KW * Cin_p) * Cout_p
    bytes_accessed = (N * Hp * Wp * Cin_p * itemsize            # input
                      + KH * KW * Cin_p * Cout_p * itemsize     # weight
                      + m_total * Cout_p * 4                    # pre-BN slab write
                      + N * 2 * Cout_p * 4)                     # stats

    slab, stats = pl.pallas_call(
        kern1,
        out_shape=(jax.ShapeDtypeStruct((N, HoWo, Cout_p), jnp.float32),
                   jax.ShapeDtypeStruct((N, 2, Cout_p), jnp.float32)),
        grid_spec=pltpu.PrefetchScalarGridSpec(
            num_scalar_prefetch=0,
            grid=(N,),
            in_specs=[
                pl.BlockSpec((None, Hp, Wp, Cin_p), lambda n: (n, 0, 0, 0)),
                pl.BlockSpec((KH * KW, Cin_p, Cout_p), lambda n: (0, 0, 0)),
                pl.BlockSpec((1, Cout_p), lambda n: (0, 0)),
            ],
            out_specs=(
                pl.BlockSpec((None, HoWo, Cout_p), lambda n: (n, 0, 0)),
                pl.BlockSpec((None, 2, Cout_p), lambda n: (n, 0, 0)),
            )),
        compiler_params=pltpu.CompilerParams(
            dimension_semantics=("parallel",),
            vmem_limit_bytes=VMEM_LIMIT_BYTES),
        cost_estimate=pl.CostEstimate(flops=flops, transcendentals=0,
                                      bytes_accessed=bytes_accessed),
    )(x_pad, w, b_row)

    # --- combine partial stats; fold BN into one per-channel scale + shift ---
    # NOTE: single-pass sum/sumsq in f32; for m_total in the millions use a
    # shifted / Welford-style combine instead.
    tot = jnp.sum(stats, axis=0)                      # (2, Cout_p)
    mean = tot[0:1, :] / m_total
    var = jnp.maximum(tot[1:2, :] / m_total - mean * mean, 0.0)
    inv_std = jax.lax.rsqrt(var + BN_EPS)
    scale = g_row * inv_std                           # (1, Cout_p)
    shift = bt_row - mean * scale

    # --- pass 2: streaming normalize + ReLU, in place over the pre-BN slab ---
    out_slab = pl.pallas_call(
        bn_relu_kernel,
        out_shape=jax.ShapeDtypeStruct((N, HoWo, Cout_p), jnp.float32),
        grid_spec=pltpu.PrefetchScalarGridSpec(
            num_scalar_prefetch=0,
            grid=(N,),
            in_specs=[
                pl.BlockSpec((None, HoWo, Cout_p), lambda n: (n, 0, 0)),
                pl.BlockSpec((1, Cout_p), lambda n: (0, 0)),
                pl.BlockSpec((1, Cout_p), lambda n: (0, 0)),
            ],
            out_specs=pl.BlockSpec((None, HoWo, Cout_p), lambda n: (n, 0, 0))),
        compiler_params=pltpu.CompilerParams(
            dimension_semantics=("parallel",),
            vmem_limit_bytes=VMEM_LIMIT_BYTES),
        input_output_aliases={0: 0},
    )(slab, scale, shift)

    # slab (N, Ho*Wo, Cout_p) -> NHWC -> NCHW (slice away channel padding)
    y = out_slab.reshape(N, Ho, Wo, Cout_p)[..., :Cout]
    return jnp.transpose(y, (0, 3, 1, 2))


def reference_conv_block(x_nchw, weight, bias, gamma, beta, *, padding):
    """Pure-JAX f32 reference matching PyTorch ConvBlock forward (training-mode BN)."""
    y = jax.lax.conv_general_dilated(
        x_nchw.astype(jnp.float32), weight.astype(jnp.float32),
        window_strides=(1, 1),
        padding=[(padding, padding), (padding, padding)],
        dimension_numbers=("NCHW", "OIHW", "NCHW"))
    y = y + bias.reshape(1, -1, 1, 1)
    mean = jnp.mean(y, axis=(0, 2, 3), keepdims=True)
    var = jnp.mean(jnp.square(y - mean), axis=(0, 2, 3), keepdims=True)
    y = (y - mean) * jax.lax.rsqrt(var + BN_EPS)
    y = y * gamma.reshape(1, -1, 1, 1) + beta.reshape(1, -1, 1, 1)
    return jnp.maximum(y, 0.0)


if __name__ == "__main__":
    # ConvBlock(in_channels=4, out_channels=8, kernel_size=3, padding=1)
    # applied to a (2, 4, 16, 16) NCHW input.
    N, Cin, H, W = 2, 4, 16, 16
    Cout, K, P = 8, 3, 1

    key = jax.random.PRNGKey(0)
    kx, kw, kb = jax.random.split(key, 3)

    x = jax.random.normal(kx, (N, Cin, H, W), dtype=jnp.float32)
    weight = jax.random.normal(kw, (Cout, Cin, K, K), dtype=jnp.float32) * 0.1
    bias = jax.random.normal(kb, (Cout,), dtype=jnp.float32) * 0.1
    gamma = jnp.ones((Cout,), dtype=jnp.float32)   # BN weight default init
    beta = jnp.zeros((Cout,), dtype=jnp.float32)   # BN bias default init

    out = conv_block(x, weight, bias, gamma, beta, kernel_size=K, padding=P)
    out = jax.block_until_ready(out)

    ref = reference_conv_block(x, weight, bias, gamma, beta, padding=P)
    assert out.shape == (N, Cout, H, W), out.shape
    # Tolerance accounts for bf16 matmul operands vs the f32 reference.
    tol = 5e-2 if MATMUL_DTYPE == jnp.bfloat16 else 1e-4
    assert jnp.allclose(out, ref, atol=tol, rtol=tol), \
        float(jnp.max(jnp.abs(out - ref)))

    print("KERNEL_OK")
</pallas_src>

<mosaic_0001>
module attributes {stable_mosaic.version = 11 : i64} {
  func.func @conv_stats_kernel(%arg0: i32, %arg1: memref<1x18x18x128xbf16, #tpu.memory_space<vmem>>, %arg2: memref<9x128x128xbf16, #tpu.memory_space<vmem>>, %arg3: memref<1x128xf32, #tpu.memory_space<vmem>>, %arg4: memref<1x256x128xf32, #tpu.memory_space<vmem>>, %arg5: memref<1x2x128xf32, #tpu.memory_space<vmem>>) attributes {dimension_semantics = [#tpu.dimension_semantics<parallel>], iteration_bounds = array<i64: 2>, scalar_prefetch = 0 : i64, scratch_operands = 0 : i64, tpu.core_type = #tpu.core_type<tc>, window_params = [{transform_indices = @transform_0, window_bounds = array<i64: 1, 18, 18, 128>}, {pipeline_mode = #tpu.pipeline_mode<synchronous>, transform_indices = @transform_1, window_bounds = array<i64: 9, 128, 128>}, {pipeline_mode = #tpu.pipeline_mode<synchronous>, transform_indices = @transform_2, window_bounds = array<i64: 1, 128>}, {transform_indices = @transform_3, window_bounds = array<i64: 1, 256, 128>}, {transform_indices = @transform_4, window_bounds = array<i64: 1, 2, 128>}]} {
    %c0 = arith.constant 0 : index
    %c0_0 = arith.constant 0 : index
    %c0_1 = arith.constant 0 : index
    %c0_2 = arith.constant 0 : index
    %0 = vector.load %arg1[%c0, %c0_0, %c0_1, %c0_2] : memref<1x18x18x128xbf16, #tpu.memory_space<vmem>>, vector<1x16x16x128xbf16>
    %1 = vector.shape_cast %0 : vector<1x16x16x128xbf16> to vector<16x16x128xbf16>
    %2 = vector.shape_cast %1 : vector<16x16x128xbf16> to vector<256x128xbf16>
    %c0_3 = arith.constant 0 : index
    %c0_4 = arith.constant 0 : index
    %c0_5 = arith.constant 0 : index
    %3 = vector.load %arg2[%c0_3, %c0_4, %c0_5] : memref<9x128x128xbf16, #tpu.memory_space<vmem>>, vector<1x128x128xbf16>
    %4 = vector.shape_cast %3 : vector<1x128x128xbf16> to vector<128x128xbf16>
    %cst = arith.constant dense<0.000000e+00> : vector<256x128xf32>
    %5 = tpu.matmul %2, %4, %cst {dimension_numbers = #tpu.dot_dimension_numbers<[1], [0], [0], [1], [0, 0, 1, 1], [], []>} : vector<256x128xbf16>, vector<128x128xbf16>, vector<256x128xf32> -> vector<256x128xf32>
    %c0_6 = arith.constant 0 : index
    %c0_7 = arith.constant 0 : index
    %c1 = arith.constant 1 : index
    %c0_8 = arith.constant 0 : index
    %6 = vector.load %arg1[%c0_6, %c0_7, %c1, %c0_8] : memref<1x18x18x128xbf16, #tpu.memory_space<vmem>>, vector<1x16x16x128xbf16>
    %7 = vector.shape_cast %6 : vector<1x16x16x128xbf16> to vector<16x16x128xbf16>
    %8 = vector.shape_cast %7 : vector<16x16x128xbf16> to vector<256x128xbf16>
    %c1_9 = arith.constant 1 : index
    %c0_10 = arith.constant 0 : index
    %c0_11 = arith.constant 0 : index
    %9 = vector.load %arg2[%c1_9, %c0_10, %c0_11] : memref<9x128x128xbf16, #tpu.memory_space<vmem>>, vector<1x128x128xbf16>
    %10 = vector.shape_cast %9 : vector<1x128x128xbf16> to vector<128x128xbf16>
    %cst_12 = arith.constant dense<0.000000e+00> : vector<256x128xf32>
    %11 = tpu.matmul %8, %10, %cst_12 {dimension_numbers = #tpu.dot_dimension_numbers<[1], [0], [0], [1], [0, 0, 1, 1], [], []>} : vector<256x128xbf16>, vector<128x128xbf16>, vector<256x128xf32> -> vector<256x128xf32>
    %12 = arith.addf %5, %11 : vector<256x128xf32>
    %c0_13 = arith.constant 0 : index
    %c0_14 = arith.constant 0 : index
    %c2 = arith.constant 2 : index
    %c0_15 = arith.constant 0 : index
    %13 = vector.load %arg1[%c0_13, %c0_14, %c2, %c0_15] : memref<1x18x18x128xbf16, #tpu.memory_space<vmem>>, vector<1x16x16x128xbf16>
    %14 = vector.shape_cast %13 : vector<1x16x16x128xbf16> to vector<16x16x128xbf16>
    %15 = vector.shape_cast %14 : vector<16x16x128xbf16> to vector<256x128xbf16>
    %c2_16 = arith.constant 2 : index
    %c0_17 = arith.constant 0 : index
    %c0_18 = arith.constant 0 : index
    %16 = vector.load %arg2[%c2_16, %c0_17, %c0_18] : memref<9x128x128xbf16, #tpu.memory_space<vmem>>, vector<1x128x128xbf16>
    %17 = vector.shape_cast %16 : vector<1x128x128xbf16> to vector<128x128xbf16>
    %cst_19 = arith.constant dense<0.000000e+00> : vector<256x128xf32>
    %18 = tpu.matmul %15, %17, %cst_19 {dimension_numbers = #tpu.dot_dimension_numbers<[1], [0], [0], [1], [0, 0, 1, 1], [], []>} : vector<256x128xbf16>, vector<128x128xbf16>, vector<256x128xf32> -> vector<256x128xf32>
    %19 = arith.addf %12, %18 : vector<256x128xf32>
    %c0_20 = arith.constant 0 : index
    %c1_21 = arith.constant 1 : index
    %c0_22 = arith.constant 0 : index
    %c0_23 = arith.constant 0 : index
    %20 = vector.load %arg1[%c0_20, %c1_21, %c0_22, %c0_23] : memref<1x18x18x128xbf16, #tpu.memory_space<vmem>>, vector<1x16x16x128xbf16>
    %21 = vector.shape_cast %20 : vector<1x16x16x128xbf16> to vector<16x16x128xbf16>
    %22 = vector.shape_cast %21 : vector<16x16x128xbf16> to vector<256x128xbf16>
    %c3 = arith.constant 3 : index
    %c0_24 = arith.constant 0 : index
    %c0_25 = arith.constant 0 : index
    %23 = vector.load %arg2[%c3, %c0_24, %c0_25] : memref<9x128x128xbf16, #tpu.memory_space<vmem>>, vector<1x128x128xbf16>
    %24 = vector.shape_cast %23 : vector<1x128x128xbf16> to vector<128x128xbf16>
    %cst_26 = arith.constant dense<0.000000e+00> : vector<256x128xf32>
    %25 = tpu.matmul %22, %24, %cst_26 {dimension_numbers = #tpu.dot_dimension_numbers<[1], [0], [0], [1], [0, 0, 1, 1], [], []>} : vector<256x128xbf16>, vector<128x128xbf16>, vector<256x128xf32> -> vector<256x128xf32>
    %26 = arith.addf %19, %25 : vector<256x128xf32>
    %c0_27 = arith.constant 0 : index
    %c1_28 = arith.constant 1 : index
    %c1_29 = arith.constant 1 : index
    %c0_30 = arith.constant 0 : index
    %27 = vector.load %arg1[%c0_27, %c1_28, %c1_29, %c0_30] : memref<1x18x18x128xbf16, #tpu.memory_space<vmem>>, vector<1x16x16x128xbf16>
    %28 = vector.shape_cast %27 : vector<1x16x16x128xbf16> to vector<16x16x128xbf16>
    %29 = vector.shape_cast %28 : vector<16x16x128xbf16> to vector<256x128xbf16>
    %c4 = arith.constant 4 : index
    %c0_31 = arith.constant 0 : index
    %c0_32 = arith.constant 0 : index
    %30 = vector.load %arg2[%c4, %c0_31, %c0_32] : memref<9x128x128xbf16, #tpu.memory_space<vmem>>, vector<1x128x128xbf16>
    %31 = vector.shape_cast %30 : vector<1x128x128xbf16> to vector<128x128xbf16>
    %cst_33 = arith.constant dense<0.000000e+00> : vector<256x128xf32>
    %32 = tpu.matmul %29, %31, %cst_33 {dimension_numbers = #tpu.dot_dimension_numbers<[1], [0], [0], [1], [0, 0, 1, 1], [], []>} : vector<256x128xbf16>, vector<128x128xbf16>, vector<256x128xf32> -> vector<256x128xf32>
    %33 = arith.addf %26, %32 : vector<256x128xf32>
    %c0_34 = arith.constant 0 : index
    %c1_35 = arith.constant 1 : index
    %c2_36 = arith.constant 2 : index
    %c0_37 = arith.constant 0 : index
    %34 = vector.load %arg1[%c0_34, %c1_35, %c2_36, %c0_37] : memref<1x18x18x128xbf16, #tpu.memory_space<vmem>>, vector<1x16x16x128xbf16>
    %35 = vector.shape_cast %34 : vector<1x16x16x128xbf16> to vector<16x16x128xbf16>
    %36 = vector.shape_cast %35 : vector<16x16x128xbf16> to vector<256x128xbf16>
    %c5 = arith.constant 5 : index
    %c0_38 = arith.constant 0 : index
    %c0_39 = arith.constant 0 : index
    %37 = vector.load %arg2[%c5, %c0_38, %c0_39] : memref<9x128x128xbf16, #tpu.memory_space<vmem>>, vector<1x128x128xbf16>
    %38 = vector.shape_cast %37 : vector<1x128x128xbf16> to vector<128x128xbf16>
    %cst_40 = arith.constant dense<0.000000e+00> : vector<256x128xf32>
    %39 = tpu.matmul %36, %38, %cst_40 {dimension_numbers = #tpu.dot_dimension_numbers<[1], [0], [0], [1], [0, 0, 1, 1], [], []>} : vector<256x128xbf16>, vector<128x128xbf16>, vector<256x128xf32> -> vector<256x128xf32>
    %40 = arith.addf %33, %39 : vector<256x128xf32>
    %c0_41 = arith.constant 0 : index
    %c2_42 = arith.constant 2 : index
    %c0_43 = arith.constant 0 : index
    %c0_44 = arith.constant 0 : index
    %41 = vector.load %arg1[%c0_41, %c2_42, %c0_43, %c0_44] : memref<1x18x18x128xbf16, #tpu.memory_space<vmem>>, vector<1x16x16x128xbf16>
    %42 = vector.shape_cast %41 : vector<1x16x16x128xbf16> to vector<16x16x128xbf16>
    %43 = vector.shape_cast %42 : vector<16x16x128xbf16> to vector<256x128xbf16>
    %c6 = arith.constant 6 : index
    %c0_45 = arith.constant 0 : index
    %c0_46 = arith.constant 0 : index
    %44 = vector.load %arg2[%c6, %c0_45, %c0_46] : memref<9x128x128xbf16, #tpu.memory_space<vmem>>, vector<1x128x128xbf16>
    %45 = vector.shape_cast %44 : vector<1x128x128xbf16> to vector<128x128xbf16>
    %cst_47 = arith.constant dense<0.000000e+00> : vector<256x128xf32>
    %46 = tpu.matmul %43, %45, %cst_47 {dimension_numbers = #tpu.dot_dimension_numbers<[1], [0], [0], [1], [0, 0, 1, 1], [], []>} : vector<256x128xbf16>, vector<128x128xbf16>, vector<256x128xf32> -> vector<256x128xf32>
    %47 = arith.addf %40, %46 : vector<256x128xf32>
    %c0_48 = arith.constant 0 : index
    %c2_49 = arith.constant 2 : index
    %c1_50 = arith.constant 1 : index
    %c0_51 = arith.constant 0 : index
    %48 = vector.load %arg1[%c0_48, %c2_49, %c1_50, %c0_51] : memref<1x18x18x128xbf16, #tpu.memory_space<vmem>>, vector<1x16x16x128xbf16>
    %49 = vector.shape_cast %48 : vector<1x16x16x128xbf16> to vector<16x16x128xbf16>
    %50 = vector.shape_cast %49 : vector<16x16x128xbf16> to vector<256x128xbf16>
    %c7 = arith.constant 7 : index
    %c0_52 = arith.constant 0 : index
    %c0_53 = arith.constant 0 : index
    %51 = vector.load %arg2[%c7, %c0_52, %c0_53] : memref<9x128x128xbf16, #tpu.memory_space<vmem>>, vector<1x128x128xbf16>
    %52 = vector.shape_cast %51 : vector<1x128x128xbf16> to vector<128x128xbf16>
    %cst_54 = arith.constant dense<0.000000e+00> : vector<256x128xf32>
    %53 = tpu.matmul %50, %52, %cst_54 {dimension_numbers = #tpu.dot_dimension_numbers<[1], [0], [0], [1], [0, 0, 1, 1], [], []>} : vector<256x128xbf16>, vector<128x128xbf16>, vector<256x128xf32> -> vector<256x128xf32>
    %54 = arith.addf %47, %53 : vector<256x128xf32>
    %c0_55 = arith.constant 0 : index
    %c2_56 = arith.constant 2 : index
    %c2_57 = arith.constant 2 : index
    %c0_58 = arith.constant 0 : index
    %55 = vector.load %arg1[%c0_55, %c2_56, %c2_57, %c0_58] : memref<1x18x18x128xbf16, #tpu.memory_space<vmem>>, vector<1x16x16x128xbf16>
    %56 = vector.shape_cast %55 : vector<1x16x16x128xbf16> to vector<16x16x128xbf16>
    %57 = vector.shape_cast %56 : vector<16x16x128xbf16> to vector<256x128xbf16>
    %c8 = arith.constant 8 : index
    %c0_59 = arith.constant 0 : index
    %c0_60 = arith.constant 0 : index
    %58 = vector.load %arg2[%c8, %c0_59, %c0_60] : memref<9x128x128xbf16, #tpu.memory_space<vmem>>, vector<1x128x128xbf16>
    %59 = vector.shape_cast %58 : vector<1x128x128xbf16> to vector<128x128xbf16>
    %cst_61 = arith.constant dense<0.000000e+00> : vector<256x128xf32>
    %60 = tpu.matmul %57, %59, %cst_61 {dimension_numbers = #tpu.dot_dimension_numbers<[1], [0], [0], [1], [0, 0, 1, 1], [], []>} : vector<256x128xbf16>, vector<128x128xbf16>, vector<256x128xf32> -> vector<256x128xf32>
    %61 = arith.addf %54, %60 : vector<256x128xf32>
    %c0_62 = arith.constant 0 : index
    %c0_63 = arith.constant 0 : index
    %62 = vector.load %arg3[%c0_62, %c0_63] : memref<1x128xf32, #tpu.memory_space<vmem>>, vector<1x128xf32>
    %63 = vector.broadcast %62 : vector<1x128xf32> to vector<256x128xf32>
    %64 = arith.addf %61, %63 : vector<256x128xf32>
    %c0_64 = arith.constant 0 : index
    %c0_65 = arith.constant 0 : index
    %c0_66 = arith.constant 0 : index
    %65 = vector.load %arg4[%c0_64, %c0_65, %c0_66] : memref<1x256x128xf32, #tpu.memory_space<vmem>>, vector<1x256x128xf32>
    %66 = vector.shape_cast %65 : vector<1x256x128xf32> to vector<256x128xf32>
    %67 = vector.shape_cast %64 : vector<256x128xf32> to vector<1x256x128xf32>
    tpu.vector_store %arg4[%c0_64, %c0_65, %c0_66], %67 {strides = array<i32>} : memref<1x256x128xf32, #tpu.memory_space<vmem>>, vector<1x256x128xf32>,
    %cst_67 = arith.constant dense<0.000000e+00> : vector<128xf32>
    %68 = vector.multi_reduction <add>, %64, %cst_67 [0] : vector<256x128xf32> to vector<128xf32>
    %69 = vector.shape_cast %68 : vector<128xf32> to vector<1x128xf32>
    %c0_68 = arith.constant 0 : index
    %c0_69 = arith.constant 0 : index
    %c0_70 = arith.constant 0 : index
    %70 = vector.load %arg5[%c0_68, %c0_69, %c0_70] : memref<1x2x128xf32, #tpu.memory_space<vmem>>, vector<1x1x128xf32>
    %71 = vector.shape_cast %70 : vector<1x1x128xf32> to vector<1x128xf32>
    %72 = vector.shape_cast %69 : vector<1x128xf32> to vector<1x1x128xf32>
    tpu.vector_store %arg5[%c0_68, %c0_69, %c0_70], %72 {strides = array<i32>} : memref<1x2x128xf32, #tpu.memory_space<vmem>>, vector<1x1x128xf32>,
    %73 = arith.mulf %64, %64 : vector<256x128xf32>
    %cst_71 = arith.constant dense<0.000000e+00> : vector<128xf32>
    %74 = vector.multi_reduction <add>, %73, %cst_71 [0] : vector<256x128xf32> to vector<128xf32>
    %75 = vector.shape_cast %74 : vector<128xf32> to vector<1x128xf32>
    %c0_72 = arith.constant 0 : index
    %c1_73 = arith.constant 1 : index
    %c0_74 = arith.constant 0 : index
    %76 = vector.load %arg5[%c0_72, %c1_73, %c0_74] : memref<1x2x128xf32, #tpu.memory_space<vmem>>, vector<1x1x128xf32>
    %77 = vector.shape_cast %76 : vector<1x1x128xf32> to vector<1x128xf32>
    %78 = vector.shape_cast %75 : vector<1x128xf32> to vector<1x1x128xf32>
    tpu.vector_store %arg5[%c0_72, %c1_73, %c0_74], %78 {strides = array<i32>} : memref<1x2x128xf32, #tpu.memory_space<vmem>>, vector<1x1x128xf32>,
    return
  }
  func.func @transform_0(%arg0: i32) -> (i32, i32, i32, i32) {
    %c0_i32 = arith.constant 0 : i32
    %c0_i32_0 = arith.constant 0 : i32
    %c0_i32_1 = arith.constant 0 : i32
    %c0_i32_2 = arith.constant 0 : i32
    return %arg0, %c0_i32, %c0_i32_0, %c0_i32_1 : i32, i32, i32, i32
  }
  func.func @transform_1(%arg0: i32) -> (i32, i32, i32) {
    %c0_i32 = arith.constant 0 : i32
    %c0_i32_0 = arith.constant 0 : i32
    %c0_i32_1 = arith.constant 0 : i32
    %c0_i32_2 = arith.constant 0 : i32
    return %c0_i32, %c0_i32_0, %c0_i32_1 : i32, i32, i32
  }
  func.func @transform_2(%arg0: i32) -> (i32, i32) {
    %c0_i32 = arith.constant 0 : i32
    %c0_i32_0 = arith.constant 0 : i32
    %c0_i32_1 = arith.constant 0 : i32
    return %c0_i32, %c0_i32_0 : i32, i32
  }
  func.func @transform_3(%arg0: i32) -> (i32, i32, i32) {
    %c0_i32 = arith.constant 0 : i32
    %c0_i32_0 = arith.constant 0 : i32
    %c0_i32_1 = arith.constant 0 : i32
    return %arg0, %c0_i32, %c0_i32_0 : i32, i32, i32
  }
  func.func @transform_4(%arg0: i32) -> (i32, i32, i32) {
    %c0_i32 = arith.constant 0 : i32
    %c0_i32_0 = arith.constant 0 : i32
    %c0_i32_1 = arith.constant 0 : i32
    return %arg0, %c0_i32, %c0_i32_0 : i32, i32, i32
  }
}

module attributes {stable_mosaic.version = 11 : i64} {
  func.func @bn_relu_kernel(%arg0: i32, %arg1: memref<1x256x128xf32, #tpu.memory_space<vmem>>, %arg2: memref<1x128xf32, #tpu.memory_space<vmem>>, %arg3: memref<1x128xf32, #tpu.memory_space<vmem>>, %arg4: memref<1x256x128xf32, #tpu.memory_space<vmem>>) attributes {dimension_semantics = [#tpu.dimension_semantics<parallel>], iteration_bounds = array<i64: 2>, scalar_prefetch = 0 : i64, scratch_operands = 0 : i64, tpu.core_type = #tpu.core_type<tc>, window_params = [{transform_indices = @transform_0, window_bounds = array<i64: 1, 256, 128>}, {pipeline_mode = #tpu.pipeline_mode<synchronous>, transform_indices = @transform_1, window_bounds = array<i64: 1, 128>}, {pipeline_mode = #tpu.pipeline_mode<synchronous>, transform_indices = @transform_2, window_bounds = array<i64: 1, 128>}, {transform_indices = @transform_3, window_bounds = array<i64: 1, 256, 128>}]} {
    %c0 = arith.constant 0 : index
    %c0_0 = arith.constant 0 : index
    %c0_1 = arith.constant 0 : index
    %0 = vector.load %arg1[%c0, %c0_0, %c0_1] : memref<1x256x128xf32, #tpu.memory_space<vmem>>, vector<1x256x128xf32>
    %1 = vector.shape_cast %0 : vector<1x256x128xf32> to vector<256x128xf32>
    %c0_2 = arith.constant 0 : index
    %c0_3 = arith.constant 0 : index
    %2 = vector.load %arg2[%c0_2, %c0_3] : memref<1x128xf32, #tpu.memory_space<vmem>>, vector<1x128xf32>
    %3 = vector.broadcast %2 : vector<1x128xf32> to vector<256x128xf32>
    %4 = arith.mulf %1, %3 : vector<256x128xf32>
    %c0_4 = arith.constant 0 : index
    %c0_5 = arith.constant 0 : index
    %5 = vector.load %arg3[%c0_4, %c0_5] : memref<1x128xf32, #tpu.memory_space<vmem>>, vector<1x128xf32>
    %6 = vector.broadcast %5 : vector<1x128xf32> to vector<256x128xf32>
    %7 = arith.addf %4, %6 : vector<256x128xf32>
    %cst = arith.constant 0.000000e+00 : f32
    %8 = vector.broadcast %cst : f32 to vector<256x128xf32>
    %9 = arith.maximumf %7, %8 : vector<256x128xf32>
    %c0_6 = arith.constant 0 : index
    %c0_7 = arith.constant 0 : index
    %c0_8 = arith.constant 0 : index
    %10 = vector.load %arg4[%c0_6, %c0_7, %c0_8] : memref<1x256x128xf32, #tpu.memory_space<vmem>>, vector<1x256x128xf32>
    %11 = vector.shape_cast %10 : vector<1x256x128xf32> to vector<256x128xf32>
    %12 = vector.shape_cast %9 : vector<256x128xf32> to vector<1x256x128xf32>
    tpu.vector_store %arg4[%c0_6, %c0_7, %c0_8], %12 {strides = array<i32>} : memref<1x256x128xf32, #tpu.memory_space<vmem>>, vector<1x256x128xf32>,
    return
  }
  func.func @transform_0(%arg0: i32) -> (i32, i32, i32) {
    %c0_i32 = arith.constant 0 : i32
    %c0_i32_0 = arith.constant 0 : i32
    %c0_i32_1 = arith.constant 0 : i32
    return %arg0, %c0_i32, %c0_i32_0 : i32, i32, i32
  }
  func.func @transform_1(%arg0: i32) -> (i32, i32) {
    %c0_i32 = arith.constant 0 : i32
    %c0_i32_0 = arith.constant 0 : i32
    %c0_i32_1 = arith.constant 0 : i32
    return %c0_i32, %c0_i32_0 : i32, i32
  }
  func.func @transform_2(%arg0: i32) -> (i32, i32) {
    %c0_i32 = arith.constant 0 : i32
    %c0_i32_0 = arith.constant 0 : i32
    %c0_i32_1 = arith.constant 0 : i32
    return %c0_i32, %c0_i32_0 : i32, i32
  }
  func.func @transform_3(%arg0: i32) -> (i32, i32, i32) {
    %c0_i32 = arith.constant 0 : i32
    %c0_i32_0 = arith.constant 0 : i32
    %c0_i32_1 = arith.constant 0 : i32
    return %arg0, %c0_i32, %c0_i32_0 : i32, i32, i32
  }
}

</mosaic_0001>

<llo_original>
// kernel: conv_block.3
$region0: #{conv_block.3}
  #allocation0 [shape = 'u32[]', space=smem, size = 0x4, offset = 0x4, fixed_abs, tag = 'smem constant byte address 0x4 - core index']
  #allocation1 [shape = 'u32[144,128]{1,0:T(1,128)}', space=vmem, size = 0x12000, scoped, tag = 'internal scratch']
  %s0 = inlined_call_operand.vmem [shape: f32[2,256,128], index: 0, kind: input, shape index: {}, may-alias: {0,3}]
  %s1 = inlined_call_operand.vmem [shape: f32[1,128], index: 1, kind: input, shape index: {}]
  %s2 = inlined_call_operand.vmem [shape: f32[1,128], index: 2, kind: input, shape index: {}]
  %s3 = inlined_call_operand.vmem [shape: f32[2,256,128], index: 3, kind: output, shape index: {}, may-alias: {0,3}]
  %s4 = sld [smem:[#allocation0]]
  $region45: #{conv_block.3} parent=0
    _
  %s6 = ssub.s32 1, %s4
  %s7 = scalar_select 0, %s6, %s4
  loop: start=0, step=1, limit=4
  $region2: #{conv_block.3} parent=0 // loop_pre_header
    _
  $region3: #{conv_block.3} parent=0 // loop_header
    %s9 = sphi 0, %s13
    %p10 = scmp.ge.s32.totalorder %s9, 4
    %s19 = sphi 0, %s21
    %s22 = sphi 0, %s19
    %s23 = sphi 0, %s22
    %s39 = sphi 0, %s23
    %s43 = sphi 0, %s43
    %s45 = sphi 0, %s43
    %s46 = sphi 0, %s45
    %s60 = sphi 0, %s46
    %s64 = sphi 0, %s64
    %s66 = sphi 0, %s64
    %s67 = sphi 0, %s66
    %s81 = sphi 0, %s67
    %s87 = sphi 0, %s89
    %s90 = sphi 0, %s87
    %s91 = sphi 0, %s90
    %s107 = sphi 0, %s91
  $region4: #{conv_block.3} parent=0 // loop_header_branch
    %12 = sbr.rel (%p10) target = $region8
  $region5: #{conv_block.3} parent=0 // loop_body
    %s14 = ssub.s32 %s9, 1
    %s15 = ssub.s32 %s9, 2
    %s16 = sadd.s32 %s9, 1
    %s17 = ssub.s32 %s9, %s16
    %p18 = scmp.eq.s32.totalorder %s17, 0
    %s20 = sadd.s32 %s19, 1
    %s21 = scalar_select %p18, %s19, %s20
    %p24 = pneg %p18
    %p25 = scmp.eq.s32.totalorder %s9, 1
    %p26 = por %p24, %p25
    %p27 = scmp.ne.s32.totalorder %s19, %s22
    %p28 = scmp.eq.s32.totalorder %s9, 0
    %p29 = por %p27, %p28
    %p30 = scmp.ne.s32.totalorder %s19, %s22
    %p31 = scmp.eq.s32.totalorder %s14, 1
    %p32 = por %p30, %p31
    %p33 = scmp.ne.s32.totalorder %s22, %s23
    %p34 = scmp.eq.s32.totalorder %s14, 0
    %p35 = por %p33, %p34
    %p36 = scmp.ne.s32.totalorder %s22, %s23
    %p37 = scmp.eq.s32.totalorder %s15, 1
    %p38 = por %p36, %p37
    %p40 = scmp.ne.s32.totalorder %s23, %s39
    %p41 = scmp.eq.s32.totalorder %s15, 0
    %p42 = por %p40, %p41
    %s44 = sadd.s32 %s43, 1
    %p47 = scmp.eq.s32.totalorder %s9, 1
    %p48 = scmp.ne.s32.totalorder %s43, %s45
    %p49 = scmp.eq.s32.totalorder %s9, 0
    %p50 = por %p48, %p49
    %p51 = scmp.ne.s32.totalorder %s43, %s45
    %p52 = scmp.eq.s32.totalorder %s14, 1
    %p53 = por %p51, %p52
    %p54 = scmp.ne.s32.totalorder %s45, %s46
    %p55 = scmp.eq.s32.totalorder %s14, 0
    %p56 = por %p54, %p55
    %p57 = scmp.ne.s32.totalorder %s45, %s46
    %p58 = scmp.eq.s32.totalorder %s15, 1
    %p59 = por %p57, %p58
    %p61 = scmp.ne.s32.totalorder %s46, %s60
    %p62 = scmp.eq.s32.totalorder %s15, 0
    %p63 = por %p61, %p62
    %s65 = sadd.s32 %s64, 1
    %p68 = scmp.eq.s32.totalorder %s9, 1
    %p69 = scmp.ne.s32.totalorder %s64, %s66
    %p70 = scmp.eq.s32.totalorder %s9, 0
    %p71 = por %p69, %p70
    %p72 = scmp.ne.s32.totalorder %s64, %s66
    %p73 = scmp.eq.s32.totalorder %s14, 1
    %p74 = por %p72, %p73
    %p75 = scmp.ne.s32.totalorder %s66, %s67
    %p76 = scmp.eq.s32.totalorder %s14, 0
    %p77 = por %p75, %p76
    %p78 = scmp.ne.s32.totalorder %s66, %s67
    %p79 = scmp.eq.s32.totalorder %s15, 1
    %p80 = por %p78, %p79
    %p82 = scmp.ne.s32.totalorder %s67, %s81
    %p83 = scmp.eq.s32.totalorder %s15, 0
    %p84 = por %p82, %p83
    %s85 = ssub.s32 %s9, %s16
    %p86 = scmp.eq.s32.totalorder %s85, 0
    %s88 = sadd.s32 %s87, 1
    %s89 = scalar_select %p86, %s87, %s88
    %p92 = pneg %p86
    %p93 = scmp.eq.s32.totalorder %s9, 1
    %p94 = por %p92, %p93
    %p95 = scmp.ne.s32.totalorder %s87, %s90
    %p96 = scmp.eq.s32.totalorder %s9, 0
    %p97 = por %p95, %p96
    %p98 = scmp.ne.s32.totalorder %s87, %s90
    %p99 = scmp.eq.s32.totalorder %s14, 1
    %p100 = por %p98, %p99
    %p101 = scmp.ne.s32.totalorder %s90, %s91
    %p102 = scmp.eq.s32.totalorder %s14, 0
    %p103 = por %p101, %p102
    %p104 = scmp.ne.s32.totalorder %s90, %s91
    %p105 = scmp.eq.s32.totalorder %s15, 1
    %p106 = por %p104, %p105
    %p108 = scmp.ne.s32.totalorder %s91, %s107
    %p109 = scmp.eq.s32.totalorder %s15, 0
    %p110 = por %p108, %p109
    %p111 = scmp.le.s32.totalorder 1, %s9
    %p112 = scmp.lt.s32.totalorder %s9, 3
    %p113 = pnand %p111, %p112
    %p114 = pneg %p113
    // Predicated region
    $region9: #{conv_block.3} parent=5 // pred_check
      _
    $region10: #{conv_block.3} parent=5 // pred_check_branch
      %116 = sbr.rel (%p113) target = $region12
    $region11: #{conv_block.3} parent=5 // pred_region
      %s117 = ssub.s32 %s9, 1
      // Predicated region
      $region13: #{conv_block.3} parent=11 // pred_check
        %p118 = pneg %p56
      $region14: #{conv_block.3} parent=11 // pred_check_branch
        %120 = sbr.rel (%p118) target = $region16
      $region15: #{conv_block.3} parent=11 // pred_region
        _
      $region16: #{conv_block.3} parent=11 // pred_fallthru
        _
      // Predicated region
      $region17: #{conv_block.3} parent=11 // pred_check
        %p121 = pneg %p77
      $region18: #{conv_block.3} parent=11 // pred_check_branch
        %123 = sbr.rel (%p121) target = $region20
      $region19: #{conv_block.3} parent=11 // pred_region
        _
      $region20: #{conv_block.3} parent=11 // pred_fallthru
        _
    $region12: #{conv_block.3} parent=5 // pred_fallthru
      _
    %p124 = scmp.lt.s32.totalorder %s9, 2
    // Predicated region
    $region21: #{conv_block.3} parent=5 // pred_check
      %p125 = pneg %p124
    $region22: #{conv_block.3} parent=5 // pred_check_branch
      %127 = sbr.rel (%p125) target = $region24
    $region23: #{conv_block.3} parent=5 // pred_region
      // Predicated region
      $region25: #{conv_block.3} parent=23 // pred_check
        %p128 = pneg %p29
      $region26: #{conv_block.3} parent=23 // pred_check_branch
        %130 = sbr.rel (%p128) target = $region28
      $region27: #{conv_block.3} parent=23 // pred_region
        %p131 = scmp.lt.s32.totalorder %s9, 1
        %s132 = scalar_select %p131, %s9, 1
        %s133 = smul.addr %s132, 32
        %s134 = smul.addr %s133, 8
        %s135 = scalar_lea.vmem %s0, %s134
      $region28: #{conv_block.3} parent=23 // pred_fallthru
        _
    $region24: #{conv_block.3} parent=5 // pred_fallthru
      _
    %p136 = scmp.le.s32.totalorder 1, %s9
    %p137 = scmp.lt.s32.totalorder %s9, 3
    %p138 = pnand %p136, %p137
    %p139 = pneg %p138
    // Predicated region
    $region29: #{conv_block.3} parent=5 // pred_check
      _
    $region30: #{conv_block.3} parent=5 // pred_check_branch
      %141 = sbr.rel (%p138) target = $region32
    $region31: #{conv_block.3} parent=5 // pred_region
      %s142 = ssub.s32 %s9, 1
      %p143 = scmp.lt.s32.totalorder %s14, 1
      %s144 = scalar_select %p143, %s14, 1
      %s145 = smul.addr %s144, 32
      %s146 = smul.addr %s145, 8
      %s147 = scalar_lea.vmem %s0, %s146
      %p148 = pneg %p35
      %p149 = pneg %p32
      %p150 = pneg %p56
      %p151 = pneg %p53
      %p152 = pneg %p77
      %p153 = pneg %p74
      %p154 = pneg %p103
      %p155 = pneg %p100
      %p156 = scmp.lt.s32.totalorder %s14, 1
      %s157 = scalar_select %p156, %s14, 1
      %s158 = smul.addr %s157, 32
      %s159 = smul.addr %s158, 8
      %s160 = scalar_lea.vmem %s3, %s159
      %p161 = scmp.lt.s32.totalorder %s14, 1
      %s162 = scalar_select %p161, %s14, 1
      %s163 = smul.addr %s162, 32
      %s164 = smul.addr %s163, 8
      %s165 = scalar_lea.vmem %s0, %s164
      %p166 = scmp.lt.s32.totalorder %s14, 1
      %s167 = scalar_select %p166, %s14, 1
      %s168 = smul.addr %s167, 32
      %s169 = smul.addr %s168, 8
      %s170 = scalar_lea.vmem %s3, %s169
      %v171 = vld [vmem:[%s165] sm:$0xff]
      %v172 = vld [vmem:[%s165 + $0x8] sm:$0xff]
      %v173 = vld [vmem:[%s165 + $0x10] sm:$0xff]
      %v174 = vld [vmem:[%s165 + $0x18] sm:$0xff]
      %v175 = vld [vmem:[%s165 + $0x20] sm:$0xff]
      %v176 = vld [vmem:[%s165 + $0x28] sm:$0xff]
      %v177 = vld [vmem:[%s165 + $0x30] sm:$0xff]
      %v178 = vld [vmem:[%s165 + $0x38] sm:$0xff]
      %v179 = vld [vmem:[%s165 + $0x40] sm:$0xff]
      %v180 = vld [vmem:[%s165 + $0x48] sm:$0xff]
      %v181 = vld [vmem:[%s165 + $0x50] sm:$0xff]
      %v182 = vld [vmem:[%s165 + $0x58] sm:$0xff]
      %v183 = vld [vmem:[%s165 + $0x60] sm:$0xff]
      %v184 = vld [vmem:[%s165 + $0x68] sm:$0xff]
      %v185 = vld [vmem:[%s165 + $0x70] sm:$0xff]
      %v186 = vld [vmem:[%s165 + $0x78] sm:$0xff]
      %v187 = vld [vmem:[%s165 + $0x80] sm:$0xff]
      %v188 = vld [vmem:[%s165 + $0x88] sm:$0xff]
      %v189 = vld [vmem:[%s165 + $0x90] sm:$0xff]
      %v190 = vld [vmem:[%s165 + $0x98] sm:$0xff]
      %v191 = vld [vmem:[%s165 + $0xa0] sm:$0xff]
      %v192 = vld [vmem:[%s165 + $0xa8] sm:$0xff]
      %v193 = vld [vmem:[%s165 + $0xb0] sm:$0xff]
      %v194 = vld [vmem:[%s165 + $0xb8] sm:$0xff]
      %v195 = vld [vmem:[%s165 + $0xc0] sm:$0xff]
      %v196 = vld [vmem:[%s165 + $0xc8] sm:$0xff]
      %v197 = vld [vmem:[%s165 + $0xd0] sm:$0xff]
      %v198 = vld [vmem:[%s165 + $0xd8] sm:$0xff]
      %v199 = vld [vmem:[%s165 + $0xe0] sm:$0xff]
      %v200 = vld [vmem:[%s165 + $0xe8] sm:$0xff]
      %v201 = vld [vmem:[%s165 + $0xf0] sm:$0xff]
      %v202 = vld [vmem:[%s165 + $0xf8] sm:$0xff]
      %v203 = vld [vmem:[%s1] sm:$0x1]
      %v205 = vlaneseq
      %v206 = vshrl.u32 %v205, 7
      %v207 = vsub.s32 0, %v206
      %v208 = vrot.slane %v203, %v207
      %v210 = vmul.f32 %v171, %v208
      %v211 = vmul.f32 %v172, %v208
      %v212 = vmul.f32 %v173, %v208
      %v213 = vmul.f32 %v174, %v208
      %v214 = vmul.f32 %v175, %v208
      %v215 = vmul.f32 %v176, %v208
      %v216 = vmul.f32 %v177, %v208
      %v217 = vmul.f32 %v178, %v208
      %v218 = vmul.f32 %v179, %v208
      %v219 = vmul.f32 %v180, %v208
      %v220 = vmul.f32 %v181, %v208
      %v221 = vmul.f32 %v182, %v208
      %v222 = vmul.f32 %v183, %v208
      %v223 = vmul.f32 %v184, %v208
      %v224 = vmul.f32 %v185, %v208
      %v225 = vmul.f32 %v186, %v208
      %v226 = vmul.f32 %v187, %v208
      %v227 = vmul.f32 %v188, %v208
      %v228 = vmul.f32 %v189, %v208
      %v229 = vmul.f32 %v190, %v208
      %v230 = vmul.f32 %v191, %v208
      %v231 = vmul.f32 %v192, %v208
      %v232 = vmul.f32 %v193, %v208
      %v233 = vmul.f32 %v194, %v208
      %v234 = vmul.f32 %v195, %v208
      %v235 = vmul.f32 %v196, %v208
      %v236 = vmul.f32 %v197, %v208
      %v237 = vmul.f32 %v198, %v208
      %v238 = vmul.f32 %v199, %v208
      %v239 = vmul.f32 %v200, %v208
      %v240 = vmul.f32 %v201, %v208
      %v241 = vmul.f32 %v202, %v208
      %v242 = vld [vmem:[%s2] sm:$0x1]
      %v244 = vlaneseq
      %v245 = vshrl.u32 %v244, 7
      %v246 = vsub.s32 0, %v245
      %v247 = vrot.slane %v242, %v246
      %v249 = vadd.f32 %v210, %v247
      %v250 = vadd.f32 %v211, %v247
      %v251 = vadd.f32 %v212, %v247
      %v252 = vadd.f32 %v213, %v247
      %v253 = vadd.f32 %v214, %v247
      %v254 = vadd.f32 %v215, %v247
      %v255 = vadd.f32 %v216, %v247
      %v256 = vadd.f32 %v217, %v247
      %v257 = vadd.f32 %v218, %v247
      %v258 = vadd.f32 %v219, %v247
      %v259 = vadd.f32 %v220, %v247
      %v260 = vadd.f32 %v221, %v247
      %v261 = vadd.f32 %v222, %v247
      %v262 = vadd.f32 %v223, %v247
      %v263 = vadd.f32 %v224, %v247
      %v264 = vadd.f32 %v225, %v247
      %v265 = vadd.f32 %v226, %v247
      %v266 = vadd.f32 %v227, %v247
      %v267 = vadd.f32 %v228, %v247
      %v268 = vadd.f32 %v229, %v247
      %v269 = vadd.f32 %v230, %v247
      %v270 = vadd.f32 %v231, %v247
      %v271 = vadd.f32 %v232, %v247
      %v272 = vadd.f32 %v233, %v247
      %v273 = vadd.f32 %v234, %v247
      %v274 = vadd.f32 %v235, %v247
      %v275 = vadd.f32 %v236, %v247
      %v276 = vadd.f32 %v237, %v247
      %v277 = vadd.f32 %v238, %v247
      %v278 = vadd.f32 %v239, %v247
      %v279 = vadd.f32 %v240, %v247
      %v280 = vadd.f32 %v241, %v247
      %v281 = vmax.f32 %v249, 0.0
      %v282 = vmax.f32 %v250, 0.0
      %v283 = vmax.f32 %v251, 0.0
      %v284 = vmax.f32 %v252, 0.0
      %v285 = vmax.f32 %v253, 0.0
      %v286 = vmax.f32 %v254, 0.0
      %v287 = vmax.f32 %v255, 0.0
      %v288 = vmax.f32 %v256, 0.0
      %v289 = vmax.f32 %v257, 0.0
      %v290 = vmax.f32 %v258, 0.0
      %v291 = vmax.f32 %v259, 0.0
      %v292 = vmax.f32 %v260, 0.0
      %v293 = vmax.f32 %v261, 0.0
      %v294 = vmax.f32 %v262, 0.0
      %v295 = vmax.f32 %v263, 0.0
      %v296 = vmax.f32 %v264, 0.0
      %v297 = vmax.f32 %v265, 0.0
      %v298 = vmax.f32 %v266, 0.0
      %v299 = vmax.f32 %v267, 0.0
      %v300 = vmax.f32 %v268, 0.0
      %v301 = vmax.f32 %v269, 0.0
      %v302 = vmax.f32 %v270, 0.0
      %v303 = vmax.f32 %v271, 0.0
      %v304 = vmax.f32 %v272, 0.0
      %v305 = vmax.f32 %v273, 0.0
      %v306 = vmax.f32 %v274, 0.0
      %v307 = vmax.f32 %v275, 0.0
      %v308 = vmax.f32 %v276, 0.0
      %v309 = vmax.f32 %v277, 0.0
      %v310 = vmax.f32 %v278, 0.0
      %v311 = vmax.f32 %v279, 0.0
      %v312 = vmax.f32 %v280, 0.0
      %313 = vst [vmem:[%s170] sm:$0xff] %v281
      %314 = vst [vmem:[%s170 + $0x8] sm:$0xff] %v282
      %315 = vst [vmem:[%s170 + $0x10] sm:$0xff] %v283
      %316 = vst [vmem:[%s170 + $0x18] sm:$0xff] %v284
      %317 = vst [vmem:[%s170 + $0x20] sm:$0xff] %v285
      %318 = vst [vmem:[%s170 + $0x28] sm:$0xff] %v286
      %319 = vst [vmem:[%s170 + $0x30] sm:$0xff] %v287
      %320 = vst [vmem:[%s170 + $0x38] sm:$0xff] %v288
      %321 = vst [vmem:[%s170 + $0x40] sm:$0xff] %v289
      %322 = vst [vmem:[%s170 + $0x48] sm:$0xff] %v290
      %323 = vst [vmem:[%s170 + $0x50] sm:$0xff] %v291
      %324 = vst [vmem:[%s170 + $0x58] sm:$0xff] %v292
      %325 = vst [vmem:[%s170 + $0x60] sm:$0xff] %v293
      %326 = vst [vmem:[%s170 + $0x68] sm:$0xff] %v294
      %327 = vst [vmem:[%s170 + $0x70] sm:$0xff] %v295
      %328 = vst [vmem:[%s170 + $0x78] sm:$0xff] %v296
      %329 = vst [vmem:[%s170 + $0x80] sm:$0xff] %v297
      %330 = vst [vmem:[%s170 + $0x88] sm:$0xff] %v298
      %331 = vst [vmem:[%s170 + $0x90] sm:$0xff] %v299
      %332 = vst [vmem:[%s170 + $0x98] sm:$0xff] %v300
      %333 = vst [vmem:[%s170 + $0xa0] sm:$0xff] %v301
      %334 = vst [vmem:[%s170 + $0xa8] sm:$0xff] %v302
      %335 = vst [vmem:[%s170 + $0xb0] sm:$0xff] %v303
      %336 = vst [vmem:[%s170 + $0xb8] sm:$0xff] %v304
      %337 = vst [vmem:[%s170 + $0xc0] sm:$0xff] %v305
      %338 = vst [vmem:[%s170 + $0xc8] sm:$0xff] %v306
      %339 = vst [vmem:[%s170 + $0xd0] sm:$0xff] %v307
      %340 = vst [vmem:[%s170 + $0xd8] sm:$0xff] %v308
      %341 = vst [vmem:[%s170 + $0xe0] sm:$0xff] %v309
      %342 = vst [vmem:[%s170 + $0xe8] sm:$0xff] %v310
      %343 = vst [vmem:[%s170 + $0xf0] sm:$0xff] %v311
      %344 = vst [vmem:[%s170 + $0xf8] sm:$0xff] %v312
      %p345 = scmp.lt.s32.totalorder %s14, 1
      %s346 = scalar_select %p345, %s14, 1
      %s347 = smul.addr %s346, 32
      %s348 = smul.addr %s347, 8
      %s349 = scalar_lea.vmem %s3, %s348
      // Predicated region
      $region33: #{conv_block.3} parent=31 // pred_check
        %p350 = pneg %p100
      $region34: #{conv_block.3} parent=31 // pred_check_branch
        %352 = sbr.rel (%p350) target = $region36
      $region35: #{conv_block.3} parent=31 // pred_region
        _
      $region36: #{conv_block.3} parent=31 // pred_fallthru
        _
    $region32: #{conv_block.3} parent=5 // pred_fallthru
      _
    %p353 = scmp.le.s32.totalorder 2, %s9
    // Predicated region
    $region37: #{conv_block.3} parent=5 // pred_check
      %p354 = pneg %p353
    $region38: #{conv_block.3} parent=5 // pred_check_branch
      %356 = sbr.rel (%p354) target = $region40
    $region39: #{conv_block.3} parent=5 // pred_region
      %s357 = ssub.s32 %s9, 2
      // Predicated region
      $region41: #{conv_block.3} parent=39 // pred_check
        %p358 = pneg %p106
      $region42: #{conv_block.3} parent=39 // pred_check_branch
        %360 = sbr.rel (%p358) target = $region44
      $region43: #{conv_block.3} parent=39 // pred_region
        %p361 = scmp.lt.s32.totalorder %s15, 1
        %s362 = scalar_select %p361, %s15, 1
        %s363 = smul.addr %s362, 32
        %s364 = smul.addr %s363, 8
        %s365 = scalar_lea.vmem %s3, %s364
      $region44: #{conv_block.3} parent=39 // pred_fallthru
        _
    $region40: #{conv_block.3} parent=5 // pred_fallthru
      _
  $region6: #{conv_block.3} parent=0 // loop_footer
    %s13 = sadd.s32 1, %s9
  $region7: #{conv_block.3} parent=0 // loop_footer_branch
    %8 = sbr.rel target = $region3
  $region8: #{conv_block.3} parent=0 // loop_exit
    _

// kernel: conv_block.2
$region0: #{conv_block.2}
  #allocation0 [shape = 'u32[]', space=smem, size = 0x4, offset = 0x4, fixed_abs, tag = 'smem constant byte address 0x4 - core index']
  #allocation1 [shape = 'u32[144,128]{1,0:T(1,128)}', space=vmem, size = 0x12000, scoped, tag = 'internal scratch']
  %s0 = inlined_call_operand.vmem [shape: bf16[2,18,18,128], index: 0, kind: input, shape index: {}]
  %s1 = inlined_call_operand.vmem [shape: bf16[9,128,128], index: 1, kind: input, shape index: {}]
  %s2 = inlined_call_operand.vmem [shape: f32[1,128], index: 2, kind: input, shape index: {}]
  %s3 = inlined_call_operand.vmem [shape: f32[2,256,128], index: 3, kind: output, shape index: {0}]
  %s4 = inlined_call_operand.vmem [shape: f32[2,2,128], index: 4, kind: output, shape index: {1}]
  %5 = xla_tuple %s3, %s4
  %s6 = sld [smem:[#allocation0]]
  $region53: #{conv_block.2} parent=0
    _
  %s8 = ssub.s32 1, %s6
  %s9 = scalar_select 0, %s8, %s6
  loop: start=0, step=1, limit=4
  $region2: #{conv_block.2} parent=0 // loop_pre_header
    _
  $region3: #{conv_block.2} parent=0 // loop_header
    %s11 = sphi 0, %s15
    %p12 = scmp.ge.s32.totalorder %s11, 4
    %s21 = sphi 0, %s23
    %s24 = sphi 0, %s21
    %s25 = sphi 0, %s24
    %s41 = sphi 0, %s25
    %s45 = sphi 0, %s45
    %s47 = sphi 0, %s45
    %s48 = sphi 0, %s47
    %s62 = sphi 0, %s48
    %s66 = sphi 0, %s66
    %s68 = sphi 0, %s66
    %s69 = sphi 0, %s68
    %s83 = sphi 0, %s69
    %s89 = sphi 0, %s91
    %s92 = sphi 0, %s89
    %s93 = sphi 0, %s92
    %s109 = sphi 0, %s93
    %s115 = sphi 0, %s117
    %s118 = sphi 0, %s115
    %s119 = sphi 0, %s118
    %s135 = sphi 0, %s119
  $region4: #{conv_block.2} parent=0 // loop_header_branch
    %14 = sbr.rel (%p12) target = $region8
  $region5: #{conv_block.2} parent=0 // loop_body
    %s16 = ssub.s32 %s11, 1
    %s17 = ssub.s32 %s11, 2
    %s18 = sadd.s32 %s11, 1
    %s19 = ssub.s32 %s11, %s18
    %p20 = scmp.eq.s32.totalorder %s19, 0
    %s22 = sadd.s32 %s21, 1
    %s23 = scalar_select %p20, %s21, %s22
    %p26 = pneg %p20
    %p27 = scmp.eq.s32.totalorder %s11, 1
    %p28 = por %p26, %p27
    %p29 = scmp.ne.s32.totalorder %s21, %s24
    %p30 = scmp.eq.s32.totalorder %s11, 0
    %p31 = por %p29, %p30
    %p32 = scmp.ne.s32.totalorder %s21, %s24
    %p33 = scmp.eq.s32.totalorder %s16, 1
    %p34 = por %p32, %p33
    %p35 = scmp.ne.s32.totalorder %s24, %s25
    %p36 = scmp.eq.s32.totalorder %s16, 0
    %p37 = por %p35, %p36
    %p38 = scmp.ne.s32.totalorder %s24, %s25
    %p39 = scmp.eq.s32.totalorder %s17, 1
    %p40 = por %p38, %p39
    %p42 = scmp.ne.s32.totalorder %s25, %s41
    %p43 = scmp.eq.s32.totalorder %s17, 0
    %p44 = por %p42, %p43
    %s46 = sadd.s32 %s45, 1
    %p49 = scmp.eq.s32.totalorder %s11, 1
    %p50 = scmp.ne.s32.totalorder %s45, %s47
    %p51 = scmp.eq.s32.totalorder %s11, 0
    %p52 = por %p50, %p51
    %p53 = scmp.ne.s32.totalorder %s45, %s47
    %p54 = scmp.eq.s32.totalorder %s16, 1
    %p55 = por %p53, %p54
    %p56 = scmp.ne.s32.totalorder %s47, %s48
    %p57 = scmp.eq.s32.totalorder %s16, 0
    %p58 = por %p56, %p57
    %p59 = scmp.ne.s32.totalorder %s47, %s48
    %p60 = scmp.eq.s32.totalorder %s17, 1
    %p61 = por %p59, %p60
    %p63 = scmp.ne.s32.totalorder %s48, %s62
    %p64 = scmp.eq.s32.totalorder %s17, 0
    %p65 = por %p63, %p64
    %s67 = sadd.s32 %s66, 1
    %p70 = scmp.eq.s32.totalorder %s11, 1
    %p71 = scmp.ne.s32.totalorder %s66, %s68
    %p72 = scmp.eq.s32.totalorder %s11, 0
    %p73 = por %p71, %p72
    %p74 = scmp.ne.s32.totalorder %s66, %s68
    %p75 = scmp.eq.s32.totalorder %s16, 1
    %p76 = por %p74, %p75
    %p77 = scmp.ne.s32.totalorder %s68, %s69
    %p78 = scmp.eq.s32.totalorder %s16, 0
    %p79 = por %p77, %p78
    %p80 = scmp.ne.s32.totalorder %s68, %s69
    %p81 = scmp.eq.s32.totalorder %s17, 1
    %p82 = por %p80, %p81
    %p84 = scmp.ne.s32.totalorder %s69, %s83
    %p85 = scmp.eq.s32.totalorder %s17, 0
    %p86 = por %p84, %p85
    %s87 = ssub.s32 %s11, %s18
    %p88 = scmp.eq.s32.totalorder %s87, 0
    %s90 = sadd.s32 %s89, 1
    %s91 = scalar_select %p88, %s89, %s90
    %p94 = pneg %p88
    %p95 = scmp.eq.s32.totalorder %s11, 1
    %p96 = por %p94, %p95
    %p97 = scmp.ne.s32.totalorder %s89, %s92
    %p98 = scmp.eq.s32.totalorder %s11, 0
    %p99 = por %p97, %p98
    %p100 = scmp.ne.s32.totalorder %s89, %s92
    %p101 = scmp.eq.s32.totalorder %s16, 1
    %p102 = por %p100, %p101
    %p103 = scmp.ne.s32.totalorder %s92, %s93
    %p104 = scmp.eq.s32.totalorder %s16, 0
    %p105 = por %p103, %p104
    %p106 = scmp.ne.s32.totalorder %s92, %s93
    %p107 = scmp.eq.s32.totalorder %s17, 1
    %p108 = por %p106, %p107
    %p110 = scmp.ne.s32.totalorder %s93, %s109
    %p111 = scmp.eq.s32.totalorder %s17, 0
    %p112 = por %p110, %p111
    %s113 = ssub.s32 %s11, %s18
    %p114 = scmp.eq.s32.totalorder %s113, 0
    %s116 = sadd.s32 %s115, 1
    %s117 = scalar_select %p114, %s115, %s116
    %p120 = pneg %p114
    %p121 = scmp.eq.s32.totalorder %s11, 1
    %p122 = por %p120, %p121
    %p123 = scmp.ne.s32.totalorder %s115, %s118
    %p124 = scmp.eq.s32.totalorder %s11, 0
    %p125 = por %p123, %p124
    %p126 = scmp.ne.s32.totalorder %s115, %s118
    %p127 = scmp.eq.s32.totalorder %s16, 1
    %p128 = por %p126, %p127
    %p129 = scmp.ne.s32.totalorder %s118, %s119
    %p130 = scmp.eq.s32.totalorder %s16, 0
    %p131 = por %p129, %p130
    %p132 = scmp.ne.s32.totalorder %s118, %s119
    %p133 = scmp.eq.s32.totalorder %s17, 1
    %p134 = por %p132, %p133
    %p136 = scmp.ne.s32.totalorder %s119, %s135
    %p137 = scmp.eq.s32.totalorder %s17, 0
    %p138 = por %p136, %p137
    %p139 = scmp.le.s32.totalorder 1, %s11
    %p140 = scmp.lt.s32.totalorder %s11, 3
    %p141 = pnand %p139, %p140
    %p142 = pneg %p141
    // Predicated region
    $region9: #{conv_block.2} parent=5 // pred_check
      _
    $region10: #{conv_block.2} parent=5 // pred_check_branch
      %144 = sbr.rel (%p141) target = $region12
    $region11: #{conv_block.2} parent=5 // pred_region
      %s145 = ssub.s32 %s11, 1
      // Predicated region
      $region13: #{conv_block.2} parent=11 // pred_check
        %p146 = pneg %p58
      $region14: #{conv_block.2} parent=11 // pred_check_branch
        %148 = sbr.rel (%p146) target = $region16
      $region15: #{conv_block.2} parent=11 // pred_region
        _
      $region16: #{conv_block.2} parent=11 // pred_fallthru
        _
      // Predicated region
      $region17: #{conv_block.2} parent=11 // pred_check
        %p149 = pneg %p79
      $region18: #{conv_block.2} parent=11 // pred_check_branch
        %151 = sbr.rel (%p149) target = $region20
      $region19: #{conv_block.2} parent=11 // pred_region
        _
      $region20: #{conv_block.2} parent=11 // pred_fallthru
        _
    $region12: #{conv_block.2} parent=5 // pred_fallthru
      _
    %p152 = scmp.lt.s32.totalorder %s11, 2
    // Predicated region
    $region21: #{conv_block.2} parent=5 // pred_check
      %p153 = pneg %p152
    $region22: #{conv_block.2} parent=5 // pred_check_branch
      %155 = sbr.rel (%p153) target = $region24
    $region23: #{conv_block.2} parent=5 // pred_region
      // Predicated region
      $region25: #{conv_block.2} parent=23 // pred_check
        %p156 = pneg %p31
      $region26: #{conv_block.2} parent=23 // pred_check_branch
        %158 = sbr.rel (%p156) target = $region28
      $region27: #{conv_block.2} parent=23 // pred_region
        %p159 = scmp.lt.s32.totalorder %s11, 1
        %s160 = scalar_select %p159, %s11, 1
        %s161 = smul.addr %s160, 54
        %s162 = smul.addr %s161, 4
        %s163 = scalar_lea.vmem %s0, %s162
      $region28: #{conv_block.2} parent=23 // pred_fallthru
        _
    $region24: #{conv_block.2} parent=5 // pred_fallthru
      _
    %p164 = scmp.le.s32.totalorder 1, %s11
    %p165 = scmp.lt.s32.totalorder %s11, 3
    %p166 = pnand %p164, %p165
    %p167 = pneg %p166
    // Predicated region
    $region29: #{conv_block.2} parent=5 // pred_check
      _
    $region30: #{conv_block.2} parent=5 // pred_check_branch
      %169 = sbr.rel (%p166) target = $region32
    $region31: #{conv_block.2} parent=5 // pred_region
      %s170 = ssub.s32 %s11, 1
      %p171 = scmp.lt.s32.totalorder %s16, 1
      %s172 = scalar_select %p171, %s16, 1
      %s173 = smul.addr %s172, 54
      %s174 = smul.addr %s173, 4
      %s175 = scalar_lea.vmem %s0, %s174
      %p176 = pneg %p37
      %p177 = pneg %p34
      %p178 = pneg %p58
      %p179 = pneg %p55
      %p180 = pneg %p79
      %p181 = pneg %p76
      %p182 = pneg %p105
      %p183 = pneg %p102
      %p184 = scmp.lt.s32.totalorder %s16, 1
      %s185 = scalar_select %p184, %s16, 1
      %s186 = smul.addr %s185, 32
      %s187 = smul.addr %s186, 8
      %s188 = scalar_lea.vmem %s3, %s187
      %p189 = pneg %p131
      %p190 = pneg %p128
      %p191 = scmp.lt.s32.totalorder %s16, 1
      %s192 = scalar_select %p191, %s16, 1
      %s193 = smul.addr %s192, 2
      %s194 = scalar_lea.vmem %s4, %s193
      %p195 = scmp.lt.s32.totalorder %s16, 1
      %s196 = scalar_select %p195, %s16, 1
      %s197 = smul.addr %s196, 54
      %s198 = smul.addr %s197, 4
      %s199 = scalar_lea.vmem %s0, %s198
      %p200 = scmp.lt.s32.totalorder %s16, 1
      %s201 = scalar_select %p200, %s16, 1
      %s202 = smul.addr %s201, 32
      %s203 = smul.addr %s202, 8
      %s204 = scalar_lea.vmem %s3, %s203
      %p205 = scmp.lt.s32.totalorder %s16, 1
      %s206 = scalar_select %p205, %s16, 1
      %s207 = smul.addr %s206, 2
      %s208 = scalar_lea.vmem %s4, %s207
      %v210 = vld [vmem:[%s199] sm:$0xf]
      %v211 = vld [vmem:[%s199 + $0x4] sm:$0xf]
      %v212 = vld [vmem:[%s199 + $0xc] sm:$0xf]
      %v213 = vld [vmem:[%s199 + $0x10] sm:$0xf]
      %v214 = vld [vmem:[%s199 + $0x18] sm:$0xf]
      %v215 = vld [vmem:[%s199 + $0x1c] sm:$0xf]
      %v216 = vld [vmem:[%s199 + $0x24] sm:$0xf]
      %v217 = vld [vmem:[%s199 + $0x28] sm:$0xf]
      %v218 = vld [vmem:[%s199 + $0x30] sm:$0xf]
      %v219 = vld [vmem:[%s199 + $0x34] sm:$0xf]
      %v220 = vld [vmem:[%s199 + $0x3c] sm:$0xf]
      %v221 = vld [vmem:[%s199 + $0x40] sm:$0xf]
      %v222 = vld [vmem:[%s199 + $0x48] sm:$0xf]
      %v223 = vld [vmem:[%s199 + $0x4c] sm:$0xf]
      %v224 = vld [vmem:[%s199 + $0x54] sm:$0xf]
      %v225 = vld [vmem:[%s199 + $0x58] sm:$0xf]
      %v226 = vld [vmem:[%s199 + $0x60] sm:$0xf]
      %v227 = vld [vmem:[%s199 + $0x64] sm:$0xf]
      %v228 = vld [vmem:[%s199 + $0x6c] sm:$0xf]
      %v229 = vld [vmem:[%s199 + $0x70] sm:$0xf]
      %v230 = vld [vmem:[%s199 + $0x78] sm:$0xf]
      %v231 = vld [vmem:[%s199 + $0x7c] sm:$0xf]
      %v232 = vld [vmem:[%s199 + $0x84] sm:$0xf]
      %v233 = vld [vmem:[%s199 + $0x88] sm:$0xf]
      %v234 = vld [vmem:[%s199 + $0x90] sm:$0xf]
      %v235 = vld [vmem:[%s199 + $0x94] sm:$0xf]
      %v236 = vld [vmem:[%s199 + $0x9c] sm:$0xf]
      %v237 = vld [vmem:[%s199 + $0xa0] sm:$0xf]
      %v238 = vld [vmem:[%s199 + $0xa8] sm:$0xf]
      %v239 = vld [vmem:[%s199 + $0xac] sm:$0xf]
      %v240 = vld [vmem:[%s199 + $0xb4] sm:$0xf]
      %v241 = vld [vmem:[%s199 + $0xb8] sm:$0xf]
      %v242 = vld [vmem:[%s1] sm:$0xf]
      %v243 = vld [vmem:[%s1 + $0x4] sm:$0xf]
      %v244 = vld [vmem:[%s1 + $0x8] sm:$0xf]
      %v245 = vld [vmem:[%s1 + $0xc] sm:$0xf]
      %v246 = vld [vmem:[%s1 + $0x10] sm:$0xf]
      %v247 = vld [vmem:[%s1 + $0x14] sm:$0xf]
      %v248 = vld [vmem:[%s1 + $0x18] sm:$0xf]
      %v249 = vld [vmem:[%s1 + $0x1c] sm:$0xf]
      %v250 = vld [vmem:[%s1 + $0x20] sm:$0xf]
      %v251 = vld [vmem:[%s1 + $0x24] sm:$0xf]
      %v252 = vld [vmem:[%s1 + $0x28] sm:$0xf]
      %v253 = vld [vmem:[%s1 + $0x2c] sm:$0xf]
      %v254 = vld [vmem:[%s1 + $0x30] sm:$0xf]
      %v255 = vld [vmem:[%s1 + $0x34] sm:$0xf]
      %v256 = vld [vmem:[%s1 + $0x38] sm:$0xf]
      %v257 = vld [vmem:[%s1 + $0x3c] sm:$0xf]
      %v258 = vld [vmem:[%s199 + $0x8] sm:$0x1]
      %v259 = vld [vmem:[%s199 + $0x14] sm:$0x1]
      %v260 = vld [vmem:[%s199 + $0x20] sm:$0x1]
      %v261 = vld [vmem:[%s199 + $0x2c] sm:$0x1]
      %v262 = vld [vmem:[%s199 + $0x38] sm:$0x1]
      %v263 = vld [vmem:[%s199 + $0x44] sm:$0x1]
      %v264 = vld [vmem:[%s199 + $0x50] sm:$0x1]
      %v265 = vld [vmem:[%s199 + $0x5c] sm:$0x1]
      %v266 = vld [vmem:[%s199 + $0x68] sm:$0x1]
      %v267 = vld [vmem:[%s199 + $0x74] sm:$0x1]
      %v268 = vld [vmem:[%s199 + $0x80] sm:$0x1]
      %v269 = vld [vmem:[%s199 + $0x8c] sm:$0x1]
      %v270 = vld [vmem:[%s199 + $0x98] sm:$0x1]
      %v271 = vld [vmem:[%s199 + $0xa4] sm:$0x1]
      %v272 = vld [vmem:[%s199 + $0xb0] sm:$0x1]
      %v273 = vld [vmem:[%s199 + $0xbc] sm:$0x1]
      %vm274 = vsmask.f32 3328
      %vm275 = vsmask.f32 7440
      %vm276 = vmor %vm274, %vm275
      %v278 = vshrl.u32 %v210, 16
      %v280 = vrot.slane %v278, 4
      %v281 = vshll.u32 %v210, 16
      %v283 = vrot.slane %v281, 5
      %v284 = vor.u32 %v280, %v283
      %v285 = vrot.slane %v284, 4
      %v287 = vshll.u32 %v211, 16
      %v289 = vrot.slane %v287, 5
      %v290 = vsel %vm276, %v285, %v289
      %v291 = vshrl.u32 %v211, 16
      %v293 = vrot.slane %v291, 4
      %v294 = vor.u32 %v293, %v289
      %v295 = vrot.slane %v294, 4
      %v297 = vshll.u32 %v258, 16
      %v299 = vrot.slane %v297, 5
      %v300 = vsel %vm276, %v295, %v299
      %v302 = vshrl.u32 %v212, 16
      %v304 = vrot.slane %v302, 4
      %v305 = vshll.u32 %v212, 16
      %v307 = vrot.slane %v305, 5
      %v308 = vor.u32 %v304, %v307
      %v309 = vrot.slane %v308, 4
      %v311 = vshll.u32 %v213, 16
      %v313 = vrot.slane %v311, 5
      %v314 = vsel %vm276, %v309, %v313
      %v315 = vshrl.u32 %v213, 16
      %v317 = vrot.slane %v315, 4
      %v318 = vor.u32 %v317, %v313
      %v319 = vrot.slane %v318, 4
      %v321 = vshll.u32 %v259, 16
      %v323 = vrot.slane %v321, 5
      %v324 = vsel %vm276, %v319, %v323
      %v326 = vshrl.u32 %v214, 16
      %v328 = vrot.slane %v326, 4
      %v329 = vshll.u32 %v214, 16
      %v331 = vrot.slane %v329, 5
      %v332 = vor.u32 %v328, %v331
      %v333 = vrot.slane %v332, 4
      %v335 = vshll.u32 %v215, 16
      %v337 = vrot.slane %v335, 5
      %v338 = vsel %vm276, %v333, %v337
      %v339 = vshrl.u32 %v215, 16
      %v341 = vrot.slane %v339, 4
      %v342 = vor.u32 %v341, %v337
      %v343 = vrot.slane %v342, 4
      %v345 = vshll.u32 %v260, 16
      %v347 = vrot.slane %v345, 5
      %v348 = vsel %vm276, %v343, %v347
      %v350 = vshrl.u32 %v216, 16
      %v352 = vrot.slane %v350, 4
      %v353 = vshll.u32 %v216, 16
      %v355 = vrot.slane %v353, 5
      %v356 = vor.u32 %v352, %v355
      %v357 = vrot.slane %v356, 4
      %v359 = vshll.u32 %v217, 16
      %v361 = vrot.slane %v359, 5
      %v362 = vsel %vm276, %v357, %v361
      %v363 = vshrl.u32 %v217, 16
      %v365 = vrot.slane %v363, 4
      %v366 = vor.u32 %v365, %v361
      %v367 = vrot.slane %v366, 4
      %v369 = vshll.u32 %v261, 16
      %v371 = vrot.slane %v369, 5
      %v372 = vsel %vm276, %v367, %v371
      %v374 = vshrl.u32 %v218, 16
      %v376 = vrot.slane %v374, 4
      %v377 = vshll.u32 %v218, 16
      %v379 = vrot.slane %v377, 5
      %v380 = vor.u32 %v376, %v379
      %v381 = vrot.slane %v380, 4
      %v383 = vshll.u32 %v219, 16
      %v385 = vrot.slane %v383, 5
      %v386 = vsel %vm276, %v381, %v385
      %v387 = vshrl.u32 %v219, 16
      %v389 = vrot.slane %v387, 4
      %v390 = vor.u32 %v389, %v385
      %v391 = vrot.slane %v390, 4
      %v393 = vshll.u32 %v262, 16
      %v395 = vrot.slane %v393, 5
      %v396 = vsel %vm276, %v391, %v395
      %v398 = vshrl.u32 %v220, 16
      %v400 = vrot.slane %v398, 4
      %v401 = vshll.u32 %v220, 16
      %v403 = vrot.slane %v401, 5
      %v404 = vor.u32 %v400, %v403
      %v405 = vrot.slane %v404, 4
      %v407 = vshll.u32 %v221, 16
      %v409 = vrot.slane %v407, 5
      %v410 = vsel %vm276, %v405, %v409
      %v411 = vshrl.u32 %v221, 16
      %v413 = vrot.slane %v411, 4
      %v414 = vor.u32 %v413, %v409
      %v415 = vrot.slane %v414, 4
      %v417 = vshll.u32 %v263, 16
      %v419 = vrot.slane %v417, 5
      %v420 = vsel %vm276, %v415, %v419
      %v422 = vshrl.u32 %v222, 16
      %v424 = vrot.slane %v422, 4
      %v425 = vshll.u32 %v222, 16
      %v427 = vrot.slane %v425, 5
      %v428 = vor.u32 %v424, %v427
      %v429 = vrot.slane %v428, 4
      %v431 = vshll.u32 %v223, 16
      %v433 = vrot.slane %v431, 5
      %v434 = vsel %vm276, %v429, %v433
      %v435 = vshrl.u32 %v223, 16
      %v437 = vrot.slane %v435, 4
      %v438 = vor.u32 %v437, %v433
      %v439 = vrot.slane %v438, 4
      %v441 = vshll.u32 %v264, 16
      %v443 = vrot.slane %v441, 5
      %v444 = vsel %vm276, %v439, %v443
      %v446 = vshrl.u32 %v224, 16
      %v448 = vrot.slane %v446, 4
      %v449 = vshll.u32 %v224, 16
      %v451 = vrot.slane %v449, 5
      %v452 = vor.u32 %v448, %v451
      %v453 = vrot.slane %v452, 4
      %v455 = vshll.u32 %v225, 16
      %v457 = vrot.slane %v455, 5
      %v458 = vsel %vm276, %v453, %v457
      %v459 = vshrl.u32 %v225, 16
      %v461 = vrot.slane %v459, 4
      %v462 = vor.u32 %v461, %v457
      %v463 = vrot.slane %v462, 4
      %v465 = vshll.u32 %v265, 16
      %v467 = vrot.slane %v465, 5
      %v468 = vsel %vm276, %v463, %v467
      %v470 = vshrl.u32 %v226, 16
      %v472 = vrot.slane %v470, 4
      %v473 = vshll.u32 %v226, 16
      %v475 = vrot.slane %v473, 5
      %v476 = vor.u32 %v472, %v475
      %v477 = vrot.slane %v476, 4
      %v479 = vshll.u32 %v227, 16
      %v481 = vrot.slane %v479, 5
      %v482 = vsel %vm276, %v477, %v481
      %v483 = vshrl.u32 %v227, 16
      %v485 = vrot.slane %v483, 4
      %v486 = vor.u32 %v485, %v481
      %v487 = vrot.slane %v486, 4
      %v489 = vshll.u32 %v266, 16
      %v491 = vrot.slane %v489, 5
      %v492 = vsel %vm276, %v487, %v491
      %v494 = vshrl.u32 %v228, 16
      %v496 = vrot.slane %v494, 4
      %v497 = vshll.u32 %v228, 16
      %v499 = vrot.slane %v497, 5
      %v500 = vor.u32 %v496, %v499
      %v501 = vrot.slane %v500, 4
      %v503 = vshll.u32 %v229, 16
      %v505 = vrot.slane %v503, 5
      %v506 = vsel %vm276, %v501, %v505
      %v507 = vshrl.u32 %v229, 16
      %v509 = vrot.slane %v507, 4
      %v510 = vor.u32 %v509, %v505
      %v511 = vrot.slane %v510, 4
      %v513 = vshll.u32 %v267, 16
      %v515 = vrot.slane %v513, 5
      %v516 = vsel %vm276, %v511, %v515
      %v518 = vshrl.u32 %v230, 16
      %v520 = vrot.slane %v518, 4
      %v521 = vshll.u32 %v230, 16
      %v523 = vrot.slane %v521, 5
      %v524 = vor.u32 %v520, %v523
      %v525 = vrot.slane %v524, 4
      %v527 = vshll.u32 %v231, 16
      %v529 = vrot.slane %v527, 5
      %v530 = vsel %vm276, %v525, %v529
      %v531 = vshrl.u32 %v231, 16
      %v533 = vrot.slane %v531, 4
      %v534 = vor.u32 %v533, %v529
      %v535 = vrot.slane %v534, 4
      %v537 = vshll.u32 %v268, 16
      %v539 = vrot.slane %v537, 5
      %v540 = vsel %vm276, %v535, %v539
      %v542 = vshrl.u32 %v232, 16
      %v544 = vrot.slane %v542, 4
      %v545 = vshll.u32 %v232, 16
      %v547 = vrot.slane %v545, 5
      %v548 = vor.u32 %v544, %v547
      %v549 = vrot.slane %v548, 4
      %v551 = vshll.u32 %v233, 16
      %v553 = vrot.slane %v551, 5
      %v554 = vsel %vm276, %v549, %v553
      %v555 = vshrl.u32 %v233, 16
      %v557 = vrot.slane %v555, 4
      %v558 = vor.u32 %v557, %v553
      %v559 = vrot.slane %v558, 4
      %v561 = vshll.u32 %v269, 16
      %v563 = vrot.slane %v561, 5
      %v564 = vsel %vm276, %v559, %v563
      %v566 = vshrl.u32 %v234, 16
      %v568 = vrot.slane %v566, 4
      %v569 = vshll.u32 %v234, 16
      %v571 = vrot.slane %v569, 5
      %v572 = vor.u32 %v568, %v571
      %v573 = vrot.slane %v572, 4
      %v575 = vshll.u32 %v235, 16
      %v577 = vrot.slane %v575, 5
      %v578 = vsel %vm276, %v573, %v577
      %v579 = vshrl.u32 %v235, 16
      %v581 = vrot.slane %v579, 4
      %v582 = vor.u32 %v581, %v577
      %v583 = vrot.slane %v582, 4
      %v585 = vshll.u32 %v270, 16
      %v587 = vrot.slane %v585, 5
      %v588 = vsel %vm276, %v583, %v587
      %v590 = vshrl.u32 %v236, 16
      %v592 = vrot.slane %v590, 4
      %v593 = vshll.u32 %v236, 16
      %v595 = vrot.slane %v593, 5
      %v596 = vor.u32 %v592, %v595
      %v597 = vrot.slane %v596, 4
      %v599 = vshll.u32 %v237, 16
      %v601 = vrot.slane %v599, 5
      %v602 = vsel %vm276, %v597, %v601
      %v603 = vshrl.u32 %v237, 16
      %v605 = vrot.slane %v603, 4
      %v606 = vor.u32 %v605, %v601
      %v607 = vrot.slane %v606, 4
      %v609 = vshll.u32 %v271, 16
      %v611 = vrot.slane %v609, 5
      %v612 = vsel %vm276, %v607, %v611
      %v614 = vshrl.u32 %v238, 16
      %v616 = vrot.slane %v614, 4
      %v617 = vshll.u32 %v238, 16
      %v619 = vrot.slane %v617, 5
      %v620 = vor.u32 %v616, %v619
      %v621 = vrot.slane %v620, 4
      %v623 = vshll.u32 %v239, 16
      %v625 = vrot.slane %v623, 5
      %v626 = vsel %vm276, %v621, %v625
      %v627 = vshrl.u32 %v239, 16
      %v629 = vrot.slane %v627, 4
      %v630 = vor.u32 %v629, %v625
      %v631 = vrot.slane %v630, 4
      %v633 = vshll.u32 %v272, 16
      %v635 = vrot.slane %v633, 5
      %v636 = vsel %vm276, %v631, %v635
      %v638 = vshrl.u32 %v240, 16
      %v640 = vrot.slane %v638, 4
      %v641 = vshll.u32 %v240, 16
      %v643 = vrot.slane %v641, 5
      %v644 = vor.u32 %v640, %v643
      %v645 = vrot.slane %v644, 4
      %v647 = vshll.u32 %v241, 16
      %v649 = vrot.slane %v647, 5
      %v650 = vsel %vm276, %v645, %v649
      %v651 = vshrl.u32 %v241, 16
      %v653 = vrot.slane %v651, 4
      %v654 = vor.u32 %v653, %v649
      %v655 = vrot.slane %v654, 4
      %v657 = vshll.u32 %v273, 16
      %v659 = vrot.slane %v657, 5
      %v660 = vsel %vm276, %v655, %v659
      %s661 = scalar_lea.vmem %s1, 64
      %v662 = vld [vmem:[%s661] sm:$0xf]
      %v663 = vld [vmem:[%s661 + $0x4] sm:$0xf]
      %v664 = vld [vmem:[%s661 + $0x8] sm:$0xf]
      %v665 = vld [vmem:[%s661 + $0xc] sm:$0xf]
      %v666 = vld [vmem:[%s661 + $0x10] sm:$0xf]
      %v667 = vld [vmem:[%s661 + $0x14] sm:$0xf]
      %v668 = vld [vmem:[%s661 + $0x18] sm:$0xf]
      %v669 = vld [vmem:[%s661 + $0x1c] sm:$0xf]
      %v670 = vld [vmem:[%s661 + $0x20] sm:$0xf]
      %v671 = vld [vmem:[%s661 + $0x24] sm:$0xf]
      %v672 = vld [vmem:[%s661 + $0x28] sm:$0xf]
      %v673 = vld [vmem:[%s661 + $0x2c] sm:$0xf]
      %v674 = vld [vmem:[%s661 + $0x30] sm:$0xf]
      %v675 = vld [vmem:[%s661 + $0x34] sm:$0xf]
      %v676 = vld [vmem:[%s661 + $0x38] sm:$0xf]
      %v677 = vld [vmem:[%s661 + $0x3c] sm:$0xf]
      %v678 = vunpack.c.l.b16 %v290
      %v679 = vunpack.c.l.b16 %v300
      %v680 = vunpack.c.l.b16 %v314
      %v681 = vunpack.c.l.b16 %v324
      %v682 = vunpack.c.l.b16 %v338
      %v683 = vunpack.c.l.b16 %v348
      %v684 = vunpack.c.l.b16 %v362
      %v685 = vunpack.c.l.b16 %v372
      %v686 = vunpack.c.l.b16 %v386
      %v687 = vunpack.c.l.b16 %v396
      %v688 = vunpack.c.l.b16 %v410
      %v689 = vunpack.c.l.b16 %v420
      %v690 = vunpack.c.l.b16 %v434
      %v691 = vunpack.c.l.b16 %v444
      %v692 = vunpack.c.l.b16 %v458
      %v693 = vunpack.c.l.b16 %v468
      %v694 = vunpack.c.l.b16 %v482
      %v695 = vunpack.c.l.b16 %v492
      %v696 = vunpack.c.l.b16 %v506
      %v697 = vunpack.c.l.b16 %v516
      %v698 = vunpack.c.l.b16 %v530
      %v699 = vunpack.c.l.b16 %v540
      %v700 = vunpack.c.l.b16 %v554
      %v701 = vunpack.c.l.b16 %v564
      %v702 = vunpack.c.l.b16 %v578
      %v703 = vunpack.c.l.b16 %v588
      %v704 = vunpack.c.l.b16 %v602
      %v705 = vunpack.c.l.b16 %v612
      %v706 = vunpack.c.l.b16 %v626
      %v707 = vunpack.c.l.b16 %v636
      %v708 = vunpack.c.l.b16 %v650
      %v709 = vunpack.c.l.b16 %v660
      %v710 = vpack.c.b16 %v679, %v678
      %v711 = vpack.c.b16 %v681, %v680
      %v712 = vpack.c.b16 %v683, %v682
      %v713 = vpack.c.b16 %v685, %v684
      %v714 = vpack.c.b16 %v687, %v686
      %v715 = vpack.c.b16 %v689, %v688
      %v716 = vpack.c.b16 %v691, %v690
      %v717 = vpack.c.b16 %v693, %v692
      %v718 = vpack.c.b16 %v695, %v694
      %v719 = vpack.c.b16 %v697, %v696
      %v720 = vpack.c.b16 %v699, %v698
      %v721 = vpack.c.b16 %v701, %v700
      %v722 = vpack.c.b16 %v703, %v702
      %v723 = vpack.c.b16 %v705, %v704
      %v724 = vpack.c.b16 %v707, %v706
      %v725 = vpack.c.b16 %v709, %v708
      %v758 = vunpack.c.l.b16 %v662
      %v759 = vunpack.c.l.b16 %v663
      %v760 = vunpack.c.l.b16 %v664
      %v761 = vunpack.c.l.b16 %v665
      %v762 = vunpack.c.l.b16 %v666
      %v763 = vunpack.c.l.b16 %v667
      %v764 = vunpack.c.l.b16 %v668
      %v765 = vunpack.c.l.b16 %v669
      %v766 = vunpack.c.l.b16 %v670
      %v767 = vunpack.c.l.b16 %v671
      %v768 = vunpack.c.l.b16 %v672
      %v769 = vunpack.c.l.b16 %v673
      %v770 = vunpack.c.l.b16 %v674
      %v771 = vunpack.c.l.b16 %v675
      %v772 = vunpack.c.l.b16 %v676
      %v773 = vunpack.c.l.b16 %v677
      %v774 = vpack.c.b16 %v759, %v758
      %v775 = vpack.c.b16 %v761, %v760
      %v776 = vpack.c.b16 %v763, %v762
      %v777 = vpack.c.b16 %v765, %v764
      %v778 = vpack.c.b16 %v767, %v766
      %v779 = vpack.c.b16 %v769, %v768
      %v780 = vpack.c.b16 %v771, %v770
      %v781 = vpack.c.b16 %v773, %v772
      %790 = vmatprep.subr.bf16.mxu0 0
      %791 = vmatpush1.bf16.msra.mxu0 %v774
      %792 = vmatprep.subr.bf16.mxu0 0
      %793 = vmatpush1.bf16.msra.mxu0 %v775
      %794 = vmatprep.subr.bf16.mxu0 0
      %795 = vmatpush1.bf16.msra.mxu0 %v776
      %796 = vmatprep.subr.bf16.mxu0 0
      %797 = vmatpush1.bf16.msra.mxu0 %v777
      %798 = vmatprep.subr.bf16.mxu0 0
      %799 = vmatpush1.bf16.msra.mxu0 %v778
      %800 = vmatprep.subr.bf16.mxu0 0
      %801 = vmatpush1.bf16.msra.mxu0 %v779
      %802 = vmatprep.subr.bf16.mxu0 0
      %803 = vmatpush1.bf16.msra.mxu0 %v780
      %804 = vmatprep.subr.bf16.mxu0 0
      %805 = vmatpush1.bf16.msra.mxu0 %v781
      %806 = vmatprep.subr.bf16.mxu0 0
      %807 = vmatpush1.bf16.msra.mxu0 0
      %808 = vmatprep.subr.bf16.mxu0 0
      %809 = vmatpush1.bf16.msra.mxu0 0
      %810 = vmatprep.subr.bf16.mxu0 0
      %811 = vmatpush1.bf16.msra.mxu0 0
      %812 = vmatprep.subr.bf16.mxu0 0
      %813 = vmatpush1.bf16.msra.mxu0 0
      %814 = vmatprep.subr.bf16.mxu0 0
      %815 = vmatpush1.bf16.msra.mxu0 0
      %816 = vmatprep.subr.bf16.mxu0 0
      %817 = vmatpush1.bf16.msra.mxu0 0
      %818 = vmatprep.subr.bf16.mxu0 0
      %819 = vmatpush1.bf16.msra.mxu0 0
      %820 = vmatprep.subr.bf16.mxu0 0
      %821 = vmatpush1.bf16.msra.mxu0 0
      %822 = vmatprep.mubr.bf16.mxu0 0
      %823 = vmatmul.mubr.bf16.gmra.mrb[0].mxu0 %v710
      %v824 = vpop.f32.mrb[0].mxu0
      %v825 = vadd.f32 0.0, %v824
      %v826 = vpop.f32.mrb[0].mxu0
      %v827 = vpop.f32.mrb[0].mxu0
      %v828 = vadd.f32 0.0, %v827
      %v829 = vpop.f32.mrb[0].mxu0
      %830 = vmatprep.mubr.bf16.mxu0 0
      %831 = vmatmul.mubr.bf16.gmra.mrb[0].mxu0 %v711
      %v832 = vpop.f32.mrb[0].mxu0
      %v833 = vadd.f32 0.0, %v832
      %v834 = vpop.f32.mrb[0].mxu0
      %v835 = vpop.f32.mrb[0].mxu0
      %v836 = vadd.f32 0.0, %v835
      %v837 = vpop.f32.mrb[0].mxu0
      %838 = vmatprep.mubr.bf16.mxu0 0
      %839 = vmatmul.mubr.bf16.gmra.mrb[0].mxu0 %v712
      %v840 = vpop.f32.mrb[0].mxu0
      %v841 = vadd.f32 0.0, %v840
      %v842 = vpop.f32.mrb[0].mxu0
      %v843 = vpop.f32.mrb[0].mxu0
      %v844 = vadd.f32 0.0, %v843
      %v845 = vpop.f32.mrb[0].mxu0
      %846 = vmatprep.mubr.bf16.mxu0 0
      %847 = vmatmul.mubr.bf16.gmra.mrb[0].mxu0 %v713
      %v848 = vpop.f32.mrb[0].mxu0
      %v849 = vadd.f32 0.0, %v848
      %v850 = vpop.f32.mrb[0].mxu0
      %v851 = vpop.f32.mrb[0].mxu0
      %v852 = vadd.f32 0.0, %v851
      %v853 = vpop.f32.mrb[0].mxu0
      %854 = vmatprep.mubr.bf16.mxu0 0
      %855 = vmatmul.mubr.bf16.gmra.mrb[0].mxu0 %v714
      %v856 = vpop.f32.mrb[0].mxu0
      %v857 = vadd.f32 0.0, %v856
      %v858 = vpop.f32.mrb[0].mxu0
      %v859 = vpop.f32.mrb[0].mxu0
      %v860 = vadd.f32 0.0, %v859
      %v861 = vpop.f32.mrb[0].mxu0
      %862 = vmatprep.mubr.bf16.mxu0 0
      %863 = vmatmul.mubr.bf16.gmra.mrb[0].mxu0 %v715
      %v864 = vpop.f32.mrb[0].mxu0
      %v865 = vadd.f32 0.0, %v864
      %v866 = vpop.f32.mrb[0].mxu0
      %v867 = vpop.f32.mrb[0].mxu0
      %v868 = vadd.f32 0.0, %v867
      %v869 = vpop.f32.mrb[0].mxu0
      %870 = vmatprep.mubr.bf16.mxu0 0
      %871 = vmatmul.mubr.bf16.gmra.mrb[0].mxu0 %v716
      %v872 = vpop.f32.mrb[0].mxu0
      %v873 = vadd.f32 0.0, %v872
      %v874 = vpop.f32.mrb[0].mxu0
      %v875 = vpop.f32.mrb[0].mxu0
      %v876 = vadd.f32 0.0, %v875
      %v877 = vpop.f32.mrb[0].mxu0
      %878 = vmatprep.mubr.bf16.mxu0 0
      %879 = vmatmul.mubr.bf16.gmra.mrb[0].mxu0 %v717
      %v880 = vpop.f32.mrb[0].mxu0
      %v881 = vadd.f32 0.0, %v880
      %v882 = vpop.f32.mrb[0].mxu0
      %v883 = vpop.f32.mrb[0].mxu0
      %v884 = vadd.f32 0.0, %v883
      %v885 = vpop.f32.mrb[0].mxu0
      %886 = vmatprep.mubr.bf16.mxu0 0
      %887 = vmatmul.mubr.bf16.gmra.mrb[0].mxu0 %v718
      %v888 = vpop.f32.mrb[0].mxu0
      %v889 = vadd.f32 0.0, %v888
      %v890 = vpop.f32.mrb[0].mxu0
      %v891 = vpop.f32.mrb[0].mxu0
      %v892 = vadd.f32 0.0, %v891
      %v893 = vpop.f32.mrb[0].mxu0
      %894 = vmatprep.mubr.bf16.mxu0 0
      %895 = vmatmul.mubr.bf16.gmra.mrb[0].mxu0 %v719
      %v896 = vpop.f32.mrb[0].mxu0
      %v897 = vadd.f32 0.0, %v896
      %v898 = vpop.f32.mrb[0].mxu0
      %v899 = vpop.f32.mrb[0].mxu0
      %v900 = vadd.f32 0.0, %v899
      %v901 = vpop.f32.mrb[0].mxu0
      %902 = vmatprep.mubr.bf16.mxu0 0
      %903 = vmatmul.mubr.bf16.gmra.mrb[0].mxu0 %v720
      %v904 = vpop.f32.mrb[0].mxu0
      %v905 = vadd.f32 0.0, %v904
      %v906 = vpop.f32.mrb[0].mxu0
      %v907 = vpop.f32.mrb[0].mxu0
      %v908 = vadd.f32 0.0, %v907
      %v909 = vpop.f32.mrb[0].mxu0
      %910 = vmatprep.mubr.bf16.mxu0 0
      %911 = vmatmul.mubr.bf16.gmra.mrb[0].mxu0 %v721
      %v912 = vpop.f32.mrb[0].mxu0
      %v913 = vadd.f32 0.0, %v912
      %v914 = vpop.f32.mrb[0].mxu0
      %v915 = vpop.f32.mrb[0].mxu0
      %v916 = vadd.f32 0.0, %v915
      %v917 = vpop.f32.mrb[0].mxu0
      %918 = vmatprep.mubr.bf16.mxu0 0
      %919 = vmatmul.mubr.bf16.gmra.mrb[0].mxu0 %v722
      %v920 = vpop.f32.mrb[0].mxu0
      %v921 = vadd.f32 0.0, %v920
      %v922 = vpop.f32.mrb[0].mxu0
      %v923 = vpop.f32.mrb[0].mxu0
      %v924 = vadd.f32 0.0, %v923
      %v925 = vpop.f32.mrb[0].mxu0
      %926 = vmatprep.mubr.bf16.mxu0 0
      %927 = vmatmul.mubr.bf16.gmra.mrb[0].mxu0 %v723
      %v928 = vpop.f32.mrb[0].mxu0
      %v929 = vadd.f32 0.0, %v928
      %v930 = vpop.f32.mrb[0].mxu0
      %v931 = vpop.f32.mrb[0].mxu0
      %v932 = vadd.f32 0.0, %v931
      %v933 = vpop.f32.mrb[0].mxu0
      %934 = vmatprep.mubr.bf16.mxu0 0
      %935 = vmatmul.mubr.bf16.gmra.mrb[0].mxu0 %v724
      %v936 = vpop.f32.mrb[0].mxu0
      %v937 = vadd.f32 0.0, %v936
      %v938 = vpop.f32.mrb[0].mxu0
      %v939 = vpop.f32.mrb[0].mxu0
      %v940 = vadd.f32 0.0, %v939
      %v941 = vpop.f32.mrb[0].mxu0
      %942 = vmatprep.mubr.bf16.mxu0 0
      %943 = vmatmul.mubr.bf16.gmra.mrb[0].mxu0 %v725
      %v944 = vpop.f32.mrb[0].mxu0
      %v945 = vadd.f32 0.0, %v944
      %v946 = vpop.f32.mrb[0].mxu0
      %v947 = vpop.f32.mrb[0].mxu0
      %v948 = vadd.f32 0.0, %v947
      %v949 = vpop.f32.mrb[0].mxu0
      %950 = vdwg.mxu0
      %v983 = vunpack.c.l.b16 %v210
      %v984 = vunpack.c.l.b16 %v211
      %v985 = vunpack.c.l.b16 %v212
      %v986 = vunpack.c.l.b16 %v213
      %v987 = vunpack.c.l.b16 %v214
      %v988 = vunpack.c.l.b16 %v215
      %v989 = vunpack.c.l.b16 %v216
      %v990 = vunpack.c.l.b16 %v217
      %v991 = vunpack.c.l.b16 %v218
      %v992 = vunpack.c.l.b16 %v219
      %v993 = vunpack.c.l.b16 %v220
      %v994 = vunpack.c.l.b16 %v221
      %v995 = vunpack.c.l.b16 %v222
      %v996 = vunpack.c.l.b16 %v223
      %v997 = vunpack.c.l.b16 %v224
      %v998 = vunpack.c.l.b16 %v225
      %v999 = vunpack.c.l.b16 %v226
      %v1000 = vunpack.c.l.b16 %v227
      %v1001 = vunpack.c.l.b16 %v228
      %v1002 = vunpack.c.l.b16 %v229
      %v1003 = vunpack.c.l.b16 %v230
      %v1004 = vunpack.c.l.b16 %v231
      %v1005 = vunpack.c.l.b16 %v232
      %v1006 = vunpack.c.l.b16 %v233
      %v1007 = vunpack.c.l.b16 %v234
      %v1008 = vunpack.c.l.b16 %v235
      %v1009 = vunpack.c.l.b16 %v236
      %v1010 = vunpack.c.l.b16 %v237
      %v1011 = vunpack.c.l.b16 %v238
      %v1012 = vunpack.c.l.b16 %v239
      %v1013 = vunpack.c.l.b16 %v240
      %v1014 = vunpack.c.l.b16 %v241
      %v1015 = vpack.c.b16 %v984, %v983
      %v1016 = vpack.c.b16 %v986, %v985
      %v1017 = vpack.c.b16 %v988, %v987
      %v1018 = vpack.c.b16 %v990, %v989
      %v1019 = vpack.c.b16 %v992, %v991
      %v1020 = vpack.c.b16 %v994, %v993
      %v1021 = vpack.c.b16 %v996, %v995
      %v1022 = vpack.c.b16 %v998, %v997
      %v1023 = vpack.c.b16 %v1000, %v999
      %v1024 = vpack.c.b16 %v1002, %v1001
      %v1025 = vpack.c.b16 %v1004, %v1003
      %v1026 = vpack.c.b16 %v1006, %v1005
      %v1027 = vpack.c.b16 %v1008, %v1007
      %v1028 = vpack.c.b16 %v1010, %v1009
      %v1029 = vpack.c.b16 %v1012, %v1011
      %v1030 = vpack.c.b16 %v1014, %v1013
      %v1063 = vunpack.c.l.b16 %v242
      %v1064 = vunpack.c.l.b16 %v243
      %v1065 = vunpack.c.l.b16 %v244
      %v1066 = vunpack.c.l.b16 %v245
      %v1067 = vunpack.c.l.b16 %v246
      %v1068 = vunpack.c.l.b16 %v247
      %v1069 = vunpack.c.l.b16 %v248
      %v1070 = vunpack.c.l.b16 %v249
      %v1071 = vunpack.c.l.b16 %v250
      %v1072 = vunpack.c.l.b16 %v251
      %v1073 = vunpack.c.l.b16 %v252
      %v1074 = vunpack.c.l.b16 %v253
      %v1075 = vunpack.c.l.b16 %v254
      %v1076 = vunpack.c.l.b16 %v255
      %v1077 = vunpack.c.l.b16 %v256
      %v1078 = vunpack.c.l.b16 %v257
      %v1079 = vpack.c.b16 %v1064, %v1063
      %v1080 = vpack.c.b16 %v1066, %v1065
      %v1081 = vpack.c.b16 %v1068, %v1067
      %v1082 = vpack.c.b16 %v1070, %v1069
      %v1083 = vpack.c.b16 %v1072, %v1071
      %v1084 = vpack.c.b16 %v1074, %v1073
      %v1085 = vpack.c.b16 %v1076, %v1075
      %v1086 = vpack.c.b16 %v1078, %v1077
      %1095 = vmatprep.subr.bf16.mxu0 0
      %1096 = vmatpush1.bf16.msra.mxu0 %v1079
      %1097 = vmatprep.subr.bf16.mxu0 0
      %1098 = vmatpush1.bf16.msra.mxu0 %v1080
      %1099 = vmatprep.subr.bf16.mxu0 0
      %1100 = vmatpush1.bf16.msra.mxu0 %v1081
      %1101 = vmatprep.subr.bf16.mxu0 0
      %1102 = vmatpush1.bf16.msra.mxu0 %v1082
      %1103 = vmatprep.subr.bf16.mxu0 0
      %1104 = vmatpush1.bf16.msra.mxu0 %v1083
      %1105 = vmatprep.subr.bf16.mxu0 0
      %1106 = vmatpush1.bf16.msra.mxu0 %v1084
      %1107 = vmatprep.subr.bf16.mxu0 0
      %1108 = vmatpush1.bf16.msra.mxu0 %v1085
      %1109 = vmatprep.subr.bf16.mxu0 0
      %1110 = vmatpush1.bf16.msra.mxu0 %v1086
      %1111 = vmatprep.subr.bf16.mxu0 0
      %1112 = vmatpush1.bf16.msra.mxu0 0
      %1113 = vmatprep.subr.bf16.mxu0 0
      %1114 = vmatpush1.bf16.msra.mxu0 0
      %1115 = vmatprep.subr.bf16.mxu0 0
      %1116 = vmatpush1.bf16.msra.mxu0 0
      %1117 = vmatprep.subr.bf16.mxu0 0
      %1118 = vmatpush1.bf16.msra.mxu0 0
      %1119 = vmatprep.subr.bf16.mxu0 0
      %1120 = vmatpush1.bf16.msra.mxu0 0
      %1121 = vmatprep.subr.bf16.mxu0 0
      %1122 = vmatpush1.bf16.msra.mxu0 0
      %1123 = vmatprep.subr.bf16.mxu0 0
      %1124 = vmatpush1.bf16.msra.mxu0 0
      %1125 = vmatprep.subr.bf16.mxu0 0
      %1126 = vmatpush1.bf16.msra.mxu0 0
      %1127 = vmatprep.mubr.bf16.mxu0 0
      %1128 = vmatmul.mubr.bf16.gmra.mrb[0].mxu0 %v1015
      %v1129 = vpop.f32.mrb[0].mxu0
      %v1130 = vadd.f32 %v825, %v1129
      %v1131 = vpop.f32.mrb[0].mxu0
      %v1132 = vpop.f32.mrb[0].mxu0
      %v1133 = vadd.f32 %v828, %v1132
      %v1134 = vpop.f32.mrb[0].mxu0
      %1135 = vmatprep.mubr.bf16.mxu0 0
      %1136 = vmatmul.mubr.bf16.gmra.mrb[0].mxu0 %v1016
      %v1137 = vpop.f32.mrb[0].mxu0
      %v1138 = vadd.f32 %v833, %v1137
      %v1139 = vpop.f32.mrb[0].mxu0
      %v1140 = vpop.f32.mrb[0].mxu0
      %v1141 = vadd.f32 %v836, %v1140
      %v1142 = vpop.f32.mrb[0].mxu0
      %1143 = vmatprep.mubr.bf16.mxu0 0
      %1144 = vmatmul.mubr.bf16.gmra.mrb[0].mxu0 %v1017
      %v1145 = vpop.f32.mrb[0].mxu0
      %v1146 = vadd.f32 %v841, %v1145
      %v1147 = vpop.f32.mrb[0].mxu0
      %v1148 = vpop.f32.mrb[0].mxu0
      %v1149 = vadd.f32 %v844, %v1148
      %v1150 = vpop.f32.mrb[0].mxu0
      %1151 = vmatprep.mubr.bf16.mxu0 0
      %1152 = vmatmul.mubr.bf16.gmra.mrb[0].mxu0 %v1018
      %v1153 = vpop.f32.mrb[0].mxu0
      %v1154 = vadd.f32 %v849, %v1153
      %v1155 = vpop.f32.mrb[0].mxu0
      %v1156 = vpop.f32.mrb[0].mxu0
      %v1157 = vadd.f32 %v852, %v1156
      %v1158 = vpop.f32.mrb[0].mxu0
      %1159 = vmatprep.mubr.bf16.mxu0 0
      %1160 = vmatmul.mubr.bf16.gmra.mrb[0].mxu0 %v1019
      %v1161 = vpop.f32.mrb[0].mxu0
      %v1162 = vadd.f32 %v857, %v1161
      %v1163 = vpop.f32.mrb[0].mxu0
      %v1164 = vpop.f32.mrb[0].mxu0
      %v1165 = vadd.f32 %v860, %v1164
      %v1166 = vpop.f32.mrb[0].mxu0
      %1167 = vmatprep.mubr.bf16.mxu0 0
      %1168 = vmatmul.mubr.bf16.gmra.mrb[0].mxu0 %v1020
      %v1169 = vpop.f32.mrb[0].mxu0
      %v1170 = vadd.f32 %v865, %v1169
      %v1171 = vpop.f32.mrb[0].mxu0
      %v1172 = vpop.f32.mrb[0].mxu0
      %v1173 = vadd.f32 %v868, %v1172
      %v1174 = vpop.f32.mrb[0].mxu0
      %1175 = vmatprep.mubr.bf16.mxu0 0
      %1176 = vmatmul.mubr.bf16.gmra.mrb[0].mxu0 %v1021
      %v1177 = vpop.f32.mrb[0].mxu0
      %v1178 = vadd.f32 %v873, %v1177
      %v1179 = vpop.f32.mrb[0].mxu0
      %v1180 = vpop.f32.mrb[0].mxu0
      %v1181 = vadd.f32 %v876, %v1180
      %v1182 = vpop.f32.mrb[0].mxu0
      %1183 = vmatprep.mubr.bf16.mxu0 0
      %1184 = vmatmul.mubr.bf16.gmra.mrb[0].mxu0 %v1022
      %v1185 = vpop.f32.mrb[0].mxu0
      %v1186 = vadd.f32 %v881, %v1185
      %v1187 = vpop.f32.mrb[0].mxu0
      %v1188 = vpop.f32.mrb[0].mxu0
      %v1189 = vadd.f32 %v884, %v1188
      %v1190 = vpop.f32.mrb[0].mxu0
      %1191 = vmatprep.mubr.bf16.mxu0 0
      %1192 = vmatmul.mubr.bf16.gmra.mrb[0].mxu0 %v1023
      %v1193 = vpop.f32.mrb[0].mxu0
      %v1194 = vadd.f32 %v889, %v1193
      %v1195 = vpop.f32.mrb[0].mxu0
      %v1196 = vpop.f32.mrb[0].mxu0
      %v1197 = vadd.f32 %v892, %v1196
      %v1198 = vpop.f32.mrb[0].mxu0
      %1199 = vmatprep.mubr.bf16.mxu0 0
      %1200 = vmatmul.mubr.bf16.gmra.mrb[0].mxu0 %v1024
      %v1201 = vpop.f32.mrb[0].mxu0
      %v1202 = vadd.f32 %v897, %v1201
      %v1203 = vpop.f32.mrb[0].mxu0
      %v1204 = vpop.f32.mrb[0].mxu0
      %v1205 = vadd.f32 %v900, %v1204
      %v1206 = vpop.f32.mrb[0].mxu0
      %1207 = vmatprep.mubr.bf16.mxu0 0
      %1208 = vmatmul.mubr.bf16.gmra.mrb[0].mxu0 %v1025
      %v1209 = vpop.f32.mrb[0].mxu0
      %v1210 = vadd.f32 %v905, %v1209
      %v1211 = vpop.f32.mrb[0].mxu0
      %v1212 = vpop.f32.mrb[0].mxu0
      %v1213 = vadd.f32 %v908, %v1212
      %v1214 = vpop.f32.mrb[0].mxu0
      %1215 = vmatprep.mubr.bf16.mxu0 0
      %1216 = vmatmul.mubr.bf16.gmra.mrb[0].mxu0 %v1026
      %v1217 = vpop.f32.mrb[0].mxu0
      %v1218 = vadd.f32 %v913, %v1217
      %v1219 = vpop.f32.mrb[0].mxu0
      %v1220 = vpop.f32.mrb[0].mxu0
      %v1221 = vadd.f32 %v916, %v1220
      %v1222 = vpop.f32.mrb[0].mxu0
      %1223 = vmatprep.mubr.bf16.mxu0 0
      %1224 = vmatmul.mubr.bf16.gmra.mrb[0].mxu0 %v1027
      %v1225 = vpop.f32.mrb[0].mxu0
      %v1226 = vadd.f32 %v921, %v1225
      %v1227 = vpop.f32.mrb[0].mxu0
      %v1228 = vpop.f32.mrb[0].mxu0
      %v1229 = vadd.f32 %v924, %v1228
      %v1230 = vpop.f32.mrb[0].mxu0
      %1231 = vmatprep.mubr.bf16.mxu0 0
      %1232 = vmatmul.mubr.bf16.gmra.mrb[0].mxu0 %v1028
      %v1233 = vpop.f32.mrb[0].mxu0
      %v1234 = vadd.f32 %v929, %v1233
      %v1235 = vpop.f32.mrb[0].mxu0
      %v1236 = vpop.f32.mrb[0].mxu0
      %v1237 = vadd.f32 %v932, %v1236
      %v1238 = vpop.f32.mrb[0].mxu0
      %1239 = vmatprep.mubr.bf16.mxu0 0
      %1240 = vmatmul.mubr.bf16.gmra.mrb[0].mxu0 %v1029
      %v1241 = vpop.f32.mrb[0].mxu0
      %v1242 = vadd.f32 %v937, %v1241
      %v1243 = vpop.f32.mrb[0].mxu0
      %v1244 = vpop.f32.mrb[0].mxu0
      %v1245 = vadd.f32 %v940, %v1244
      %v1246 = vpop.f32.mrb[0].mxu0
      %1247 = vmatprep.mubr.bf16.mxu0 0
      %1248 = vmatmul.mubr.bf16.gmra.mrb[0].mxu0 %v1030
      %v1249 = vpop.f32.mrb[0].mxu0
      %v1250 = vadd.f32 %v945, %v1249
      %v1251 = vpop.f32.mrb[0].mxu0
      %v1252 = vpop.f32.mrb[0].mxu0
      %v1253 = vadd.f32 %v948, %v1252
      %v1254 = vpop.f32.mrb[0].mxu0
      %1255 = vdwg.mxu0
      %v1256 = vld [vmem:[%s199] sm:$0xe]
      %v1257 = vld [vmem:[%s199 + $0xc] sm:$0xe]
      %v1258 = vld [vmem:[%s199 + $0x18] sm:$0xe]
      %v1259 = vld [vmem:[%s199 + $0x24] sm:$0xe]
      %v1260 = vld [vmem:[%s199 + $0x30] sm:$0xe]
      %v1261 = vld [vmem:[%s199 + $0x3c] sm:$0xe]
      %v1262 = vld [vmem:[%s199 + $0x48] sm:$0xe]
      %v1263 = vld [vmem:[%s199 + $0x54] sm:$0xe]
      %v1264 = vld [vmem:[%s199 + $0x60] sm:$0xe]
      %v1265 = vld [vmem:[%s199 + $0x6c] sm:$0xe]
      %v1266 = vld [vmem:[%s199 + $0x78] sm:$0xe]
      %v1267 = vld [vmem:[%s199 + $0x84] sm:$0xe]
      %v1268 = vld [vmem:[%s199 + $0x90] sm:$0xe]
      %v1269 = vld [vmem:[%s199 + $0x9c] sm:$0xe]
      %v1270 = vld [vmem:[%s199 + $0xa8] sm:$0xe]
      %v1271 = vld [vmem:[%s199 + $0xb4] sm:$0xe]
      %vm1304 = vcmask 1042432
      %vm1305 = vcmask 1046532
      %vm1306 = vmor %vm1304, %vm1305
      %v1307 = vrot.slane %v1256, 5
      %v1308 = vrot.slane %v1307, 4
      %v1309 = vrot.slane %v211, 5
      %v1310 = vsel %vm1306, %v1308, %v1309
      %v1311 = vrot.slane %v1309, 4
      %v1312 = vrot.slane %v258, 5
      %v1313 = vsel %vm1306, %v1311, %v1312
      %v1314 = vrot.slane %v1257, 5
      %v1315 = vrot.slane %v1314, 4
      %v1316 = vrot.slane %v213, 5
      %v1317 = vsel %vm1306, %v1315, %v1316
      %v1318 = vrot.slane %v1316, 4
      %v1319 = vrot.slane %v259, 5
      %v1320 = vsel %vm1306, %v1318, %v1319
      %v1321 = vrot.slane %v1258, 5
      %v1322 = vrot.slane %v1321, 4
      %v1323 = vrot.slane %v215, 5
      %v1324 = vsel %vm1306, %v1322, %v1323
      %v1325 = vrot.slane %v1323, 4
      %v1326 = vrot.slane %v260, 5
      %v1327 = vsel %vm1306, %v1325, %v1326
      %v1328 = vrot.slane %v1259, 5
      %v1329 = vrot.slane %v1328, 4
      %v1330 = vrot.slane %v217, 5
      %v1331 = vsel %vm1306, %v1329, %v1330
      %v1332 = vrot.slane %v1330, 4
      %v1333 = vrot.slane %v261, 5
      %v1334 = vsel %vm1306, %v1332, %v1333
      %v1335 = vrot.slane %v1260, 5
      %v1336 = vrot.slane %v1335, 4
      %v1337 = vrot.slane %v219, 5
      %v1338 = vsel %vm1306, %v1336, %v1337
      %v1339 = vrot.slane %v1337, 4
      %v1340 = vrot.slane %v262, 5
      %v1341 = vsel %vm1306, %v1339, %v1340
      %v1342 = vrot.slane %v1261, 5
      %v1343 = vrot.slane %v1342, 4
      %v1344 = vrot.slane %v221, 5
      %v1345 = vsel %vm1306, %v1343, %v1344
      %v1346 = vrot.slane %v1344, 4
      %v1347 = vrot.slane %v263, 5
      %v1348 = vsel %vm1306, %v1346, %v1347
      %v1349 = vrot.slane %v1262, 5
      %v1350 = vrot.slane %v1349, 4
      %v1351 = vrot.slane %v223, 5
      %v1352 = vsel %vm1306, %v1350, %v1351
      %v1353 = vrot.slane %v1351, 4
      %v1354 = vrot.slane %v264, 5
      %v1355 = vsel %vm1306, %v1353, %v1354
      %v1356 = vrot.slane %v1263, 5
      %v1357 = vrot.slane %v1356, 4
      %v1358 = vrot.slane %v225, 5
      %v1359 = vsel %vm1306, %v1357, %v1358
      %v1360 = vrot.slane %v1358, 4
      %v1361 = vrot.slane %v265, 5
      %v1362 = vsel %vm1306, %v1360, %v1361
      %v1363 = vrot.slane %v1264, 5
      %v1364 = vrot.slane %v1363, 4
      %v1365 = vrot.slane %v227, 5
      %v1366 = vsel %vm1306, %v1364, %v1365
      %v1367 = vrot.slane %v1365, 4
      %v1368 = vrot.slane %v266, 5
      %v1369 = vsel %vm1306, %v1367, %v1368
      %v1370 = vrot.slane %v1265, 5
      %v1371 = vrot.slane %v1370, 4
      %v1372 = vrot.slane %v229, 5
      %v1373 = vsel %vm1306, %v1371, %v1372
      %v1374 = vrot.slane %v1372, 4
      %v1375 = vrot.slane %v267, 5
      %v1376 = vsel %vm1306, %v1374, %v1375
      %v1377 = vrot.slane %v1266, 5
      %v1378 = vrot.slane %v1377, 4
      %v1379 = vrot.slane %v231, 5
      %v1380 = vsel %vm1306, %v1378, %v1379
      %v1381 = vrot.slane %v1379, 4
      %v1382 = vrot.slane %v268, 5
      %v1383 = vsel %vm1306, %v1381, %v1382
      %v1384 = vrot.slane %v1267, 5
      %v1385 = vrot.slane %v1384, 4
      %v1386 = vrot.slane %v233, 5
      %v1387 = vsel %vm1306, %v1385, %v1386
      %v1388 = vrot.slane %v1386, 4
      %v1389 = vrot.slane %v269, 5
      %v1390 = vsel %vm1306, %v1388, %v1389
      %v1391 = vrot.slane %v1268, 5
      %v1392 = vrot.slane %v1391, 4
      %v1393 = vrot.slane %v235, 5
      %v1394 = vsel %vm1306, %v1392, %v1393
      %v1395 = vrot.slane %v1393, 4
      %v1396 = vrot.slane %v270, 5
      %v1397 = vsel %vm1306, %v1395, %v1396
      %v1398 = vrot.slane %v1269, 5
      %v1399 = vrot.slane %v1398, 4
      %v1400 = vrot.slane %v237, 5
      %v1401 = vsel %vm1306, %v1399, %v1400
      %v1402 = vrot.slane %v1400, 4
      %v1403 = vrot.slane %v271, 5
      %v1404 = vsel %vm1306, %v1402, %v1403
      %v1405 = vrot.slane %v1270, 5
      %v1406 = vrot.slane %v1405, 4
      %v1407 = vrot.slane %v239, 5
      %v1408 = vsel %vm1306, %v1406, %v1407
      %v1409 = vrot.slane %v1407, 4
      %v1410 = vrot.slane %v272, 5
      %v1411 = vsel %vm1306, %v1409, %v1410
      %v1412 = vrot.slane %v1271, 5
      %v1413 = vrot.slane %v1412, 4
      %v1414 = vrot.slane %v241, 5
      %v1415 = vsel %vm1306, %v1413, %v1414
      %v1416 = vrot.slane %v1414, 4
      %v1417 = vrot.slane %v273, 5
      %v1418 = vsel %vm1306, %v1416, %v1417
      %s1419 = scalar_lea.vmem %s1, 128
      %v1420 = vld [vmem:[%s1419] sm:$0xf]
      %v1421 = vld [vmem:[%s1419 + $0x4] sm:$0xf]
      %v1422 = vld [vmem:[%s1419 + $0x8] sm:$0xf]
      %v1423 = vld [vmem:[%s1419 + $0xc] sm:$0xf]
      %v1424 = vld [vmem:[%s1419 + $0x10] sm:$0xf]
      %v1425 = vld [vmem:[%s1419 + $0x14] sm:$0xf]
      %v1426 = vld [vmem:[%s1419 + $0x18] sm:$0xf]
      %v1427 = vld [vmem:[%s1419 + $0x1c] sm:$0xf]
      %v1428 = vld [vmem:[%s1419 + $0x20] sm:$0xf]
      %v1429 = vld [vmem:[%s1419 + $0x24] sm:$0xf]
      %v1430 = vld [vmem:[%s1419 + $0x28] sm:$0xf]
      %v1431 = vld [vmem:[%s1419 + $0x2c] sm:$0xf]
      %v1432 = vld [vmem:[%s1419 + $0x30] sm:$0xf]
      %v1433 = vld [vmem:[%s1419 + $0x34] sm:$0xf]
      %v1434 = vld [vmem:[%s1419 + $0x38] sm:$0xf]
      %v1435 = vld [vmem:[%s1419 + $0x3c] sm:$0xf]
      %v1436 = vunpack.c.l.b16 %v1310
      %v1437 = vunpack.c.l.b16 %v1313
      %v1438 = vunpack.c.l.b16 %v1317
      %v1439 = vunpack.c.l.b16 %v1320
      %v1440 = vunpack.c.l.b16 %v1324
      %v1441 = vunpack.c.l.b16 %v1327
      %v1442 = vunpack.c.l.b16 %v1331
      %v1443 = vunpack.c.l.b16 %v1334
      %v1444 = vunpack.c.l.b16 %v1338
      %v1445 = vunpack.c.l.b16 %v1341
      %v1446 = vunpack.c.l.b16 %v1345
      %v1447 = vunpack.c.l.b16 %v1348
      %v1448 = vunpack.c.l.b16 %v1352
      %v1449 = vunpack.c.l.b16 %v1355
      %v1450 = vunpack.c.l.b16 %v1359
      %v1451 = vunpack.c.l.b16 %v1362
      %v1452 = vunpack.c.l.b16 %v1366
      %v1453 = vunpack.c.l.b16 %v1369
      %v1454 = vunpack.c.l.b16 %v1373
      %v1455 = vunpack.c.l.b16 %v1376
      %v1456 = vunpack.c.l.b16 %v1380
      %v1457 = vunpack.c.l.b16 %v1383
      %v1458 = vunpack.c.l.b16 %v1387
      %v1459 = vunpack.c.l.b16 %v1390
      %v1460 = vunpack.c.l.b16 %v1394
      %v1461 = vunpack.c.l.b16 %v1397
      %v1462 = vunpack.c.l.b16 %v1401
      %v1463 = vunpack.c.l.b16 %v1404
      %v1464 = vunpack.c.l.b16 %v1408
      %v1465 = vunpack.c.l.b16 %v1411
      %v1466 = vunpack.c.l.b16 %v1415
      %v1467 = vunpack.c.l.b16 %v1418
      %v1468 = vpack.c.b16 %v1437, %v1436
      %v1469 = vpack.c.b16 %v1439, %v1438
      %v1470 = vpack.c.b16 %v1441, %v1440
      %v1471 = vpack.c.b16 %v1443, %v1442
      %v1472 = vpack.c.b16 %v1445, %v1444
      %v1473 = vpack.c.b16 %v1447, %v1446
      %v1474 = vpack.c.b16 %v1449, %v1448
      %v1475 = vpack.c.b16 %v1451, %v1450
      %v1476 = vpack.c.b16 %v1453, %v1452
      %v1477 = vpack.c.b16 %v1455, %v1454
      %v1478 = vpack.c.b16 %v1457, %v1456
      %v1479 = vpack.c.b16 %v1459, %v1458
      %v1480 = vpack.c.b16 %v1461, %v1460
      %v1481 = vpack.c.b16 %v1463, %v1462
      %v1482 = vpack.c.b16 %v1465, %v1464
      %v1483 = vpack.c.b16 %v1467, %v1466
      %v1516 = vunpack.c.l.b16 %v1420
      %v1517 = vunpack.c.l.b16 %v1421
      %v1518 = vunpack.c.l.b16 %v1422
      %v1519 = vunpack.c.l.b16 %v1423
      %v1520 = vunpack.c.l.b16 %v1424
      %v1521 = vunpack.c.l.b16 %v1425
      %v1522 = vunpack.c.l.b16 %v1426
      %v1523 = vunpack.c.l.b16 %v1427
      %v1524 = vunpack.c.l.b16 %v1428
      %v1525 = vunpack.c.l.b16 %v1429
      %v1526 = vunpack.c.l.b16 %v1430
      %v1527 = vunpack.c.l.b16 %v1431
      %v1528 = vunpack.c.l.b16 %v1432
      %v1529 = vunpack.c.l.b16 %v1433
      %v1530 = vunpack.c.l.b16 %v1434
      %v1531 = vunpack.c.l.b16 %v1435
      %v1532 = vpack.c.b16 %v1517, %v1516
      %v1533 = vpack.c.b16 %v1519, %v1518
      %v1534 = vpack.c.b16 %v1521, %v1520
      %v1535 = vpack.c.b16 %v1523, %v1522
      %v1536 = vpack.c.b16 %v1525, %v1524
      %v1537 = vpack.c.b16 %v1527, %v1526
      %v1538 = vpack.c.b16 %v1529, %v1528
      %v1539 = vpack.c.b16 %v1531, %v1530
      %1548 = vmatprep.subr.bf16.mxu0 0
      %1549 = vmatpush1.bf16.msra.mxu0 %v1532
      %1550 = vmatprep.subr.bf16.mxu0 0
      %1551 = vmatpush1.bf16.msra.mxu0 %v1533
      %1552 = vmatprep.subr.bf16.mxu0 0
      %1553 = vmatpush1.bf16.msra.mxu0 %v1534
      %1554 = vmatprep.subr.bf16.mxu0 0
      %1555 = vmatpush1.bf16.msra.mxu0 %v1535
      %1556 = vmatprep.subr.bf16.mxu0 0
      %1557 = vmatpush1.bf16.msra.mxu0 %v1536
      %1558 = vmatprep.subr.bf16.mxu0 0
      %1559 = vmatpush1.bf16.msra.mxu0 %v1537
      %1560 = vmatprep.subr.bf16.mxu0 0
      %1561 = vmatpush1.bf16.msra.mxu0 %v1538
      %1562 = vmatprep.subr.bf16.mxu0 0
      %1563 = vmatpush1.bf16.msra.mxu0 %v1539
      %1564 = vmatprep.subr.bf16.mxu0 0
      %1565 = vmatpush1.bf16.msra.mxu0 0
      %1566 = vmatprep.subr.bf16.mxu0 0
      %1567 = vmatpush1.bf16.msra.mxu0 0
      %1568 = vmatprep.subr.bf16.mxu0 0
      %1569 = vmatpush1.bf16.msra.mxu0 0
      %1570 = vmatprep.subr.bf16.mxu0 0
      %1571 = vmatpush1.bf16.msra.mxu0 0
      %1572 = vmatprep.subr.bf16.mxu0 0
      %1573 = vmatpush1.bf16.msra.mxu0 0
      %1574 = vmatprep.subr.bf16.mxu0 0
      %1575 = vmatpush1.bf16.msra.mxu0 0
      %1576 = vmatprep.subr.bf16.mxu0 0
      %1577 = vmatpush1.bf16.msra.mxu0 0
      %1578 = vmatprep.subr.bf16.mxu0 0
      %1579 = vmatpush1.bf16.msra.mxu0 0
      %1580 = vmatprep.mubr.bf16.mxu0 0
      %1581 = vmatmul.mubr.bf16.gmra.mrb[0].mxu0 %v1468
      %v1582 = vpop.f32.mrb[0].mxu0
      %v1583 = vadd.f32 0.0, %v1582
      %v1584 = vpop.f32.mrb[0].mxu0
      %v1585 = vpop.f32.mrb[0].mxu0
      %v1586 = vadd.f32 0.0, %v1585
      %v1587 = vpop.f32.mrb[0].mxu0
      %1588 = vmatprep.mubr.bf16.mxu0 0
      %1589 = vmatmul.mubr.bf16.gmra.mrb[0].mxu0 %v1469
      %v1590 = vpop.f32.mrb[0].mxu0
      %v1591 = vadd.f32 0.0, %v1590
      %v1592 = vpop.f32.mrb[0].mxu0
      %v1593 = vpop.f32.mrb[0].mxu0
      %v1594 = vadd.f32 0.0, %v1593
      %v1595 = vpop.f32.mrb[0].mxu0
      %1596 = vmatprep.mubr.bf16.mxu0 0
      %1597 = vmatmul.mubr.bf16.gmra.mrb[0].mxu0 %v1470
      %v1598 = vpop.f32.mrb[0].mxu0
      %v1599 = vadd.f32 0.0, %v1598
      %v1600 = vpop.f32.mrb[0].mxu0
      %v1601 = vpop.f32.mrb[0].mxu0
      %v1602 = vadd.f32 0.0, %v1601
      %v1603 = vpop.f32.mrb[0].mxu0
      %1604 = vmatprep.mubr.bf16.mxu0 0
      %1605 = vmatmul.mubr.bf16.gmra.mrb[0].mxu0 %v1471
      %v1606 = vpop.f32.mrb[0].mxu0
      %v1607 = vadd.f32 0.0, %v1606
      %v1608 = vpop.f32.mrb[0].mxu0
      %v1609 = vpop.f32.mrb[0].mxu0
      %v1610 = vadd.f32 0.0, %v1609
      %v1611 = vpop.f32.mrb[0].mxu0
      %1612 = vmatprep.mubr.bf16.mxu0 0
      %1613 = vmatmul.mubr.bf16.gmra.mrb[0].mxu0 %v1472
      %v1614 = vpop.f32.mrb[0].mxu0
      %v1615 = vadd.f32 0.0, %v1614
      %v1616 = vpop.f32.mrb[0].mxu0
      %v1617 = vpop.f32.mrb[0].mxu0
      %v1618 = vadd.f32 0.0, %v1617
      %v1619 = vpop.f32.mrb[0].mxu0
      %1620 = vmatprep.mubr.bf16.mxu0 0
      %1621 = vmatmul.mubr.bf16.gmra.mrb[0].mxu0 %v1473
      %v1622 = vpop.f32.mrb[0].mxu0
      %v1623 = vadd.f32 0.0, %v1622
      %v1624 = vpop.f32.mrb[0].mxu0
      %v1625 = vpop.f32.mrb[0].mxu0
      %v1626 = vadd.f32 0.0, %v1625
      %v1627 = vpop.f32.mrb[0].mxu0
      %1628 = vmatprep.mubr.bf16.mxu0 0
      %1629 = vmatmul.mubr.bf16.gmra.mrb[0].mxu0 %v1474
      %v1630 = vpop.f32.mrb[0].mxu0
      %v1631 = vadd.f32 0.0, %v1630
      %v1632 = vpop.f32.mrb[0].mxu0
      %v1633 = vpop.f32.mrb[0].mxu0
      %v1634 = vadd.f32 0.0, %v1633
      %v1635 = vpop.f32.mrb[0].mxu0
      %1636 = vmatprep.mubr.bf16.mxu0 0
      %1637 = vmatmul.mubr.bf16.gmra.mrb[0].mxu0 %v1475
      %v1638 = vpop.f32.mrb[0].mxu0
      %v1639 = vadd.f32 0.0, %v1638
      %v1640 = vpop.f32.mrb[0].mxu0
      %v1641 = vpop.f32.mrb[0].mxu0
      %v1642 = vadd.f32 0.0, %v1641
      %v1643 = vpop.f32.mrb[0].mxu0
      %1644 = vmatprep.mubr.bf16.mxu0 0
      %1645 = vmatmul.mubr.bf16.gmra.mrb[0].mxu0 %v1476
      %v1646 = vpop.f32.mrb[0].mxu0
      %v1647 = vadd.f32 0.0, %v1646
      %v1648 = vpop.f32.mrb[0].mxu0
      %v1649 = vpop.f32.mrb[0].mxu0
      %v1650 = vadd.f32 0.0, %v1649
      %v1651 = vpop.f32.mrb[0].mxu0
      %1652 = vmatprep.mubr.bf16.mxu0 0
      %1653 = vmatmul.mubr.bf16.gmra.mrb[0].mxu0 %v1477
      %v1654 = vpop.f32.mrb[0].mxu0
      %v1655 = vadd.f32 0.0, %v1654
      %v1656 = vpop.f32.mrb[0].mxu0
      %v1657 = vpop.f32.mrb[0].mxu0
      %v1658 = vadd.f32 0.0, %v1657
      %v1659 = vpop.f32.mrb[0].mxu0
      %1660 = vmatprep.mubr.bf16.mxu0 0
      %1661 = vmatmul.mubr.bf16.gmra.mrb[0].mxu0 %v1478
      %v1662 = vpop.f32.mrb[0].mxu0
      %v1663 = vadd.f32 0.0, %v1662
      %v1664 = vpop.f32.mrb[0].mxu0
      %v1665 = vpop.f32.mrb[0].mxu0
      %v1666 = vadd.f32 0.0, %v1665
      %v1667 = vpop.f32.mrb[0].mxu0
      %1668 = vmatprep.mubr.bf16.mxu0 0
      %1669 = vmatmul.mubr.bf16.gmra.mrb[0].mxu0 %v1479
      %v1670 = vpop.f32.mrb[0].mxu0
      %v1671 = vadd.f32 0.0, %v1670
      %v1672 = vpop.f32.mrb[0].mxu0
      %v1673 = vpop.f32.mrb[0].mxu0
      %v1674 = vadd.f32 0.0, %v1673
      %v1675 = vpop.f32.mrb[0].mxu0
      %1676 = vmatprep.mubr.bf16.mxu0 0
      %1677 = vmatmul.mubr.bf16.gmra.mrb[0].mxu0 %v1480
      %v1678 = vpop.f32.mrb[0].mxu0
      %v1679 = vadd.f32 0.0, %v1678
      %v1680 = vpop.f32.mrb[0].mxu0
      %v1681 = vpop.f32.mrb[0].mxu0
      %v1682 = vadd.f32 0.0, %v1681
      %v1683 = vpop.f32.mrb[0].mxu0
      %1684 = vmatprep.mubr.bf16.mxu0 0
      %1685 = vmatmul.mubr.bf16.gmra.mrb[0].mxu0 %v1481
      %v1686 = vpop.f32.mrb[0].mxu0
      %v1687 = vadd.f32 0.0, %v1686
      %v1688 = vpop.f32.mrb[0].mxu0
      %v1689 = vpop.f32.mrb[0].mxu0
      %v1690 = vadd.f32 0.0, %v1689
      %v1691 = vpop.f32.mrb[0].mxu0
      %1692 = vmatprep.mubr.bf16.mxu0 0
      %1693 = vmatmul.mubr.bf16.gmra.mrb[0].mxu0 %v1482
      %v1694 = vpop.f32.mrb[0].mxu0
      %v1695 = vadd.f32 0.0, %v1694
      %v1696 = vpop.f32.mrb[0].mxu0
      %v1697 = vpop.f32.mrb[0].mxu0
      %v1698 = vadd.f32 0.0, %v1697
      %v1699 = vpop.f32.mrb[0].mxu0
      %1700 = vmatprep.mubr.bf16.mxu0 0
      %1701 = vmatmul.mubr.bf16.gmra.mrb[0].mxu0 %v1483
      %v1702 = vpop.f32.mrb[0].mxu0
      %v1703 = vadd.f32 0.0, %v1702
      %v1704 = vpop.f32.mrb[0].mxu0
      %v1705 = vpop.f32.mrb[0].mxu0
      %v1706 = vadd.f32 0.0, %v1705
      %v1707 = vpop.f32.mrb[0].mxu0
      %1708 = vdwg.mxu0
      %v1709 = vadd.f32 %v1130, %v1583
      %v1710 = vadd.f32 %v1133, %v1586
      %v1711 = vadd.f32 %v1138, %v1591
      %v1712 = vadd.f32 %v1141, %v1594
      %v1713 = vadd.f32 %v1146, %v1599
      %v1714 = vadd.f32 %v1149, %v1602
      %v1715 = vadd.f32 %v1154, %v1607
      %v1716 = vadd.f32 %v1157, %v1610
      %v1717 = vadd.f32 %v1162, %v1615
      %v1718 = vadd.f32 %v1165, %v1618
      %v1719 = vadd.f32 %v1170, %v1623
      %v1720 = vadd.f32 %v1173, %v1626
      %v1721 = vadd.f32 %v1178, %v1631
      %v1722 = vadd.f32 %v1181, %v1634
      %v1723 = vadd.f32 %v1186, %v1639
      %v1724 = vadd.f32 %v1189, %v1642
      %v1725 = vadd.f32 %v1194, %v1647
      %v1726 = vadd.f32 %v1197, %v1650
      %v1727 = vadd.f32 %v1202, %v1655
      %v1728 = vadd.f32 %v1205, %v1658
      %v1729 = vadd.f32 %v1210, %v1663
      %v1730 = vadd.f32 %v1213, %v1666
      %v1731 = vadd.f32 %v1218, %v1671
      %v1732 = vadd.f32 %v1221, %v1674
      %v1733 = vadd.f32 %v1226, %v1679
      %v1734 = vadd.f32 %v1229, %v1682
      %v1735 = vadd.f32 %v1234, %v1687
      %v1736 = vadd.f32 %v1237, %v1690
      %v1737 = vadd.f32 %v1242, %v1695
      %v1738 = vadd.f32 %v1245, %v1698
      %v1739 = vadd.f32 %v1250, %v1703
      %v1740 = vadd.f32 %v1253, %v1706
      %s1741 = scalar_lea.vmem %s199, 12
      %v1742 = vld [vmem:[%s1741] sm:$0xf]
      %v1743 = vld [vmem:[%s1741 + $0x4] sm:$0xf]
      %v1744 = vld [vmem:[%s1741 + $0xc] sm:$0xf]
      %v1745 = vld [vmem:[%s1741 + $0x10] sm:$0xf]
      %v1746 = vld [vmem:[%s1741 + $0x18] sm:$0xf]
      %v1747 = vld [vmem:[%s1741 + $0x1c] sm:$0xf]
      %v1748 = vld [vmem:[%s1741 + $0x24] sm:$0xf]
      %v1749 = vld [vmem:[%s1741 + $0x28] sm:$0xf]
      %v1750 = vld [vmem:[%s1741 + $0x30] sm:$0xf]
      %v1751 = vld [vmem:[%s1741 + $0x34] sm:$0xf]
      %v1752 = vld [vmem:[%s1741 + $0x3c] sm:$0xf]
      %v1753 = vld [vmem:[%s1741 + $0x40] sm:$0xf]
      %v1754 = vld [vmem:[%s1741 + $0x48] sm:$0xf]
      %v1755 = vld [vmem:[%s1741 + $0x4c] sm:$0xf]
      %v1756 = vld [vmem:[%s1741 + $0x54] sm:$0xf]
      %v1757 = vld [vmem:[%s1741 + $0x58] sm:$0xf]
      %v1758 = vld [vmem:[%s1741 + $0x60] sm:$0xf]
      %v1759 = vld [vmem:[%s1741 + $0x64] sm:$0xf]
      %v1760 = vld [vmem:[%s1741 + $0x6c] sm:$0xf]
      %v1761 = vld [vmem:[%s1741 + $0x70] sm:$0xf]
      %v1762 = vld [vmem:[%s1741 + $0x78] sm:$0xf]
      %v1763 = vld [vmem:[%s1741 + $0x7c] sm:$0xf]
      %v1764 = vld [vmem:[%s1741 + $0x84] sm:$0xf]
      %v1765 = vld [vmem:[%s1741 + $0x88] sm:$0xf]
      %v1766 = vld [vmem:[%s1741 + $0x90] sm:$0xf]
      %v1767 = vld [vmem:[%s1741 + $0x94] sm:$0xf]
      %v1768 = vld [vmem:[%s1741 + $0x9c] sm:$0xf]
      %v1769 = vld [vmem:[%s1741 + $0xa0] sm:$0xf]
      %v1770 = vld [vmem:[%s1741 + $0xa8] sm:$0xf]
      %v1771 = vld [vmem:[%s1741 + $0xac] sm:$0xf]
      %v1772 = vld [vmem:[%s1741 + $0xb4] sm:$0xf]
      %v1773 = vld [vmem:[%s1741 + $0xb8] sm:$0xf]
      %s1774 = scalar_lea.vmem %s1, 192
      %v1775 = vld [vmem:[%s1774] sm:$0xf]
      %v1776 = vld [vmem:[%s1774 + $0x4] sm:$0xf]
      %v1777 = vld [vmem:[%s1774 + $0x8] sm:$0xf]
      %v1778 = vld [vmem:[%s1774 + $0xc] sm:$0xf]
      %v1779 = vld [vmem:[%s1774 + $0x10] sm:$0xf]
      %v1780 = vld [vmem:[%s1774 + $0x14] sm:$0xf]
      %v1781 = vld [vmem:[%s1774 + $0x18] sm:$0xf]
      %v1782 = vld [vmem:[%s1774 + $0x1c] sm:$0xf]
      %v1783 = vld [vmem:[%s1774 + $0x20] sm:$0xf]
      %v1784 = vld [vmem:[%s1774 + $0x24] sm:$0xf]
      %v1785 = vld [vmem:[%s1774 + $0x28] sm:$0xf]
      %v1786 = vld [vmem:[%s1774 + $0x2c] sm:$0xf]
      %v1787 = vld [vmem:[%s1774 + $0x30] sm:$0xf]
      %v1788 = vld [vmem:[%s1774 + $0x34] sm:$0xf]
      %v1789 = vld [vmem:[%s1774 + $0x38] sm:$0xf]
      %v1790 = vld [vmem:[%s1774 + $0x3c] sm:$0xf]
      %v1823 = vunpack.c.l.b16 %v1742
      %v1824 = vunpack.c.l.b16 %v1743
      %v1825 = vunpack.c.l.b16 %v1744
      %v1826 = vunpack.c.l.b16 %v1745
      %v1827 = vunpack.c.l.b16 %v1746
      %v1828 = vunpack.c.l.b16 %v1747
      %v1829 = vunpack.c.l.b16 %v1748
      %v1830 = vunpack.c.l.b16 %v1749
      %v1831 = vunpack.c.l.b16 %v1750
      %v1832 = vunpack.c.l.b16 %v1751
      %v1833 = vunpack.c.l.b16 %v1752
      %v1834 = vunpack.c.l.b16 %v1753
      %v1835 = vunpack.c.l.b16 %v1754
      %v1836 = vunpack.c.l.b16 %v1755
      %v1837 = vunpack.c.l.b16 %v1756
      %v1838 = vunpack.c.l.b16 %v1757
      %v1839 = vunpack.c.l.b16 %v1758
      %v1840 = vunpack.c.l.b16 %v1759
      %v1841 = vunpack.c.l.b16 %v1760
      %v1842 = vunpack.c.l.b16 %v1761
      %v1843 = vunpack.c.l.b16 %v1762
      %v1844 = vunpack.c.l.b16 %v1763
      %v1845 = vunpack.c.l.b16 %v1764
      %v1846 = vunpack.c.l.b16 %v1765
      %v1847 = vunpack.c.l.b16 %v1766
      %v1848 = vunpack.c.l.b16 %v1767
      %v1849 = vunpack.c.l.b16 %v1768
      %v1850 = vunpack.c.l.b16 %v1769
      %v1851 = vunpack.c.l.b16 %v1770
      %v1852 = vunpack.c.l.b16 %v1771
      %v1853 = vunpack.c.l.b16 %v1772
      %v1854 = vunpack.c.l.b16 %v1773
      %v1855 = vpack.c.b16 %v1824, %v1823
      %v1856 = vpack.c.b16 %v1826, %v1825
      %v1857 = vpack.c.b16 %v1828, %v1827
      %v1858 = vpack.c.b16 %v1830, %v1829
      %v1859 = vpack.c.b16 %v1832, %v1831
      %v1860 = vpack.c.b16 %v1834, %v1833
      %v1861 = vpack.c.b16 %v1836, %v1835
      %v1862 = vpack.c.b16 %v1838, %v1837
      %v1863 = vpack.c.b16 %v1840, %v1839
      %v1864 = vpack.c.b16 %v1842, %v1841
      %v1865 = vpack.c.b16 %v1844, %v1843
      %v1866 = vpack.c.b16 %v1846, %v1845
      %v1867 = vpack.c.b16 %v1848, %v1847
      %v1868 = vpack.c.b16 %v1850, %v1849
      %v1869 = vpack.c.b16 %v1852, %v1851
      %v1870 = vpack.c.b16 %v1854, %v1853
      %v1903 = vunpack.c.l.b16 %v1775
      %v1904 = vunpack.c.l.b16 %v1776
      %v1905 = vunpack.c.l.b16 %v1777
      %v1906 = vunpack.c.l.b16 %v1778
      %v1907 = vunpack.c.l.b16 %v1779
      %v1908 = vunpack.c.l.b16 %v1780
      %v1909 = vunpack.c.l.b16 %v1781
      %v1910 = vunpack.c.l.b16 %v1782
      %v1911 = vunpack.c.l.b16 %v1783
      %v1912 = vunpack.c.l.b16 %v1784
      %v1913 = vunpack.c.l.b16 %v1785
      %v1914 = vunpack.c.l.b16 %v1786
      %v1915 = vunpack.c.l.b16 %v1787
      %v1916 = vunpack.c.l.b16 %v1788
      %v1917 = vunpack.c.l.b16 %v1789
      %v1918 = vunpack.c.l.b16 %v1790
      %v1919 = vpack.c.b16 %v1904, %v1903
      %v1920 = vpack.c.b16 %v1906, %v1905
      %v1921 = vpack.c.b16 %v1908, %v1907
      %v1922 = vpack.c.b16 %v1910, %v1909
      %v1923 = vpack.c.b16 %v1912, %v1911
      %v1924 = vpack.c.b16 %v1914, %v1913
      %v1925 = vpack.c.b16 %v1916, %v1915
      %v1926 = vpack.c.b16 %v1918, %v1917
      %1935 = vmatprep.subr.bf16.mxu0 0
      %1936 = vmatpush1.bf16.msra.mxu0 %v1919
      %1937 = vmatprep.subr.bf16.mxu0 0
      %1938 = vmatpush1.bf16.msra.mxu0 %v1920
      %1939 = vmatprep.subr.bf16.mxu0 0
      %1940 = vmatpush1.bf16.msra.mxu0 %v1921
      %1941 = vmatprep.subr.bf16.mxu0 0
      %1942 = vmatpush1.bf16.msra.mxu0 %v1922
      %1943 = vmatprep.subr.bf16.mxu0 0
      %1944 = vmatpush1.bf16.msra.mxu0 %v1923
      %1945 = vmatprep.subr.bf16.mxu0 0
      %1946 = vmatpush1.bf16.msra.mxu0 %v1924
      %1947 = vmatprep.subr.bf16.mxu0 0
      %1948 = vmatpush1.bf16.msra.mxu0 %v1925
      %1949 = vmatprep.subr.bf16.mxu0 0
      %1950 = vmatpush1.bf16.msra.mxu0 %v1926
      %1951 = vmatprep.subr.bf16.mxu0 0
      %1952 = vmatpush1.bf16.msra.mxu0 0
      %1953 = vmatprep.subr.bf16.mxu0 0
      %1954 = vmatpush1.bf16.msra.mxu0 0
      %1955 = vmatprep.subr.bf16.mxu0 0
      %1956 = vmatpush1.bf16.msra.mxu0 0
      %1957 = vmatprep.subr.bf16.mxu0 0
      %1958 = vmatpush1.bf16.msra.mxu0 0
      %1959 = vmatprep.subr.bf16.mxu0 0
      %1960 = vmatpush1.bf16.msra.mxu0 0
      %1961 = vmatprep.subr.bf16.mxu0 0
      %1962 = vmatpush1.bf16.msra.mxu0 0
      %1963 = vmatprep.subr.bf16.mxu0 0
      %1964 = vmatpush1.bf16.msra.mxu0 0
      %1965 = vmatprep.subr.bf16.mxu0 0
      %1966 = vmatpush1.bf16.msra.mxu0 0
      %1967 = vmatprep.mubr.bf16.mxu0 0
      %1968 = vmatmul.mubr.bf16.gmra.mrb[0].mxu0 %v1855
      %v1969 = vpop.f32.mrb[0].mxu0
      %v1970 = vadd.f32 0.0, %v1969
      %v1971 = vpop.f32.mrb[0].mxu0
      %v1972 = vpop.f32.mrb[0].mxu0
      %v1973 = vadd.f32 0.0, %v1972
      %v1974 = vpop.f32.mrb[0].mxu0
      %1975 = vmatprep.mubr.bf16.mxu0 0
      %1976 = vmatmul.mubr.bf16.gmra.mrb[0].mxu0 %v1856
      %v1977 = vpop.f32.mrb[0].mxu0
      %v1978 = vadd.f32 0.0, %v1977
      %v1979 = vpop.f32.mrb[0].mxu0
      %v1980 = vpop.f32.mrb[0].mxu0
      %v1981 = vadd.f32 0.0, %v1980
      %v1982 = vpop.f32.mrb[0].mxu0
      %1983 = vmatprep.mubr.bf16.mxu0 0
      %1984 = vmatmul.mubr.bf16.gmra.mrb[0].mxu0 %v1857
      %v1985 = vpop.f32.mrb[0].mxu0
      %v1986 = vadd.f32 0.0, %v1985
      %v1987 = vpop.f32.mrb[0].mxu0
      %v1988 = vpop.f32.mrb[0].mxu0
      %v1989 = vadd.f32 0.0, %v1988
      %v1990 = vpop.f32.mrb[0].mxu0
      %1991 = vmatprep.mubr.bf16.mxu0 0
      %1992 = vmatmul.mubr.bf16.gmra.mrb[0].mxu0 %v1858
      %v1993 = vpop.f32.mrb[0].mxu0
      %v1994 = vadd.f32 0.0, %v1993
      %v1995 = vpop.f32.mrb[0].mxu0
      %v1996 = vpop.f32.mrb[0].mxu0
      %v1997 = vadd.f32 0.0, %v1996
      %v1998 = vpop.f32.mrb[0].mxu0
      %1999 = vmatprep.mubr.bf16.mxu0 0
      %2000 = vmatmul.mubr.bf16.gmra.mrb[0].mxu0 %v1859
      %v2001 = vpop.f32.mrb[0].mxu0
      %v2002 = vadd.f32 0.0, %v2001
      %v2003 = vpop.f32.mrb[0].mxu0
      %v2004 = vpop.f32.mrb[0].mxu0
      %v2005 = vadd.f32 0.0, %v2004
      %v2006 = vpop.f32.mrb[0].mxu0
      %2007 = vmatprep.mubr.bf16.mxu0 0
      %2008 = vmatmul.mubr.bf16.gmra.mrb[0].mxu0 %v1860
      %v2009 = vpop.f32.mrb[0].mxu0
      %v2010 = vadd.f32 0.0, %v2009
      %v2011 = vpop.f32.mrb[0].mxu0
      %v2012 = vpop.f32.mrb[0].mxu0
      %v2013 = vadd.f32 0.0, %v2012
      %v2014 = vpop.f32.mrb[0].mxu0
      %2015 = vmatprep.mubr.bf16.mxu0 0
      %2016 = vmatmul.mubr.bf16.gmra.mrb[0].mxu0 %v1861
      %v2017 = vpop.f32.mrb[0].mxu0
      %v2018 = vadd.f32 0.0, %v2017
      %v2019 = vpop.f32.mrb[0].mxu0
      %v2020 = vpop.f32.mrb[0].mxu0
      %v2021 = vadd.f32 0.0, %v2020
      %v2022 = vpop.f32.mrb[0].mxu0
      %2023 = vmatprep.mubr.bf16.mxu0 0
      %2024 = vmatmul.mubr.bf16.gmra.mrb[0].mxu0 %v1862
      %v2025 = vpop.f32.mrb[0].mxu0
      %v2026 = vadd.f32 0.0, %v2025
      %v2027 = vpop.f32.mrb[0].mxu0
      %v2028 = vpop.f32.mrb[0].mxu0
      %v2029 = vadd.f32 0.0, %v2028
      %v2030 = vpop.f32.mrb[0].mxu0
      %2031 = vmatprep.mubr.bf16.mxu0 0
      %2032 = vmatmul.mubr.bf16.gmra.mrb[0].mxu0 %v1863
      %v2033 = vpop.f32.mrb[0].mxu0
      %v2034 = vadd.f32 0.0, %v2033
      %v2035 = vpop.f32.mrb[0].mxu0
      %v2036 = vpop.f32.mrb[0].mxu0
      %v2037 = vadd.f32 0.0, %v2036
      %v2038 = vpop.f32.mrb[0].mxu0
      %2039 = vmatprep.mubr.bf16.mxu0 0
      %2040 = vmatmul.mubr.bf16.gmra.mrb[0].mxu0 %v1864
      %v2041 = vpop.f32.mrb[0].mxu0
      %v2042 = vadd.f32 0.0, %v2041
      %v2043 = vpop.f32.mrb[0].mxu0
      %v2044 = vpop.f32.mrb[0].mxu0
      %v2045 = vadd.f32 0.0, %v2044
      %v2046 = vpop.f32.mrb[0].mxu0
      %2047 = vmatprep.mubr.bf16.mxu0 0
      %2048 = vmatmul.mubr.bf16.gmra.mrb[0].mxu0 %v1865
      %v2049 = vpop.f32.mrb[0].mxu0
      %v2050 = vadd.f32 0.0, %v2049
      %v2051 = vpop.f32.mrb[0].mxu0
      %v2052 = vpop.f32.mrb[0].mxu0
      %v2053 = vadd.f32 0.0, %v2052
      %v2054 = vpop.f32.mrb[0].mxu0
      %2055 = vmatprep.mubr.bf16.mxu0 0
      %2056 = vmatmul.mubr.bf16.gmra.mrb[0].mxu0 %v1866
      %v2057 = vpop.f32.mrb[0].mxu0
      %v2058 = vadd.f32 0.0, %v2057
      %v2059 = vpop.f32.mrb[0].mxu0
      %v2060 = vpop.f32.mrb[0].mxu0
      %v2061 = vadd.f32 0.0, %v2060
      %v2062 = vpop.f32.mrb[0].mxu0
      %2063 = vmatprep.mubr.bf16.mxu0 0
      %2064 = vmatmul.mubr.bf16.gmra.mrb[0].mxu0 %v1867
      %v2065 = vpop.f32.mrb[0].mxu0
      %v2066 = vadd.f32 0.0, %v2065
      %v2067 = vpop.f32.mrb[0].mxu0
      %v2068 = vpop.f32.mrb[0].mxu0
      %v2069 = vadd.f32 0.0, %v2068
      %v2070 = vpop.f32.mrb[0].mxu0
      %2071 = vmatprep.mubr.bf16.mxu0 0
      %2072 = vmatmul.mubr.bf16.gmra.mrb[0].mxu0 %v1868
      %v2073 = vpop.f32.mrb[0].mxu0
      %v2074 = vadd.f32 0.0, %v2073
      %v2075 = vpop.f32.mrb[0].mxu0
      %v2076 = vpop.f32.mrb[0].mxu0
      %v2077 = vadd.f32 0.0, %v2076
      %v2078 = vpop.f32.mrb[0].mxu0
      %2079 = vmatprep.mubr.bf16.mxu0 0
      %2080 = vmatmul.mubr.bf16.gmra.mrb[0].mxu0 %v1869
      %v2081 = vpop.f32.mrb[0].mxu0
      %v2082 = vadd.f32 0.0, %v2081
      %v2083 = vpop.f32.mrb[0].mxu0
      %v2084 = vpop.f32.mrb[0].mxu0
      %v2085 = vadd.f32 0.0, %v2084
      %v2086 = vpop.f32.mrb[0].mxu0
      %2087 = vmatprep.mubr.bf16.mxu0 0
      %2088 = vmatmul.mubr.bf16.gmra.mrb[0].mxu0 %v1870
      %v2089 = vpop.f32.mrb[0].mxu0
      %v2090 = vadd.f32 0.0, %v2089
      %v2091 = vpop.f32.mrb[0].mxu0
      %v2092 = vpop.f32.mrb[0].mxu0
      %v2093 = vadd.f32 0.0, %v2092
      %v2094 = vpop.f32.mrb[0].mxu0
      %2095 = vdwg.mxu0
      %v2096 = vadd.f32 %v1709, %v1970
      %v2097 = vadd.f32 %v1710, %v1973
      %v2098 = vadd.f32 %v1711, %v1978
      %v2099 = vadd.f32 %v1712, %v1981
      %v2100 = vadd.f32 %v1713, %v1986
      %v2101 = vadd.f32 %v1714, %v1989
      %v2102 = vadd.f32 %v1715, %v1994
      %v2103 = vadd.f32 %v1716, %v1997
      %v2104 = vadd.f32 %v1717, %v2002
      %v2105 = vadd.f32 %v1718, %v2005
      %v2106 = vadd.f32 %v1719, %v2010
      %v2107 = vadd.f32 %v1720, %v2013
      %v2108 = vadd.f32 %v1721, %v2018
      %v2109 = vadd.f32 %v1722, %v2021
      %v2110 = vadd.f32 %v1723, %v2026
      %v2111 = vadd.f32 %v1724, %v2029
      %v2112 = vadd.f32 %v1725, %v2034
      %v2113 = vadd.f32 %v1726, %v2037
      %v2114 = vadd.f32 %v1727, %v2042
      %v2115 = vadd.f32 %v1728, %v2045
      %v2116 = vadd.f32 %v1729, %v2050
      %v2117 = vadd.f32 %v1730, %v2053
      %v2118 = vadd.f32 %v1731, %v2058
      %v2119 = vadd.f32 %v1732, %v2061
      %v2120 = vadd.f32 %v1733, %v2066
      %v2121 = vadd.f32 %v1734, %v2069
      %v2122 = vadd.f32 %v1735, %v2074
      %v2123 = vadd.f32 %v1736, %v2077
      %v2124 = vadd.f32 %v1737, %v2082
      %v2125 = vadd.f32 %v1738, %v2085
      %v2126 = vadd.f32 %v1739, %v2090
      %v2127 = vadd.f32 %v1740, %v2093
      %v2128 = vld [vmem:[%s1741] sm:$0xf]
      %v2129 = vld [vmem:[%s1741 + $0x4] sm:$0xf]
      %v2130 = vld [vmem:[%s1741 + $0x8] sm:$0x1]
      %v2131 = vld [vmem:[%s1741 + $0xc] sm:$0xf]
      %v2132 = vld [vmem:[%s1741 + $0x10] sm:$0xf]
      %v2133 = vld [vmem:[%s1741 + $0x14] sm:$0x1]
      %v2134 = vld [vmem:[%s1741 + $0x18] sm:$0xf]
      %v2135 = vld [vmem:[%s1741 + $0x1c] sm:$0xf]
      %v2136 = vld [vmem:[%s1741 + $0x20] sm:$0x1]
      %v2137 = vld [vmem:[%s1741 + $0x24] sm:$0xf]
      %v2138 = vld [vmem:[%s1741 + $0x28] sm:$0xf]
      %v2139 = vld [vmem:[%s1741 + $0x2c] sm:$0x1]
      %v2140 = vld [vmem:[%s1741 + $0x30] sm:$0xf]
      %v2141 = vld [vmem:[%s1741 + $0x34] sm:$0xf]
      %v2142 = vld [vmem:[%s1741 + $0x38] sm:$0x1]
      %v2143 = vld [vmem:[%s1741 + $0x3c] sm:$0xf]
      %v2144 = vld [vmem:[%s1741 + $0x40] sm:$0xf]
      %v2145 = vld [vmem:[%s1741 + $0x44] sm:$0x1]
      %v2146 = vld [vmem:[%s1741 + $0x48] sm:$0xf]
      %v2147 = vld [vmem:[%s1741 + $0x4c] sm:$0xf]
      %v2148 = vld [vmem:[%s1741 + $0x50] sm:$0x1]
      %v2149 = vld [vmem:[%s1741 + $0x54] sm:$0xf]
      %v2150 = vld [vmem:[%s1741 + $0x58] sm:$0xf]
      %v2151 = vld [vmem:[%s1741 + $0x5c] sm:$0x1]
      %v2152 = vld [vmem:[%s1741 + $0x60] sm:$0xf]
      %v2153 = vld [vmem:[%s1741 + $0x64] sm:$0xf]
      %v2154 = vld [vmem:[%s1741 + $0x68] sm:$0x1]
      %v2155 = vld [vmem:[%s1741 + $0x6c] sm:$0xf]
      %v2156 = vld [vmem:[%s1741 + $0x70] sm:$0xf]
      %v2157 = vld [vmem:[%s1741 + $0x74] sm:$0x1]
      %v2158 = vld [vmem:[%s1741 + $0x78] sm:$0xf]
      %v2159 = vld [vmem:[%s1741 + $0x7c] sm:$0xf]
      %v2160 = vld [vmem:[%s1741 + $0x80] sm:$0x1]
      %v2161 = vld [vmem:[%s1741 + $0x84] sm:$0xf]
      %v2162 = vld [vmem:[%s1741 + $0x88] sm:$0xf]
      %v2163 = vld [vmem:[%s1741 + $0x8c] sm:$0x1]
      %v2164 = vld [vmem:[%s1741 + $0x90] sm:$0xf]
      %v2165 = vld [vmem:[%s1741 + $0x94] sm:$0xf]
      %v2166 = vld [vmem:[%s1741 + $0x98] sm:$0x1]
      %v2167 = vld [vmem:[%s1741 + $0x9c] sm:$0xf]
      %v2168 = vld [vmem:[%s1741 + $0xa0] sm:$0xf]
      %v2169 = vld [vmem:[%s1741 + $0xa4] sm:$0x1]
      %v2170 = vld [vmem:[%s1741 + $0xa8] sm:$0xf]
      %v2171 = vld [vmem:[%s1741 + $0xac] sm:$0xf]
      %v2172 = vld [vmem:[%s1741 + $0xb0] sm:$0x1]
      %v2173 = vld [vmem:[%s1741 + $0xb4] sm:$0xf]
      %v2174 = vld [vmem:[%s1741 + $0xb8] sm:$0xf]
      %v2175 = vld [vmem:[%s1741 + $0xbc] sm:$0x1]
      %v2177 = vshrl.u32 %v2128, 16
      %v2179 = vrot.slane %v2177, 4
      %v2180 = vshll.u32 %v2128, 16
      %v2182 = vrot.slane %v2180, 5
      %v2183 = vor.u32 %v2179, %v2182
      %v2184 = vrot.slane %v2183, 4
      %v2186 = vshll.u32 %v2129, 16
      %v2188 = vrot.slane %v2186, 5
      %v2189 = vsel %vm276, %v2184, %v2188
      %v2190 = vshrl.u32 %v2129, 16
      %v2192 = vrot.slane %v2190, 4
      %v2193 = vor.u32 %v2192, %v2188
      %v2194 = vrot.slane %v2193, 4
      %v2196 = vshll.u32 %v2130, 16
      %v2198 = vrot.slane %v2196, 5
      %v2199 = vsel %vm276, %v2194, %v2198
      %v2201 = vshrl.u32 %v2131, 16
      %v2203 = vrot.slane %v2201, 4
      %v2204 = vshll.u32 %v2131, 16
      %v2206 = vrot.slane %v2204, 5
      %v2207 = vor.u32 %v2203, %v2206
      %v2208 = vrot.slane %v2207, 4
      %v2210 = vshll.u32 %v2132, 16
      %v2212 = vrot.slane %v2210, 5
      %v2213 = vsel %vm276, %v2208, %v2212
      %v2214 = vshrl.u32 %v2132, 16
      %v2216 = vrot.slane %v2214, 4
      %v2217 = vor.u32 %v2216, %v2212
      %v2218 = vrot.slane %v2217, 4
      %v2220 = vshll.u32 %v2133, 16
      %v2222 = vrot.slane %v2220, 5
      %v2223 = vsel %vm276, %v2218, %v2222
      %v2225 = vshrl.u32 %v2134, 16
      %v2227 = vrot.slane %v2225, 4
      %v2228 = vshll.u32 %v2134, 16
      %v2230 = vrot.slane %v2228, 5
      %v2231 = vor.u32 %v2227, %v2230
      %v2232 = vrot.slane %v2231, 4
      %v2234 = vshll.u32 %v2135, 16
      %v2236 = vrot.slane %v2234, 5
      %v2237 = vsel %vm276, %v2232, %v2236
      %v2238 = vshrl.u32 %v2135, 16
      %v2240 = vrot.slane %v2238, 4
      %v2241 = vor.u32 %v2240, %v2236
      %v2242 = vrot.slane %v2241, 4
      %v2244 = vshll.u32 %v2136, 16
      %v2246 = vrot.slane %v2244, 5
      %v2247 = vsel %vm276, %v2242, %v2246
      %v2249 = vshrl.u32 %v2137, 16
      %v2251 = vrot.slane %v2249, 4
      %v2252 = vshll.u32 %v2137, 16
      %v2254 = vrot.slane %v2252, 5
      %v2255 = vor.u32 %v2251, %v2254
      %v2256 = vrot.slane %v2255, 4
      %v2258 = vshll.u32 %v2138, 16
      %v2260 = vrot.slane %v2258, 5
      %v2261 = vsel %vm276, %v2256, %v2260
      %v2262 = vshrl.u32 %v2138, 16
      %v2264 = vrot.slane %v2262, 4
      %v2265 = vor.u32 %v2264, %v2260
      %v2266 = vrot.slane %v2265, 4
      %v2268 = vshll.u32 %v2139, 16
      %v2270 = vrot.slane %v2268, 5
      %v2271 = vsel %vm276, %v2266, %v2270
      %v2273 = vshrl.u32 %v2140, 16
      %v2275 = vrot.slane %v2273, 4
      %v2276 = vshll.u32 %v2140, 16
      %v2278 = vrot.slane %v2276, 5
      %v2279 = vor.u32 %v2275, %v2278
      %v2280 = vrot.slane %v2279, 4
      %v2282 = vshll.u32 %v2141, 16
      %v2284 = vrot.slane %v2282, 5
      %v2285 = vsel %vm276, %v2280, %v2284
      %v2286 = vshrl.u32 %v2141, 16
      %v2288 = vrot.slane %v2286, 4
      %v2289 = vor.u32 %v2288, %v2284
      %v2290 = vrot.slane %v2289, 4
      %v2292 = vshll.u32 %v2142, 16
      %v2294 = vrot.slane %v2292, 5
      %v2295 = vsel %vm276, %v2290, %v2294
      %v2297 = vshrl.u32 %v2143, 16
      %v2299 = vrot.slane %v2297, 4
      %v2300 = vshll.u32 %v2143, 16
      %v2302 = vrot.slane %v2300, 5
      %v2303 = vor.u32 %v2299, %v2302
      %v2304 = vrot.slane %v2303, 4
      %v2306 = vshll.u32 %v2144, 16
      %v2308 = vrot.slane %v2306, 5
      %v2309 = vsel %vm276, %v2304, %v2308
      %v2310 = vshrl.u32 %v2144, 16
      %v2312 = vrot.slane %v2310, 4
      %v2313 = vor.u32 %v2312, %v2308
      %v2314 = vrot.slane %v2313, 4
      %v2316 = vshll.u32 %v2145, 16
      %v2318 = vrot.slane %v2316, 5
      %v2319 = vsel %vm276, %v2314, %v2318
      %v2321 = vshrl.u32 %v2146, 16
      %v2323 = vrot.slane %v2321, 4
      %v2324 = vshll.u32 %v2146, 16
      %v2326 = vrot.slane %v2324, 5
      %v2327 = vor.u32 %v2323, %v2326
      %v2328 = vrot.slane %v2327, 4
      %v2330 = vshll.u32 %v2147, 16
      %v2332 = vrot.slane %v2330, 5
      %v2333 = vsel %vm276, %v2328, %v2332
      %v2334 = vshrl.u32 %v2147, 16
      %v2336 = vrot.slane %v2334, 4
      %v2337 = vor.u32 %v2336, %v2332
      %v2338 = vrot.slane %v2337, 4
      %v2340 = vshll.u32 %v2148, 16
      %v2342 = vrot.slane %v2340, 5
      %v2343 = vsel %vm276, %v2338, %v2342
      %v2345 = vshrl.u32 %v2149, 16
      %v2347 = vrot.slane %v2345, 4
      %v2348 = vshll.u32 %v2149, 16
      %v2350 = vrot.slane %v2348, 5
      %v2351 = vor.u32 %v2347, %v2350
      %v2352 = vrot.slane %v2351, 4
      %v2354 = vshll.u32 %v2150, 16
      %v2356 = vrot.slane %v2354, 5
      %v2357 = vsel %vm276, %v2352, %v2356
      %v2358 = vshrl.u32 %v2150, 16
      %v2360 = vrot.slane %v2358, 4
      %v2361 = vor.u32 %v2360, %v2356
      %v2362 = vrot.slane %v2361, 4
      %v2364 = vshll.u32 %v2151, 16
      %v2366 = vrot.slane %v2364, 5
      %v2367 = vsel %vm276, %v2362, %v2366
      %v2369 = vshrl.u32 %v2152, 16
      %v2371 = vrot.slane %v2369, 4
      %v2372 = vshll.u32 %v2152, 16
      %v2374 = vrot.slane %v2372, 5
      %v2375 = vor.u32 %v2371, %v2374
      %v2376 = vrot.slane %v2375, 4
      %v2378 = vshll.u32 %v2153, 16
      %v2380 = vrot.slane %v2378, 5
      %v2381 = vsel %vm276, %v2376, %v2380
      %v2382 = vshrl.u32 %v2153, 16
      %v2384 = vrot.slane %v2382, 4
      %v2385 = vor.u32 %v2384, %v2380
      %v2386 = vrot.slane %v2385, 4
      %v2388 = vshll.u32 %v2154, 16
      %v2390 = vrot.slane %v2388, 5
      %v2391 = vsel %vm276, %v2386, %v2390
      %v2393 = vshrl.u32 %v2155, 16
      %v2395 = vrot.slane %v2393, 4
      %v2396 = vshll.u32 %v2155, 16
      %v2398 = vrot.slane %v2396, 5
      %v2399 = vor.u32 %v2395, %v2398
      %v2400 = vrot.slane %v2399, 4
      %v2402 = vshll.u32 %v2156, 16
      %v2404 = vrot.slane %v2402, 5
      %v2405 = vsel %vm276, %v2400, %v2404
      %v2406 = vshrl.u32 %v2156, 16
      %v2408 = vrot.slane %v2406, 4
      %v2409 = vor.u32 %v2408, %v2404
      %v2410 = vrot.slane %v2409, 4
      %v2412 = vshll.u32 %v2157, 16
      %v2414 = vrot.slane %v2412, 5
      %v2415 = vsel %vm276, %v2410, %v2414
      %v2417 = vshrl.u32 %v2158, 16
      %v2419 = vrot.slane %v2417, 4
      %v2420 = vshll.u32 %v2158, 16
      %v2422 = vrot.slane %v2420, 5
      %v2423 = vor.u32 %v2419, %v2422
      %v2424 = vrot.slane %v2423, 4
      %v2426 = vshll.u32 %v2159, 16
      %v2428 = vrot.slane %v2426, 5
      %v2429 = vsel %vm276, %v2424, %v2428
      %v2430 = vshrl.u32 %v2159, 16
      %v2432 = vrot.slane %v2430, 4
      %v2433 = vor.u32 %v2432, %v2428
      %v2434 = vrot.slane %v2433, 4
      %v2436 = vshll.u32 %v2160, 16
      %v2438 = vrot.slane %v2436, 5
      %v2439 = vsel %vm276, %v2434, %v2438
      %v2441 = vshrl.u32 %v2161, 16
      %v2443 = vrot.slane %v2441, 4
      %v2444 = vshll.u32 %v2161, 16
      %v2446 = vrot.slane %v2444, 5
      %v2447 = vor.u32 %v2443, %v2446
      %v2448 = vrot.slane %v2447, 4
      %v2450 = vshll.u32 %v2162, 16
      %v2452 = vrot.slane %v2450, 5
      %v2453 = vsel %vm276, %v2448, %v2452
      %v2454 = vshrl.u32 %v2162, 16
      %v2456 = vrot.slane %v2454, 4
      %v2457 = vor.u32 %v2456, %v2452
      %v2458 = vrot.slane %v2457, 4
      %v2460 = vshll.u32 %v2163, 16
      %v2462 = vrot.slane %v2460, 5
      %v2463 = vsel %vm276, %v2458, %v2462
      %v2465 = vshrl.u32 %v2164, 16
      %v2467 = vrot.slane %v2465, 4
      %v2468 = vshll.u32 %v2164, 16
      %v2470 = vrot.slane %v2468, 5
      %v2471 = vor.u32 %v2467, %v2470
      %v2472 = vrot.slane %v2471, 4
      %v2474 = vshll.u32 %v2165, 16
      %v2476 = vrot.slane %v2474, 5
      %v2477 = vsel %vm276, %v2472, %v2476
      %v2478 = vshrl.u32 %v2165, 16
      %v2480 = vrot.slane %v2478, 4
      %v2481 = vor.u32 %v2480, %v2476
      %v2482 = vrot.slane %v2481, 4
      %v2484 = vshll.u32 %v2166, 16
      %v2486 = vrot.slane %v2484, 5
      %v2487 = vsel %vm276, %v2482, %v2486
      %v2489 = vshrl.u32 %v2167, 16
      %v2491 = vrot.slane %v2489, 4
      %v2492 = vshll.u32 %v2167, 16
      %v2494 = vrot.slane %v2492, 5
      %v2495 = vor.u32 %v2491, %v2494
      %v2496 = vrot.slane %v2495, 4
      %v2498 = vshll.u32 %v2168, 16
      %v2500 = vrot.slane %v2498, 5
      %v2501 = vsel %vm276, %v2496, %v2500
      %v2502 = vshrl.u32 %v2168, 16
      %v2504 = vrot.slane %v2502, 4
      %v2505 = vor.u32 %v2504, %v2500
      %v2506 = vrot.slane %v2505, 4
      %v2508 = vshll.u32 %v2169, 16
      %v2510 = vrot.slane %v2508, 5
      %v2511 = vsel %vm276, %v2506, %v2510
      %v2513 = vshrl.u32 %v2170, 16
      %v2515 = vrot.slane %v2513, 4
      %v2516 = vshll.u32 %v2170, 16
      %v2518 = vrot.slane %v2516, 5
      %v2519 = vor.u32 %v2515, %v2518
      %v2520 = vrot.slane %v2519, 4
      %v2522 = vshll.u32 %v2171, 16
      %v2524 = vrot.slane %v2522, 5
      %v2525 = vsel %vm276, %v2520, %v2524
      %v2526 = vshrl.u32 %v2171, 16
      %v2528 = vrot.slane %v2526, 4
      %v2529 = vor.u32 %v2528, %v2524
      %v2530 = vrot.slane %v2529, 4
      %v2532 = vshll.u32 %v2172, 16
      %v2534 = vrot.slane %v2532, 5
      %v2535 = vsel %vm276, %v2530, %v2534
      %v2537 = vshrl.u32 %v2173, 16
      %v2539 = vrot.slane %v2537, 4
      %v2540 = vshll.u32 %v2173, 16
      %v2542 = vrot.slane %v2540, 5
      %v2543 = vor.u32 %v2539, %v2542
      %v2544 = vrot.slane %v2543, 4
      %v2546 = vshll.u32 %v2174, 16
      %v2548 = vrot.slane %v2546, 5
      %v2549 = vsel %vm276, %v2544, %v2548
      %v2550 = vshrl.u32 %v2174, 16
      %v2552 = vrot.slane %v2550, 4
      %v2553 = vor.u32 %v2552, %v2548
      %v2554 = vrot.slane %v2553, 4
      %v2556 = vshll.u32 %v2175, 16
      %v2558 = vrot.slane %v2556, 5
      %v2559 = vsel %vm276, %v2554, %v2558
      %s2560 = scalar_lea.vmem %s1, 256
      %v2561 = vld [vmem:[%s2560] sm:$0xf]
      %v2562 = vld [vmem:[%s2560 + $0x4] sm:$0xf]
      %v2563 = vld [vmem:[%s2560 + $0x8] sm:$0xf]
      %v2564 = vld [vmem:[%s2560 + $0xc] sm:$0xf]
      %v2565 = vld [vmem:[%s2560 + $0x10] sm:$0xf]
      %v2566 = vld [vmem:[%s2560 + $0x14] sm:$0xf]
      %v2567 = vld [vmem:[%s2560 + $0x18] sm:$0xf]
      %v2568 = vld [vmem:[%s2560 + $0x1c] sm:$0xf]
      %v2569 = vld [vmem:[%s2560 + $0x20] sm:$0xf]
      %v2570 = vld [vmem:[%s2560 + $0x24] sm:$0xf]
      %v2571 = vld [vmem:[%s2560 + $0x28] sm:$0xf]
      %v2572 = vld [vmem:[%s2560 + $0x2c] sm:$0xf]
      %v2573 = vld [vmem:[%s2560 + $0x30] sm:$0xf]
      %v2574 = vld [vmem:[%s2560 + $0x34] sm:$0xf]
      %v2575 = vld [vmem:[%s2560 + $0x38] sm:$0xf]
      %v2576 = vld [vmem:[%s2560 + $0x3c] sm:$0xf]
      %v2577 = vunpack.c.l.b16 %v2189
      %v2578 = vunpack.c.l.b16 %v2199
      %v2579 = vunpack.c.l.b16 %v2213
      %v2580 = vunpack.c.l.b16 %v2223
      %v2581 = vunpack.c.l.b16 %v2237
      %v2582 = vunpack.c.l.b16 %v2247
      %v2583 = vunpack.c.l.b16 %v2261
      %v2584 = vunpack.c.l.b16 %v2271
      %v2585 = vunpack.c.l.b16 %v2285
      %v2586 = vunpack.c.l.b16 %v2295
      %v2587 = vunpack.c.l.b16 %v2309
      %v2588 = vunpack.c.l.b16 %v2319
      %v2589 = vunpack.c.l.b16 %v2333
      %v2590 = vunpack.c.l.b16 %v2343
      %v2591 = vunpack.c.l.b16 %v2357
      %v2592 = vunpack.c.l.b16 %v2367
      %v2593 = vunpack.c.l.b16 %v2381
      %v2594 = vunpack.c.l.b16 %v2391
      %v2595 = vunpack.c.l.b16 %v2405
      %v2596 = vunpack.c.l.b16 %v2415
      %v2597 = vunpack.c.l.b16 %v2429
      %v2598 = vunpack.c.l.b16 %v2439
      %v2599 = vunpack.c.l.b16 %v2453
      %v2600 = vunpack.c.l.b16 %v2463
      %v2601 = vunpack.c.l.b16 %v2477
      %v2602 = vunpack.c.l.b16 %v2487
      %v2603 = vunpack.c.l.b16 %v2501
      %v2604 = vunpack.c.l.b16 %v2511
      %v2605 = vunpack.c.l.b16 %v2525
      %v2606 = vunpack.c.l.b16 %v2535
      %v2607 = vunpack.c.l.b16 %v2549
      %v2608 = vunpack.c.l.b16 %v2559
      %v2609 = vpack.c.b16 %v2578, %v2577
      %v2610 = vpack.c.b16 %v2580, %v2579
      %v2611 = vpack.c.b16 %v2582, %v2581
      %v2612 = vpack.c.b16 %v2584, %v2583
      %v2613 = vpack.c.b16 %v2586, %v2585
      %v2614 = vpack.c.b16 %v2588, %v2587
      %v2615 = vpack.c.b16 %v2590, %v2589
      %v2616 = vpack.c.b16 %v2592, %v2591
      %v2617 = vpack.c.b16 %v2594, %v2593
      %v2618 = vpack.c.b16 %v2596, %v2595
      %v2619 = vpack.c.b16 %v2598, %v2597
      %v2620 = vpack.c.b16 %v2600, %v2599
      %v2621 = vpack.c.b16 %v2602, %v2601
      %v2622 = vpack.c.b16 %v2604, %v2603
      %v2623 = vpack.c.b16 %v2606, %v2605
      %v2624 = vpack.c.b16 %v2608, %v2607
      %v2657 = vunpack.c.l.b16 %v2561
      %v2658 = vunpack.c.l.b16 %v2562
      %v2659 = vunpack.c.l.b16 %v2563
      %v2660 = vunpack.c.l.b16 %v2564
      %v2661 = vunpack.c.l.b16 %v2565
      %v2662 = vunpack.c.l.b16 %v2566
      %v2663 = vunpack.c.l.b16 %v2567
      %v2664 = vunpack.c.l.b16 %v2568
      %v2665 = vunpack.c.l.b16 %v2569
      %v2666 = vunpack.c.l.b16 %v2570
      %v2667 = vunpack.c.l.b16 %v2571
      %v2668 = vunpack.c.l.b16 %v2572
      %v2669 = vunpack.c.l.b16 %v2573
      %v2670 = vunpack.c.l.b16 %v2574
      %v2671 = vunpack.c.l.b16 %v2575
      %v2672 = vunpack.c.l.b16 %v2576
      %v2673 = vpack.c.b16 %v2658, %v2657
      %v2674 = vpack.c.b16 %v2660, %v2659
      %v2675 = vpack.c.b16 %v2662, %v2661
      %v2676 = vpack.c.b16 %v2664, %v2663
      %v2677 = vpack.c.b16 %v2666, %v2665
      %v2678 = vpack.c.b16 %v2668, %v2667
      %v2679 = vpack.c.b16 %v2670, %v2669
      %v2680 = vpack.c.b16 %v2672, %v2671
      %2689 = vmatprep.subr.bf16.mxu0 0
      %2690 = vmatpush1.bf16.msra.mxu0 %v2673
      %2691 = vmatprep.subr.bf16.mxu0 0
      %2692 = vmatpush1.bf16.msra.mxu0 %v2674
      %2693 = vmatprep.subr.bf16.mxu0 0
      %2694 = vmatpush1.bf16.msra.mxu0 %v2675
      %2695 = vmatprep.subr.bf16.mxu0 0
      %2696 = vmatpush1.bf16.msra.mxu0 %v2676
      %2697 = vmatprep.subr.bf16.mxu0 0
      %2698 = vmatpush1.bf16.msra.mxu0 %v2677
      %2699 = vmatprep.subr.bf16.mxu0 0
      %2700 = vmatpush1.bf16.msra.mxu0 %v2678
      %2701 = vmatprep.subr.bf16.mxu0 0
      %2702 = vmatpush1.bf16.msra.mxu0 %v2679
      %2703 = vmatprep.subr.bf16.mxu0 0
      %2704 = vmatpush1.bf16.msra.mxu0 %v2680
      %2705 = vmatprep.subr.bf16.mxu0 0
      %2706 = vmatpush1.bf16.msra.mxu0 0
      %2707 = vmatprep.subr.bf16.mxu0 0
      %2708 = vmatpush1.bf16.msra.mxu0 0
      %2709 = vmatprep.subr.bf16.mxu0 0
      %2710 = vmatpush1.bf16.msra.mxu0 0
      %2711 = vmatprep.subr.bf16.mxu0 0
      %2712 = vmatpush1.bf16.msra.mxu0 0
      %2713 = vmatprep.subr.bf16.mxu0 0
      %2714 = vmatpush1.bf16.msra.mxu0 0
      %2715 = vmatprep.subr.bf16.mxu0 0
      %2716 = vmatpush1.bf16.msra.mxu0 0
      %2717 = vmatprep.subr.bf16.mxu0 0
      %2718 = vmatpush1.bf16.msra.mxu0 0
      %2719 = vmatprep.subr.bf16.mxu0 0
      %2720 = vmatpush1.bf16.msra.mxu0 0
      %2721 = vmatprep.mubr.bf16.mxu0 0
      %2722 = vmatmul.mubr.bf16.gmra.mrb[0].mxu0 %v2609
      %v2723 = vpop.f32.mrb[0].mxu0
      %v2724 = vadd.f32 0.0, %v2723
      %v2725 = vpop.f32.mrb[0].mxu0
      %v2726 = vpop.f32.mrb[0].mxu0
      %v2727 = vadd.f32 0.0, %v2726
      %v2728 = vpop.f32.mrb[0].mxu0
      %2729 = vmatprep.mubr.bf16.mxu0 0
      %2730 = vmatmul.mubr.bf16.gmra.mrb[0].mxu0 %v2610
      %v2731 = vpop.f32.mrb[0].mxu0
      %v2732 = vadd.f32 0.0, %v2731
      %v2733 = vpop.f32.mrb[0].mxu0
      %v2734 = vpop.f32.mrb[0].mxu0
      %v2735 = vadd.f32 0.0, %v2734
      %v2736 = vpop.f32.mrb[0].mxu0
      %2737 = vmatprep.mubr.bf16.mxu0 0
      %2738 = vmatmul.mubr.bf16.gmra.mrb[0].mxu0 %v2611
      %v2739 = vpop.f32.mrb[0].mxu0
      %v2740 = vadd.f32 0.0, %v2739
      %v2741 = vpop.f32.mrb[0].mxu0
      %v2742 = vpop.f32.mrb[0].mxu0
      %v2743 = vadd.f32 0.0, %v2742
      %v2744 = vpop.f32.mrb[0].mxu0
      %2745 = vmatprep.mubr.bf16.mxu0 0
      %2746 = vmatmul.mubr.bf16.gmra.mrb[0].mxu0 %v2612
      %v2747 = vpop.f32.mrb[0].mxu0
      %v2748 = vadd.f32 0.0, %v2747
      %v2749 = vpop.f32.mrb[0].mxu0
      %v2750 = vpop.f32.mrb[0].mxu0
      %v2751 = vadd.f32 0.0, %v2750
      %v2752 = vpop.f32.mrb[0].mxu0
      %2753 = vmatprep.mubr.bf16.mxu0 0
      %2754 = vmatmul.mubr.bf16.gmra.mrb[0].mxu0 %v2613
      %v2755 = vpop.f32.mrb[0].mxu0
      %v2756 = vadd.f32 0.0, %v2755
      %v2757 = vpop.f32.mrb[0].mxu0
      %v2758 = vpop.f32.mrb[0].mxu0
      %v2759 = vadd.f32 0.0, %v2758
      %v2760 = vpop.f32.mrb[0].mxu0
      %2761 = vmatprep.mubr.bf16.mxu0 0
      %2762 = vmatmul.mubr.bf16.gmra.mrb[0].mxu0 %v2614
      %v2763 = vpop.f32.mrb[0].mxu0
      %v2764 = vadd.f32 0.0, %v2763
      %v2765 = vpop.f32.mrb[0].mxu0
      %v2766 = vpop.f32.mrb[0].mxu0
      %v2767 = vadd.f32 0.0, %v2766
      %v2768 = vpop.f32.mrb[0].mxu0
      %2769 = vmatprep.mubr.bf16.mxu0 0
      %2770 = vmatmul.mubr.bf16.gmra.mrb[0].mxu0 %v2615
      %v2771 = vpop.f32.mrb[0].mxu0
      %v2772 = vadd.f32 0.0, %v2771
      %v2773 = vpop.f32.mrb[0].mxu0
      %v2774 = vpop.f32.mrb[0].mxu0
      %v2775 = vadd.f32 0.0, %v2774
      %v2776 = vpop.f32.mrb[0].mxu0
      %2777 = vmatprep.mubr.bf16.mxu0 0
      %2778 = vmatmul.mubr.bf16.gmra.mrb[0].mxu0 %v2616
      %v2779 = vpop.f32.mrb[0].mxu0
      %v2780 = vadd.f32 0.0, %v2779
      %v2781 = vpop.f32.mrb[0].mxu0
      %v2782 = vpop.f32.mrb[0].mxu0
      %v2783 = vadd.f32 0.0, %v2782
      %v2784 = vpop.f32.mrb[0].mxu0
      %2785 = vmatprep.mubr.bf16.mxu0 0
      %2786 = vmatmul.mubr.bf16.gmra.mrb[0].mxu0 %v2617
      %v2787 = vpop.f32.mrb[0].mxu0
      %v2788 = vadd.f32 0.0, %v2787
      %v2789 = vpop.f32.mrb[0].mxu0
      %v2790 = vpop.f32.mrb[0].mxu0
      %v2791 = vadd.f32 0.0, %v2790
      %v2792 = vpop.f32.mrb[0].mxu0
      %2793 = vmatprep.mubr.bf16.mxu0 0
      %2794 = vmatmul.mubr.bf16.gmra.mrb[0].mxu0 %v2618
      %v2795 = vpop.f32.mrb[0].mxu0
      %v2796 = vadd.f32 0.0, %v2795
      %v2797 = vpop.f32.mrb[0].mxu0
      %v2798 = vpop.f32.mrb[0].mxu0
      %v2799 = vadd.f32 0.0, %v2798
      %v2800 = vpop.f32.mrb[0].mxu0
      %2801 = vmatprep.mubr.bf16.mxu0 0
      %2802 = vmatmul.mubr.bf16.gmra.mrb[0].mxu0 %v2619
      %v2803 = vpop.f32.mrb[0].mxu0
      %v2804 = vadd.f32 0.0, %v2803
      %v2805 = vpop.f32.mrb[0].mxu0
      %v2806 = vpop.f32.mrb[0].mxu0
      %v2807 = vadd.f32 0.0, %v2806
      %v2808 = vpop.f32.mrb[0].mxu0
      %2809 = vmatprep.mubr.bf16.mxu0 0
      %2810 = vmatmul.mubr.bf16.gmra.mrb[0].mxu0 %v2620
      %v2811 = vpop.f32.mrb[0].mxu0
      %v2812 = vadd.f32 0.0, %v2811
      %v2813 = vpop.f32.mrb[0].mxu0
      %v2814 = vpop.f32.mrb[0].mxu0
      %v2815 = vadd.f32 0.0, %v2814
      %v2816 = vpop.f32.mrb[0].mxu0
      %2817 = vmatprep.mubr.bf16.mxu0 0
      %2818 = vmatmul.mubr.bf16.gmra.mrb[0].mxu0 %v2621
      %v2819 = vpop.f32.mrb[0].mxu0
      %v2820 = vadd.f32 0.0, %v2819
      %v2821 = vpop.f32.mrb[0].mxu0
      %v2822 = vpop.f32.mrb[0].mxu0
      %v2823 = vadd.f32 0.0, %v2822
      %v2824 = vpop.f32.mrb[0].mxu0
      %2825 = vmatprep.mubr.bf16.mxu0 0
      %2826 = vmatmul.mubr.bf16.gmra.mrb[0].mxu0 %v2622
      %v2827 = vpop.f32.mrb[0].mxu0
      %v2828 = vadd.f32 0.0, %v2827
      %v2829 = vpop.f32.mrb[0].mxu0
      %v2830 = vpop.f32.mrb[0].mxu0
      %v2831 = vadd.f32 0.0, %v2830
      %v2832 = vpop.f32.mrb[0].mxu0
      %2833 = vmatprep.mubr.bf16.mxu0 0
      %2834 = vmatmul.mubr.bf16.gmra.mrb[0].mxu0 %v2623
      %v2835 = vpop.f32.mrb[0].mxu0
      %v2836 = vadd.f32 0.0, %v2835
      %v2837 = vpop.f32.mrb[0].mxu0
      %v2838 = vpop.f32.mrb[0].mxu0
      %v2839 = vadd.f32 0.0, %v2838
      %v2840 = vpop.f32.mrb[0].mxu0
      %2841 = vmatprep.mubr.bf16.mxu0 0
      %2842 = vmatmul.mubr.bf16.gmra.mrb[0].mxu0 %v2624
      %v2843 = vpop.f32.mrb[0].mxu0
      %v2844 = vadd.f32 0.0, %v2843
      %v2845 = vpop.f32.mrb[0].mxu0
      %v2846 = vpop.f32.mrb[0].mxu0
      %v2847 = vadd.f32 0.0, %v2846
      %v2848 = vpop.f32.mrb[0].mxu0
      %2849 = vdwg.mxu0
      %v2850 = vadd.f32 %v2096, %v2724
      %v2851 = vadd.f32 %v2097, %v2727
      %v2852 = vadd.f32 %v2098, %v2732
      %v2853 = vadd.f32 %v2099, %v2735
      %v2854 = vadd.f32 %v2100, %v2740
      %v2855 = vadd.f32 %v2101, %v2743
      %v2856 = vadd.f32 %v2102, %v2748
      %v2857 = vadd.f32 %v2103, %v2751
      %v2858 = vadd.f32 %v2104, %v2756
      %v2859 = vadd.f32 %v2105, %v2759
      %v2860 = vadd.f32 %v2106, %v2764
      %v2861 = vadd.f32 %v2107, %v2767
      %v2862 = vadd.f32 %v2108, %v2772
      %v2863 = vadd.f32 %v2109, %v2775
      %v2864 = vadd.f32 %v2110, %v2780
      %v2865 = vadd.f32 %v2111, %v2783
      %v2866 = vadd.f32 %v2112, %v2788
      %v2867 = vadd.f32 %v2113, %v2791
      %v2868 = vadd.f32 %v2114, %v2796
      %v2869 = vadd.f32 %v2115, %v2799
      %v2870 = vadd.f32 %v2116, %v2804
      %v2871 = vadd.f32 %v2117, %v2807
      %v2872 = vadd.f32 %v2118, %v2812
      %v2873 = vadd.f32 %v2119, %v2815
      %v2874 = vadd.f32 %v2120, %v2820
      %v2875 = vadd.f32 %v2121, %v2823
      %v2876 = vadd.f32 %v2122, %v2828
      %v2877 = vadd.f32 %v2123, %v2831
      %v2878 = vadd.f32 %v2124, %v2836
      %v2879 = vadd.f32 %v2125, %v2839
      %v2880 = vadd.f32 %v2126, %v2844
      %v2881 = vadd.f32 %v2127, %v2847
      %v2882 = vld [vmem:[%s1741] sm:$0xe]
      %v2883 = vld [vmem:[%s1741 + $0xc] sm:$0xe]
      %v2884 = vld [vmem:[%s1741 + $0x18] sm:$0xe]
      %v2885 = vld [vmem:[%s1741 + $0x24] sm:$0xe]
      %v2886 = vld [vmem:[%s1741 + $0x30] sm:$0xe]
      %v2887 = vld [vmem:[%s1741 + $0x3c] sm:$0xe]
      %v2888 = vld [vmem:[%s1741 + $0x48] sm:$0xe]
      %v2889 = vld [vmem:[%s1741 + $0x54] sm:$0xe]
      %v2890 = vld [vmem:[%s1741 + $0x60] sm:$0xe]
      %v2891 = vld [vmem:[%s1741 + $0x6c] sm:$0xe]
      %v2892 = vld [vmem:[%s1741 + $0x78] sm:$0xe]
      %v2893 = vld [vmem:[%s1741 + $0x84] sm:$0xe]
      %v2894 = vld [vmem:[%s1741 + $0x90] sm:$0xe]
      %v2895 = vld [vmem:[%s1741 + $0x9c] sm:$0xe]
      %v2896 = vld [vmem:[%s1741 + $0xa8] sm:$0xe]
      %v2897 = vld [vmem:[%s1741 + $0xb4] sm:$0xe]
      %v2946 = vrot.slane %v2882, 5
      %v2947 = vrot.slane %v2946, 4
      %v2948 = vrot.slane %v2129, 5
      %v2949 = vsel %vm1306, %v2947, %v2948
      %v2950 = vrot.slane %v2948, 4
      %v2951 = vrot.slane %v2130, 5
      %v2952 = vsel %vm1306, %v2950, %v2951
      %v2953 = vrot.slane %v2883, 5
      %v2954 = vrot.slane %v2953, 4
      %v2955 = vrot.slane %v2132, 5
      %v2956 = vsel %vm1306, %v2954, %v2955
      %v2957 = vrot.slane %v2955, 4
      %v2958 = vrot.slane %v2133, 5
      %v2959 = vsel %vm1306, %v2957, %v2958
      %v2960 = vrot.slane %v2884, 5
      %v2961 = vrot.slane %v2960, 4
      %v2962 = vrot.slane %v2135, 5
      %v2963 = vsel %vm1306, %v2961, %v2962
      %v2964 = vrot.slane %v2962, 4
      %v2965 = vrot.slane %v2136, 5
      %v2966 = vsel %vm1306, %v2964, %v2965
      %v2967 = vrot.slane %v2885, 5
      %v2968 = vrot.slane %v2967, 4
      %v2969 = vrot.slane %v2138, 5
      %v2970 = vsel %vm1306, %v2968, %v2969
      %v2971 = vrot.slane %v2969, 4
      %v2972 = vrot.slane %v2139, 5
      %v2973 = vsel %vm1306, %v2971, %v2972
      %v2974 = vrot.slane %v2886, 5
      %v2975 = vrot.slane %v2974, 4
      %v2976 = vrot.slane %v2141, 5
      %v2977 = vsel %vm1306, %v2975, %v2976
      %v2978 = vrot.slane %v2976, 4
      %v2979 = vrot.slane %v2142, 5
      %v2980 = vsel %vm1306, %v2978, %v2979
      %v2981 = vrot.slane %v2887, 5
      %v2982 = vrot.slane %v2981, 4
      %v2983 = vrot.slane %v2144, 5
      %v2984 = vsel %vm1306, %v2982, %v2983
      %v2985 = vrot.slane %v2983, 4
      %v2986 = vrot.slane %v2145, 5
      %v2987 = vsel %vm1306, %v2985, %v2986
      %v2988 = vrot.slane %v2888, 5
      %v2989 = vrot.slane %v2988, 4
      %v2990 = vrot.slane %v2147, 5
      %v2991 = vsel %vm1306, %v2989, %v2990
      %v2992 = vrot.slane %v2990, 4
      %v2993 = vrot.slane %v2148, 5
      %v2994 = vsel %vm1306, %v2992, %v2993
      %v2995 = vrot.slane %v2889, 5
      %v2996 = vrot.slane %v2995, 4
      %v2997 = vrot.slane %v2150, 5
      %v2998 = vsel %vm1306, %v2996, %v2997
      %v2999 = vrot.slane %v2997, 4
      %v3000 = vrot.slane %v2151, 5
      %v3001 = vsel %vm1306, %v2999, %v3000
      %v3002 = vrot.slane %v2890, 5
      %v3003 = vrot.slane %v3002, 4
      %v3004 = vrot.slane %v2153, 5
      %v3005 = vsel %vm1306, %v3003, %v3004
      %v3006 = vrot.slane %v3004, 4
      %v3007 = vrot.slane %v2154, 5
      %v3008 = vsel %vm1306, %v3006, %v3007
      %v3009 = vrot.slane %v2891, 5
      %v3010 = vrot.slane %v3009, 4
      %v3011 = vrot.slane %v2156, 5
      %v3012 = vsel %vm1306, %v3010, %v3011
      %v3013 = vrot.slane %v3011, 4
      %v3014 = vrot.slane %v2157, 5
      %v3015 = vsel %vm1306, %v3013, %v3014
      %v3016 = vrot.slane %v2892, 5
      %v3017 = vrot.slane %v3016, 4
      %v3018 = vrot.slane %v2159, 5
      %v3019 = vsel %vm1306, %v3017, %v3018
      %v3020 = vrot.slane %v3018, 4
      %v3021 = vrot.slane %v2160, 5
      %v3022 = vsel %vm1306, %v3020, %v3021
      %v3023 = vrot.slane %v2893, 5
      %v3024 = vrot.slane %v3023, 4
      %v3025 = vrot.slane %v2162, 5
      %v3026 = vsel %vm1306, %v3024, %v3025
      %v3027 = vrot.slane %v3025, 4
      %v3028 = vrot.slane %v2163, 5
      %v3029 = vsel %vm1306, %v3027, %v3028
      %v3030 = vrot.slane %v2894, 5
      %v3031 = vrot.slane %v3030, 4
      %v3032 = vrot.slane %v2165, 5
      %v3033 = vsel %vm1306, %v3031, %v3032
      %v3034 = vrot.slane %v3032, 4
      %v3035 = vrot.slane %v2166, 5
      %v3036 = vsel %vm1306, %v3034, %v3035
      %v3037 = vrot.slane %v2895, 5
      %v3038 = vrot.slane %v3037, 4
      %v3039 = vrot.slane %v2168, 5
      %v3040 = vsel %vm1306, %v3038, %v3039
      %v3041 = vrot.slane %v3039, 4
      %v3042 = vrot.slane %v2169, 5
      %v3043 = vsel %vm1306, %v3041, %v3042
      %v3044 = vrot.slane %v2896, 5
      %v3045 = vrot.slane %v3044, 4
      %v3046 = vrot.slane %v2171, 5
      %v3047 = vsel %vm1306, %v3045, %v3046
      %v3048 = vrot.slane %v3046, 4
      %v3049 = vrot.slane %v2172, 5
      %v3050 = vsel %vm1306, %v3048, %v3049
      %v3051 = vrot.slane %v2897, 5
      %v3052 = vrot.slane %v3051, 4
      %v3053 = vrot.slane %v2174, 5
      %v3054 = vsel %vm1306, %v3052, %v3053
      %v3055 = vrot.slane %v3053, 4
      %v3056 = vrot.slane %v2175, 5
      %v3057 = vsel %vm1306, %v3055, %v3056
      %s3058 = scalar_lea.vmem %s1, 320
      %v3059 = vld [vmem:[%s3058] sm:$0xf]
      %v3060 = vld [vmem:[%s3058 + $0x4] sm:$0xf]
      %v3061 = vld [vmem:[%s3058 + $0x8] sm:$0xf]
      %v3062 = vld [vmem:[%s3058 + $0xc] sm:$0xf]
      %v3063 = vld [vmem:[%s3058 + $0x10] sm:$0xf]
      %v3064 = vld [vmem:[%s3058 + $0x14] sm:$0xf]
      %v3065 = vld [vmem:[%s3058 + $0x18] sm:$0xf]
      %v3066 = vld [vmem:[%s3058 + $0x1c] sm:$0xf]
      %v3067 = vld [vmem:[%s3058 + $0x20] sm:$0xf]
      %v3068 = vld [vmem:[%s3058 + $0x24] sm:$0xf]
      %v3069 = vld [vmem:[%s3058 + $0x28] sm:$0xf]
      %v3070 = vld [vmem:[%s3058 + $0x2c] sm:$0xf]
      %v3071 = vld [vmem:[%s3058 + $0x30] sm:$0xf]
      %v3072 = vld [vmem:[%s3058 + $0x34] sm:$0xf]
      %v3073 = vld [vmem:[%s3058 + $0x38] sm:$0xf]
      %v3074 = vld [vmem:[%s3058 + $0x3c] sm:$0xf]
      %v3075 = vunpack.c.l.b16 %v2949
      %v3076 = vunpack.c.l.b16 %v2952
      %v3077 = vunpack.c.l.b16 %v2956
      %v3078 = vunpack.c.l.b16 %v2959
      %v3079 = vunpack.c.l.b16 %v2963
      %v3080 = vunpack.c.l.b16 %v2966
      %v3081 = vunpack.c.l.b16 %v2970
      %v3082 = vunpack.c.l.b16 %v2973
      %v3083 = vunpack.c.l.b16 %v2977
      %v3084 = vunpack.c.l.b16 %v2980
      %v3085 = vunpack.c.l.b16 %v2984
      %v3086 = vunpack.c.l.b16 %v2987
      %v3087 = vunpack.c.l.b16 %v2991
      %v3088 = vunpack.c.l.b16 %v2994
      %v3089 = vunpack.c.l.b16 %v2998
      %v3090 = vunpack.c.l.b16 %v3001
      %v3091 = vunpack.c.l.b16 %v3005
      %v3092 = vunpack.c.l.b16 %v3008
      %v3093 = vunpack.c.l.b16 %v3012
      %v3094 = vunpack.c.l.b16 %v3015
      %v3095 = vunpack.c.l.b16 %v3019
      %v3096 = vunpack.c.l.b16 %v3022
      %v3097 = vunpack.c.l.b16 %v3026
      %v3098 = vunpack.c.l.b16 %v3029
      %v3099 = vunpack.c.l.b16 %v3033
      %v3100 = vunpack.c.l.b16 %v3036
      %v3101 = vunpack.c.l.b16 %v3040
      %v3102 = vunpack.c.l.b16 %v3043
      %v3103 = vunpack.c.l.b16 %v3047
      %v3104 = vunpack.c.l.b16 %v3050
      %v3105 = vunpack.c.l.b16 %v3054
      %v3106 = vunpack.c.l.b16 %v3057
      %v3107 = vpack.c.b16 %v3076, %v3075
      %v3108 = vpack.c.b16 %v3078, %v3077
      %v3109 = vpack.c.b16 %v3080, %v3079
      %v3110 = vpack.c.b16 %v3082, %v3081
      %v3111 = vpack.c.b16 %v3084, %v3083
      %v3112 = vpack.c.b16 %v3086, %v3085
      %v3113 = vpack.c.b16 %v3088, %v3087
      %v3114 = vpack.c.b16 %v3090, %v3089
      %v3115 = vpack.c.b16 %v3092, %v3091
      %v3116 = vpack.c.b16 %v3094, %v3093
      %v3117 = vpack.c.b16 %v3096, %v3095
      %v3118 = vpack.c.b16 %v3098, %v3097
      %v3119 = vpack.c.b16 %v3100, %v3099
      %v3120 = vpack.c.b16 %v3102, %v3101
      %v3121 = vpack.c.b16 %v3104, %v3103
      %v3122 = vpack.c.b16 %v3106, %v3105
      %v3155 = vunpack.c.l.b16 %v3059
      %v3156 = vunpack.c.l.b16 %v3060
      %v3157 = vunpack.c.l.b16 %v3061
      %v3158 = vunpack.c.l.b16 %v3062
      %v3159 = vunpack.c.l.b16 %v3063
      %v3160 = vunpack.c.l.b16 %v3064
      %v3161 = vunpack.c.l.b16 %v3065
      %v3162 = vunpack.c.l.b16 %v3066
      %v3163 = vunpack.c.l.b16 %v3067
      %v3164 = vunpack.c.l.b16 %v3068
      %v3165 = vunpack.c.l.b16 %v3069
      %v3166 = vunpack.c.l.b16 %v3070
      %v3167 = vunpack.c.l.b16 %v3071
      %v3168 = vunpack.c.l.b16 %v3072
      %v3169 = vunpack.c.l.b16 %v3073
      %v3170 = vunpack.c.l.b16 %v3074
      %v3171 = vpack.c.b16 %v3156, %v3155
      %v3172 = vpack.c.b16 %v3158, %v3157
      %v3173 = vpack.c.b16 %v3160, %v3159
      %v3174 = vpack.c.b16 %v3162, %v3161
      %v3175 = vpack.c.b16 %v3164, %v3163
      %v3176 = vpack.c.b16 %v3166, %v3165
      %v3177 = vpack.c.b16 %v3168, %v3167
      %v3178 = vpack.c.b16 %v3170, %v3169
      %3187 = vmatprep.subr.bf16.mxu0 0
      %3188 = vmatpush1.bf16.msra.mxu0 %v3171
      %3189 = vmatprep.subr.bf16.mxu0 0
      %3190 = vmatpush1.bf16.msra.mxu0 %v3172
      %3191 = vmatprep.subr.bf16.mxu0 0
      %3192 = vmatpush1.bf16.msra.mxu0 %v3173
      %3193 = vmatprep.subr.bf16.mxu0 0
      %3194 = vmatpush1.bf16.msra.mxu0 %v3174
      %3195 = vmatprep.subr.bf16.mxu0 0
      %3196 = vmatpush1.bf16.msra.mxu0 %v3175
      %3197 = vmatprep.subr.bf16.mxu0 0
      %3198 = vmatpush1.bf16.msra.mxu0 %v3176
      %3199 = vmatprep.subr.bf16.mxu0 0
      %3200 = vmatpush1.bf16.msra.mxu0 %v3177
      %3201 = vmatprep.subr.bf16.mxu0 0
      %3202 = vmatpush1.bf16.msra.mxu0 %v3178
      %3203 = vmatprep.subr.bf16.mxu0 0
      %3204 = vmatpush1.bf16.msra.mxu0 0
      %3205 = vmatprep.subr.bf16.mxu0 0
      %3206 = vmatpush1.bf16.msra.mxu0 0
      %3207 = vmatprep.subr.bf16.mxu0 0
      %3208 = vmatpush1.bf16.msra.mxu0 0
      %3209 = vmatprep.subr.bf16.mxu0 0
      %3210 = vmatpush1.bf16.msra.mxu0 0
      %3211 = vmatprep.subr.bf16.mxu0 0
      %3212 = vmatpush1.bf16.msra.mxu0 0
      %3213 = vmatprep.subr.bf16.mxu0 0
      %3214 = vmatpush1.bf16.msra.mxu0 0
      %3215 = vmatprep.subr.bf16.mxu0 0
      %3216 = vmatpush1.bf16.msra.mxu0 0
      %3217 = vmatprep.subr.bf16.mxu0 0
      %3218 = vmatpush1.bf16.msra.mxu0 0
      %3219 = vmatprep.mubr.bf16.mxu0 0
      %3220 = vmatmul.mubr.bf16.gmra.mrb[0].mxu0 %v3107
      %v3221 = vpop.f32.mrb[0].mxu0
      %v3222 = vadd.f32 0.0, %v3221
      %v3223 = vpop.f32.mrb[0].mxu0
      %v3224 = vpop.f32.mrb[0].mxu0
      %v3225 = vadd.f32 0.0, %v3224
      %v3226 = vpop.f32.mrb[0].mxu0
      %3227 = vmatprep.mubr.bf16.mxu0 0
      %3228 = vmatmul.mubr.bf16.gmra.mrb[0].mxu0 %v3108
      %v3229 = vpop.f32.mrb[0].mxu0
      %v3230 = vadd.f32 0.0, %v3229
      %v3231 = vpop.f32.mrb[0].mxu0
      %v3232 = vpop.f32.mrb[0].mxu0
      %v3233 = vadd.f32 0.0, %v3232
      %v3234 = vpop.f32.mrb[0].mxu0
      %3235 = vmatprep.mubr.bf16.mxu0 0
      %3236 = vmatmul.mubr.bf16.gmra.mrb[0].mxu0 %v3109
      %v3237 = vpop.f32.mrb[0].mxu0
      %v3238 = vadd.f32 0.0, %v3237
      %v3239 = vpop.f32.mrb[0].mxu0
      %v3240 = vpop.f32.mrb[0].mxu0
      %v3241 = vadd.f32 0.0, %v3240
      %v3242 = vpop.f32.mrb[0].mxu0
      %3243 = vmatprep.mubr.bf16.mxu0 0
      %3244 = vmatmul.mubr.bf16.gmra.mrb[0].mxu0 %v3110
      %v3245 = vpop.f32.mrb[0].mxu0
      %v3246 = vadd.f32 0.0, %v3245
      %v3247 = vpop.f32.mrb[0].mxu0
      %v3248 = vpop.f32.mrb[0].mxu0
      %v3249 = vadd.f32 0.0, %v3248
      %v3250 = vpop.f32.mrb[0].mxu0
      %3251 = vmatprep.mubr.bf16.mxu0 0
      %3252 = vmatmul.mubr.bf16.gmra.mrb[0].mxu0 %v3111
      %v3253 = vpop.f32.mrb[0].mxu0
      %v3254 = vadd.f32 0.0, %v3253
      %v3255 = vpop.f32.mrb[0].mxu0
      %v3256 = vpop.f32.mrb[0].mxu0
      %v3257 = vadd.f32 0.0, %v3256
      %v3258 = vpop.f32.mrb[0].mxu0
      %3259 = vmatprep.mubr.bf16.mxu0 0
      %3260 = vmatmul.mubr.bf16.gmra.mrb[0].mxu0 %v3112
      %v3261 = vpop.f32.mrb[0].mxu0
      %v3262 = vadd.f32 0.0, %v3261
      %v3263 = vpop.f32.mrb[0].mxu0
      %v3264 = vpop.f32.mrb[0].mxu0
      %v3265 = vadd.f32 0.0, %v3264
      %v3266 = vpop.f32.mrb[0].mxu0
      %3267 = vmatprep.mubr.bf16.mxu0 0
      %3268 = vmatmul.mubr.bf16.gmra.mrb[0].mxu0 %v3113
      %v3269 = vpop.f32.mrb[0].mxu0
      %v3270 = vadd.f32 0.0, %v3269
      %v3271 = vpop.f32.mrb[0].mxu0
      %v3272 = vpop.f32.mrb[0].mxu0
      %v3273 = vadd.f32 0.0, %v3272
      %v3274 = vpop.f32.mrb[0].mxu0
      %3275 = vmatprep.mubr.bf16.mxu0 0
      %3276 = vmatmul.mubr.bf16.gmra.mrb[0].mxu0 %v3114
      %v3277 = vpop.f32.mrb[0].mxu0
      %v3278 = vadd.f32 0.0, %v3277
      %v3279 = vpop.f32.mrb[0].mxu0
      %v3280 = vpop.f32.mrb[0].mxu0
      %v3281 = vadd.f32 0.0, %v3280
      %v3282 = vpop.f32.mrb[0].mxu0
      %3283 = vmatprep.mubr.bf16.mxu0 0
      %3284 = vmatmul.mubr.bf16.gmra.mrb[0].mxu0 %v3115
      %v3285 = vpop.f32.mrb[0].mxu0
      %v3286 = vadd.f32 0.0, %v3285
      %v3287 = vpop.f32.mrb[0].mxu0
      %v3288 = vpop.f32.mrb[0].mxu0
      %v3289 = vadd.f32 0.0, %v3288
      %v3290 = vpop.f32.mrb[0].mxu0
      %3291 = vmatprep.mubr.bf16.mxu0 0
      %3292 = vmatmul.mubr.bf16.gmra.mrb[0].mxu0 %v3116
      %v3293 = vpop.f32.mrb[0].mxu0
      %v3294 = vadd.f32 0.0, %v3293
      %v3295 = vpop.f32.mrb[0].mxu0
      %v3296 = vpop.f32.mrb[0].mxu0
      %v3297 = vadd.f32 0.0, %v3296
      %v3298 = vpop.f32.mrb[0].mxu0
      %3299 = vmatprep.mubr.bf16.mxu0 0
      %3300 = vmatmul.mubr.bf16.gmra.mrb[0].mxu0 %v3117
      %v3301 = vpop.f32.mrb[0].mxu0
      %v3302 = vadd.f32 0.0, %v3301
      %v3303 = vpop.f32.mrb[0].mxu0
      %v3304 = vpop.f32.mrb[0].mxu0
      %v3305 = vadd.f32 0.0, %v3304
      %v3306 = vpop.f32.mrb[0].mxu0
      %3307 = vmatprep.mubr.bf16.mxu0 0
      %3308 = vmatmul.mubr.bf16.gmra.mrb[0].mxu0 %v3118
      %v3309 = vpop.f32.mrb[0].mxu0
      %v3310 = vadd.f32 0.0, %v3309
      %v3311 = vpop.f32.mrb[0].mxu0
      %v3312 = vpop.f32.mrb[0].mxu0
      %v3313 = vadd.f32 0.0, %v3312
      %v3314 = vpop.f32.mrb[0].mxu0
      %3315 = vmatprep.mubr.bf16.mxu0 0
      %3316 = vmatmul.mubr.bf16.gmra.mrb[0].mxu0 %v3119
      %v3317 = vpop.f32.mrb[0].mxu0
      %v3318 = vadd.f32 0.0, %v3317
      %v3319 = vpop.f32.mrb[0].mxu0
      %v3320 = vpop.f32.mrb[0].mxu0
      %v3321 = vadd.f32 0.0, %v3320
      %v3322 = vpop.f32.mrb[0].mxu0
      %3323 = vmatprep.mubr.bf16.mxu0 0
      %3324 = vmatmul.mubr.bf16.gmra.mrb[0].mxu0 %v3120
      %v3325 = vpop.f32.mrb[0].mxu0
      %v3326 = vadd.f32 0.0, %v3325
      %v3327 = vpop.f32.mrb[0].mxu0
      %v3328 = vpop.f32.mrb[0].mxu0
      %v3329 = vadd.f32 0.0, %v3328
      %v3330 = vpop.f32.mrb[0].mxu0
      %3331 = vmatprep.mubr.bf16.mxu0 0
      %3332 = vmatmul.mubr.bf16.gmra.mrb[0].mxu0 %v3121
      %v3333 = vpop.f32.mrb[0].mxu0
      %v3334 = vadd.f32 0.0, %v3333
      %v3335 = vpop.f32.mrb[0].mxu0
      %v3336 = vpop.f32.mrb[0].mxu0
      %v3337 = vadd.f32 0.0, %v3336
      %v3338 = vpop.f32.mrb[0].mxu0
      %3339 = vmatprep.mubr.bf16.mxu0 0
      %3340 = vmatmul.mubr.bf16.gmra.mrb[0].mxu0 %v3122
      %v3341 = vpop.f32.mrb[0].mxu0
      %v3342 = vadd.f32 0.0, %v3341
      %v3343 = vpop.f32.mrb[0].mxu0
      %v3344 = vpop.f32.mrb[0].mxu0
      %v3345 = vadd.f32 0.0, %v3344
      %v3346 = vpop.f32.mrb[0].mxu0
      %3347 = vdwg.mxu0
      %v3348 = vadd.f32 %v2850, %v3222
      %v3349 = vadd.f32 %v2851, %v3225
      %v3350 = vadd.f32 %v2852, %v3230
      %v3351 = vadd.f32 %v2853, %v3233
      %v3352 = vadd.f32 %v2854, %v3238
      %v3353 = vadd.f32 %v2855, %v3241
      %v3354 = vadd.f32 %v2856, %v3246
      %v3355 = vadd.f32 %v2857, %v3249
      %v3356 = vadd.f32 %v2858, %v3254
      %v3357 = vadd.f32 %v2859, %v3257
      %v3358 = vadd.f32 %v2860, %v3262
      %v3359 = vadd.f32 %v2861, %v3265
      %v3360 = vadd.f32 %v2862, %v3270
      %v3361 = vadd.f32 %v2863, %v3273
      %v3362 = vadd.f32 %v2864, %v3278
      %v3363 = vadd.f32 %v2865, %v3281
      %v3364 = vadd.f32 %v2866, %v3286
      %v3365 = vadd.f32 %v2867, %v3289
      %v3366 = vadd.f32 %v2868, %v3294
      %v3367 = vadd.f32 %v2869, %v3297
      %v3368 = vadd.f32 %v2870, %v3302
      %v3369 = vadd.f32 %v2871, %v3305
      %v3370 = vadd.f32 %v2872, %v3310
      %v3371 = vadd.f32 %v2873, %v3313
      %v3372 = vadd.f32 %v2874, %v3318
      %v3373 = vadd.f32 %v2875, %v3321
      %v3374 = vadd.f32 %v2876, %v3326
      %v3375 = vadd.f32 %v2877, %v3329
      %v3376 = vadd.f32 %v2878, %v3334
      %v3377 = vadd.f32 %v2879, %v3337
      %v3378 = vadd.f32 %v2880, %v3342
      %v3379 = vadd.f32 %v2881, %v3345
      %s3380 = scalar_lea.vmem %s199, 24
      %v3381 = vld [vmem:[%s3380] sm:$0xf]
      %v3382 = vld [vmem:[%s3380 + $0x4] sm:$0xf]
      %v3383 = vld [vmem:[%s3380 + $0xc] sm:$0xf]
      %v3384 = vld [vmem:[%s3380 + $0x10] sm:$0xf]
      %v3385 = vld [vmem:[%s3380 + $0x18] sm:$0xf]
      %v3386 = vld [vmem:[%s3380 + $0x1c] sm:$0xf]
      %v3387 = vld [vmem:[%s3380 + $0x24] sm:$0xf]
      %v3388 = vld [vmem:[%s3380 + $0x28] sm:$0xf]
      %v3389 = vld [vmem:[%s3380 + $0x30] sm:$0xf]
      %v3390 = vld [vmem:[%s3380 + $0x34] sm:$0xf]
      %v3391 = vld [vmem:[%s3380 + $0x3c] sm:$0xf]
      %v3392 = vld [vmem:[%s3380 + $0x40] sm:$0xf]
      %v3393 = vld [vmem:[%s3380 + $0x48] sm:$0xf]
      %v3394 = vld [vmem:[%s3380 + $0x4c] sm:$0xf]
      %v3395 = vld [vmem:[%s3380 + $0x54] sm:$0xf]
      %v3396 = vld [vmem:[%s3380 + $0x58] sm:$0xf]
      %v3397 = vld [vmem:[%s3380 + $0x60] sm:$0xf]
      %v3398 = vld [vmem:[%s3380 + $0x64] sm:$0xf]
      %v3399 = vld [vmem:[%s3380 + $0x6c] sm:$0xf]
      %v3400 = vld [vmem:[%s3380 + $0x70] sm:$0xf]
      %v3401 = vld [vmem:[%s3380 + $0x78] sm:$0xf]
      %v3402 = vld [vmem:[%s3380 + $0x7c] sm:$0xf]
      %v3403 = vld [vmem:[%s3380 + $0x84] sm:$0xf]
      %v3404 = vld [vmem:[%s3380 + $0x88] sm:$0xf]
      %v3405 = vld [vmem:[%s3380 + $0x90] sm:$0xf]
      %v3406 = vld [vmem:[%s3380 + $0x94] sm:$0xf]
      %v3407 = vld [vmem:[%s3380 + $0x9c] sm:$0xf]
      %v3408 = vld [vmem:[%s3380 + $0xa0] sm:$0xf]
      %v3409 = vld [vmem:[%s3380 + $0xa8] sm:$0xf]
      %v3410 = vld [vmem:[%s3380 + $0xac] sm:$0xf]
      %v3411 = vld [vmem:[%s3380 + $0xb4] sm:$0xf]
      %v3412 = vld [vmem:[%s3380 + $0xb8] sm:$0xf]
      %s3413 = scalar_lea.vmem %s1, 384
      %v3414 = vld [vmem:[%s3413] sm:$0xf]
      %v3415 = vld [vmem:[%s3413 + $0x4] sm:$0xf]
      %v3416 = vld [vmem:[%s3413 + $0x8] sm:$0xf]
      %v3417 = vld [vmem:[%s3413 + $0xc] sm:$0xf]
      %v3418 = vld [vmem:[%s3413 + $0x10] sm:$0xf]
      %v3419 = vld [vmem:[%s3413 + $0x14] sm:$0xf]
      %v3420 = vld [vmem:[%s3413 + $0x18] sm:$0xf]
      %v3421 = vld [vmem:[%s3413 + $0x1c] sm:$0xf]
      %v3422 = vld [vmem:[%s3413 + $0x20] sm:$0xf]
      %v3423 = vld [vmem:[%s3413 + $0x24] sm:$0xf]
      %v3424 = vld [vmem:[%s3413 + $0x28] sm:$0xf]
      %v3425 = vld [vmem:[%s3413 + $0x2c] sm:$0xf]
      %v3426 = vld [vmem:[%s3413 + $0x30] sm:$0xf]
      %v3427 = vld [vmem:[%s3413 + $0x34] sm:$0xf]
      %v3428 = vld [vmem:[%s3413 + $0x38] sm:$0xf]
      %v3429 = vld [vmem:[%s3413 + $0x3c] sm:$0xf]
      %v3462 = vunpack.c.l.b16 %v3381
      %v3463 = vunpack.c.l.b16 %v3382
      %v3464 = vunpack.c.l.b16 %v3383
      %v3465 = vunpack.c.l.b16 %v3384
      %v3466 = vunpack.c.l.b16 %v3385
      %v3467 = vunpack.c.l.b16 %v3386
      %v3468 = vunpack.c.l.b16 %v3387
      %v3469 = vunpack.c.l.b16 %v3388
      %v3470 = vunpack.c.l.b16 %v3389
      %v3471 = vunpack.c.l.b16 %v3390
      %v3472 = vunpack.c.l.b16 %v3391
      %v3473 = vunpack.c.l.b16 %v3392
      %v3474 = vunpack.c.l.b16 %v3393
      %v3475 = vunpack.c.l.b16 %v3394
      %v3476 = vunpack.c.l.b16 %v3395
      %v3477 = vunpack.c.l.b16 %v3396
      %v3478 = vunpack.c.l.b16 %v3397
      %v3479 = vunpack.c.l.b16 %v3398
      %v3480 = vunpack.c.l.b16 %v3399
      %v3481 = vunpack.c.l.b16 %v3400
      %v3482 = vunpack.c.l.b16 %v3401
      %v3483 = vunpack.c.l.b16 %v3402
      %v3484 = vunpack.c.l.b16 %v3403
      %v3485 = vunpack.c.l.b16 %v3404
      %v3486 = vunpack.c.l.b16 %v3405
      %v3487 = vunpack.c.l.b16 %v3406
      %v3488 = vunpack.c.l.b16 %v3407
      %v3489 = vunpack.c.l.b16 %v3408
      %v3490 = vunpack.c.l.b16 %v3409
      %v3491 = vunpack.c.l.b16 %v3410
      %v3492 = vunpack.c.l.b16 %v3411
      %v3493 = vunpack.c.l.b16 %v3412
      %v3494 = vpack.c.b16 %v3463, %v3462
      %v3495 = vpack.c.b16 %v3465, %v3464
      %v3496 = vpack.c.b16 %v3467, %v3466
      %v3497 = vpack.c.b16 %v3469, %v3468
      %v3498 = vpack.c.b16 %v3471, %v3470
      %v3499 = vpack.c.b16 %v3473, %v3472
      %v3500 = vpack.c.b16 %v3475, %v3474
      %v3501 = vpack.c.b16 %v3477, %v3476
      %v3502 = vpack.c.b16 %v3479, %v3478
      %v3503 = vpack.c.b16 %v3481, %v3480
      %v3504 = vpack.c.b16 %v3483, %v3482
      %v3505 = vpack.c.b16 %v3485, %v3484
      %v3506 = vpack.c.b16 %v3487, %v3486
      %v3507 = vpack.c.b16 %v3489, %v3488
      %v3508 = vpack.c.b16 %v3491, %v3490
      %v3509 = vpack.c.b16 %v3493, %v3492
      %v3542 = vunpack.c.l.b16 %v3414
      %v3543 = vunpack.c.l.b16 %v3415
      %v3544 = vunpack.c.l.b16 %v3416
      %v3545 = vunpack.c.l.b16 %v3417
      %v3546 = vunpack.c.l.b16 %v3418
      %v3547 = vunpack.c.l.b16 %v3419
      %v3548 = vunpack.c.l.b16 %v3420
      %v3549 = vunpack.c.l.b16 %v3421
      %v3550 = vunpack.c.l.b16 %v3422
      %v3551 = vunpack.c.l.b16 %v3423
      %v3552 = vunpack.c.l.b16 %v3424
      %v3553 = vunpack.c.l.b16 %v3425
      %v3554 = vunpack.c.l.b16 %v3426
      %v3555 = vunpack.c.l.b16 %v3427
      %v3556 = vunpack.c.l.b16 %v3428
      %v3557 = vunpack.c.l.b16 %v3429
      %v3558 = vpack.c.b16 %v3543, %v3542
      %v3559 = vpack.c.b16 %v3545, %v3544
      %v3560 = vpack.c.b16 %v3547, %v3546
      %v3561 = vpack.c.b16 %v3549, %v3548
      %v3562 = vpack.c.b16 %v3551, %v3550
      %v3563 = vpack.c.b16 %v3553, %v3552
      %v3564 = vpack.c.b16 %v3555, %v3554
      %v3565 = vpack.c.b16 %v3557, %v3556
      %3574 = vmatprep.subr.bf16.mxu0 0
      %3575 = vmatpush1.bf16.msra.mxu0 %v3558
      %3576 = vmatprep.subr.bf16.mxu0 0
      %3577 = vmatpush1.bf16.msra.mxu0 %v3559
      %3578 = vmatprep.subr.bf16.mxu0 0
      %3579 = vmatpush1.bf16.msra.mxu0 %v3560
      %3580 = vmatprep.subr.bf16.mxu0 0
      %3581 = vmatpush1.bf16.msra.mxu0 %v3561
      %3582 = vmatprep.subr.bf16.mxu0 0
      %3583 = vmatpush1.bf16.msra.mxu0 %v3562
      %3584 = vmatprep.subr.bf16.mxu0 0
      %3585 = vmatpush1.bf16.msra.mxu0 %v3563
      %3586 = vmatprep.subr.bf16.mxu0 0
      %3587 = vmatpush1.bf16.msra.mxu0 %v3564
      %3588 = vmatprep.subr.bf16.mxu0 0
      %3589 = vmatpush1.bf16.msra.mxu0 %v3565
      %3590 = vmatprep.subr.bf16.mxu0 0
      %3591 = vmatpush1.bf16.msra.mxu0 0
      %3592 = vmatprep.subr.bf16.mxu0 0
      %3593 = vmatpush1.bf16.msra.mxu0 0
      %3594 = vmatprep.subr.bf16.mxu0 0
      %3595 = vmatpush1.bf16.msra.mxu0 0
      %3596 = vmatprep.subr.bf16.mxu0 0
      %3597 = vmatpush1.bf16.msra.mxu0 0
      %3598 = vmatprep.subr.bf16.mxu0 0
      %3599 = vmatpush1.bf16.msra.mxu0 0
      %3600 = vmatprep.subr.bf16.mxu0 0
      %3601 = vmatpush1.bf16.msra.mxu0 0
      %3602 = vmatprep.subr.bf16.mxu0 0
      %3603 = vmatpush1.bf16.msra.mxu0 0
      %3604 = vmatprep.subr.bf16.mxu0 0
      %3605 = vmatpush1.bf16.msra.mxu0 0
      %3606 = vmatprep.mubr.bf16.mxu0 0
      %3607 = vmatmul.mubr.bf16.gmra.mrb[0].mxu0 %v3494
      %v3608 = vpop.f32.mrb[0].mxu0
      %v3609 = vadd.f32 0.0, %v3608
      %v3610 = vpop.f32.mrb[0].mxu0
      %v3611 = vpop.f32.mrb[0].mxu0
      %v3612 = vadd.f32 0.0, %v3611
      %v3613 = vpop.f32.mrb[0].mxu0
      %3614 = vmatprep.mubr.bf16.mxu0 0
      %3615 = vmatmul.mubr.bf16.gmra.mrb[0].mxu0 %v3495
      %v3616 = vpop.f32.mrb[0].mxu0
      %v3617 = vadd.f32 0.0, %v3616
      %v3618 = vpop.f32.mrb[0].mxu0
      %v3619 = vpop.f32.mrb[0].mxu0
      %v3620 = vadd.f32 0.0, %v3619
      %v3621 = vpop.f32.mrb[0].mxu0
      %3622 = vmatprep.mubr.bf16.mxu0 0
      %3623 = vmatmul.mubr.bf16.gmra.mrb[0].mxu0 %v3496
      %v3624 = vpop.f32.mrb[0].mxu0
      %v3625 = vadd.f32 0.0, %v3624
      %v3626 = vpop.f32.mrb[0].mxu0
      %v3627 = vpop.f32.mrb[0].mxu0
      %v3628 = vadd.f32 0.0, %v3627
      %v3629 = vpop.f32.mrb[0].mxu0
      %3630 = vmatprep.mubr.bf16.mxu0 0
      %3631 = vmatmul.mubr.bf16.gmra.mrb[0].mxu0 %v3497
      %v3632 = vpop.f32.mrb[0].mxu0
      %v3633 = vadd.f32 0.0, %v3632
      %v3634 = vpop.f32.mrb[0].mxu0
      %v3635 = vpop.f32.mrb[0].mxu0
      %v3636 = vadd.f32 0.0, %v3635
      %v3637 = vpop.f32.mrb[0].mxu0
      %3638 = vmatprep.mubr.bf16.mxu0 0
      %3639 = vmatmul.mubr.bf16.gmra.mrb[0].mxu0 %v3498
      %v3640 = vpop.f32.mrb[0].mxu0
      %v3641 = vadd.f32 0.0, %v3640
      %v3642 = vpop.f32.mrb[0].mxu0
      %v3643 = vpop.f32.mrb[0].mxu0
      %v3644 = vadd.f32 0.0, %v3643
      %v3645 = vpop.f32.mrb[0].mxu0
      %3646 = vmatprep.mubr.bf16.mxu0 0
      %3647 = vmatmul.mubr.bf16.gmra.mrb[0].mxu0 %v3499
      %v3648 = vpop.f32.mrb[0].mxu0
      %v3649 = vadd.f32 0.0, %v3648
      %v3650 = vpop.f32.mrb[0].mxu0
      %v3651 = vpop.f32.mrb[0].mxu0
      %v3652 = vadd.f32 0.0, %v3651
      %v3653 = vpop.f32.mrb[0].mxu0
      %3654 = vmatprep.mubr.bf16.mxu0 0
      %3655 = vmatmul.mubr.bf16.gmra.mrb[0].mxu0 %v3500
      %v3656 = vpop.f32.mrb[0].mxu0
      %v3657 = vadd.f32 0.0, %v3656
      %v3658 = vpop.f32.mrb[0].mxu0
      %v3659 = vpop.f32.mrb[0].mxu0
      %v3660 = vadd.f32 0.0, %v3659
      %v3661 = vpop.f32.mrb[0].mxu0
      %3662 = vmatprep.mubr.bf16.mxu0 0
      %3663 = vmatmul.mubr.bf16.gmra.mrb[0].mxu0 %v3501
      %v3664 = vpop.f32.mrb[0].mxu0
      %v3665 = vadd.f32 0.0, %v3664
      %v3666 = vpop.f32.mrb[0].mxu0
      %v3667 = vpop.f32.mrb[0].mxu0
      %v3668 = vadd.f32 0.0, %v3667
      %v3669 = vpop.f32.mrb[0].mxu0
      %3670 = vmatprep.mubr.bf16.mxu0 0
      %3671 = vmatmul.mubr.bf16.gmra.mrb[0].mxu0 %v3502
      %v3672 = vpop.f32.mrb[0].mxu0
      %v3673 = vadd.f32 0.0, %v3672
      %v3674 = vpop.f32.mrb[0].mxu0
      %v3675 = vpop.f32.mrb[0].mxu0
      %v3676 = vadd.f32 0.0, %v3675
      %v3677 = vpop.f32.mrb[0].mxu0
      %3678 = vmatprep.mubr.bf16.mxu0 0
      %3679 = vmatmul.mubr.bf16.gmra.mrb[0].mxu0 %v3503
      %v3680 = vpop.f32.mrb[0].mxu0
      %v3681 = vadd.f32 0.0, %v3680
      %v3682 = vpop.f32.mrb[0].mxu0
      %v3683 = vpop.f32.mrb[0].mxu0
      %v3684 = vadd.f32 0.0, %v3683
      %v3685 = vpop.f32.mrb[0].mxu0
      %3686 = vmatprep.mubr.bf16.mxu0 0
      %3687 = vmatmul.mubr.bf16.gmra.mrb[0].mxu0 %v3504
      %v3688 = vpop.f32.mrb[0].mxu0
      %v3689 = vadd.f32 0.0, %v3688
      %v3690 = vpop.f32.mrb[0].mxu0
      %v3691 = vpop.f32.mrb[0].mxu0
      %v3692 = vadd.f32 0.0, %v3691
      %v3693 = vpop.f32.mrb[0].mxu0
      %3694 = vmatprep.mubr.bf16.mxu0 0
      %3695 = vmatmul.mubr.bf16.gmra.mrb[0].mxu0 %v3505
      %v3696 = vpop.f32.mrb[0].mxu0
      %v3697 = vadd.f32 0.0, %v3696
      %v3698 = vpop.f32.mrb[0].mxu0
      %v3699 = vpop.f32.mrb[0].mxu0
      %v3700 = vadd.f32 0.0, %v3699
      %v3701 = vpop.f32.mrb[0].mxu0
      %3702 = vmatprep.mubr.bf16.mxu0 0
      %3703 = vmatmul.mubr.bf16.gmra.mrb[0].mxu0 %v3506
      %v3704 = vpop.f32.mrb[0].mxu0
      %v3705 = vadd.f32 0.0, %v3704
      %v3706 = vpop.f32.mrb[0].mxu0
      %v3707 = vpop.f32.mrb[0].mxu0
      %v3708 = vadd.f32 0.0, %v3707
      %v3709 = vpop.f32.mrb[0].mxu0
      %3710 = vmatprep.mubr.bf16.mxu0 0
      %3711 = vmatmul.mubr.bf16.gmra.mrb[0].mxu0 %v3507
      %v3712 = vpop.f32.mrb[0].mxu0
      %v3713 = vadd.f32 0.0, %v3712
      %v3714 = vpop.f32.mrb[0].mxu0
      %v3715 = vpop.f32.mrb[0].mxu0
      %v3716 = vadd.f32 0.0, %v3715
      %v3717 = vpop.f32.mrb[0].mxu0
      %3718 = vmatprep.mubr.bf16.mxu0 0
      %3719 = vmatmul.mubr.bf16.gmra.mrb[0].mxu0 %v3508
      %v3720 = vpop.f32.mrb[0].mxu0
      %v3721 = vadd.f32 0.0, %v3720
      %v3722 = vpop.f32.mrb[0].mxu0
      %v3723 = vpop.f32.mrb[0].mxu0
      %v3724 = vadd.f32 0.0, %v3723
      %v3725 = vpop.f32.mrb[0].mxu0
      %3726 = vmatprep.mubr.bf16.mxu0 0
      %3727 = vmatmul.mubr.bf16.gmra.mrb[0].mxu0 %v3509
      %v3728 = vpop.f32.mrb[0].mxu0
      %v3729 = vadd.f32 0.0, %v3728
      %v3730 = vpop.f32.mrb[0].mxu0
      %v3731 = vpop.f32.mrb[0].mxu0
      %v3732 = vadd.f32 0.0, %v3731
      %v3733 = vpop.f32.mrb[0].mxu0
      %3734 = vdwg.mxu0
      %v3735 = vadd.f32 %v3348, %v3609
      %v3736 = vadd.f32 %v3349, %v3612
      %v3737 = vadd.f32 %v3350, %v3617
      %v3738 = vadd.f32 %v3351, %v3620
      %v3739 = vadd.f32 %v3352, %v3625
      %v3740 = vadd.f32 %v3353, %v3628
      %v3741 = vadd.f32 %v3354, %v3633
      %v3742 = vadd.f32 %v3355, %v3636
      %v3743 = vadd.f32 %v3356, %v3641
      %v3744 = vadd.f32 %v3357, %v3644
      %v3745 = vadd.f32 %v3358, %v3649
      %v3746 = vadd.f32 %v3359, %v3652
      %v3747 = vadd.f32 %v3360, %v3657
      %v3748 = vadd.f32 %v3361, %v3660
      %v3749 = vadd.f32 %v3362, %v3665
      %v3750 = vadd.f32 %v3363, %v3668
      %v3751 = vadd.f32 %v3364, %v3673
      %v3752 = vadd.f32 %v3365, %v3676
      %v3753 = vadd.f32 %v3366, %v3681
      %v3754 = vadd.f32 %v3367, %v3684
      %v3755 = vadd.f32 %v3368, %v3689
      %v3756 = vadd.f32 %v3369, %v3692
      %v3757 = vadd.f32 %v3370, %v3697
      %v3758 = vadd.f32 %v3371, %v3700
      %v3759 = vadd.f32 %v3372, %v3705
      %v3760 = vadd.f32 %v3373, %v3708
      %v3761 = vadd.f32 %v3374, %v3713
      %v3762 = vadd.f32 %v3375, %v3716
      %v3763 = vadd.f32 %v3376, %v3721
      %v3764 = vadd.f32 %v3377, %v3724
      %v3765 = vadd.f32 %v3378, %v3729
      %v3766 = vadd.f32 %v3379, %v3732
      %v3767 = vld [vmem:[%s3380] sm:$0xf]
      %v3768 = vld [vmem:[%s3380 + $0x4] sm:$0xf]
      %v3769 = vld [vmem:[%s3380 + $0x8] sm:$0x1]
      %v3770 = vld [vmem:[%s3380 + $0xc] sm:$0xf]
      %v3771 = vld [vmem:[%s3380 + $0x10] sm:$0xf]
      %v3772 = vld [vmem:[%s3380 + $0x14] sm:$0x1]
      %v3773 = vld [vmem:[%s3380 + $0x18] sm:$0xf]
      %v3774 = vld [vmem:[%s3380 + $0x1c] sm:$0xf]
      %v3775 = vld [vmem:[%s3380 + $0x20] sm:$0x1]
      %v3776 = vld [vmem:[%s3380 + $0x24] sm:$0xf]
      %v3777 = vld [vmem:[%s3380 + $0x28] sm:$0xf]
      %v3778 = vld [vmem:[%s3380 + $0x2c] sm:$0x1]
      %v3779 = vld [vmem:[%s3380 + $0x30] sm:$0xf]
      %v3780 = vld [vmem:[%s3380 + $0x34] sm:$0xf]
      %v3781 = vld [vmem:[%s3380 + $0x38] sm:$0x1]
      %v3782 = vld [vmem:[%s3380 + $0x3c] sm:$0xf]
      %v3783 = vld [vmem:[%s3380 + $0x40] sm:$0xf]
      %v3784 = vld [vmem:[%s3380 + $0x44] sm:$0x1]
      %v3785 = vld [vmem:[%s3380 + $0x48] sm:$0xf]
      %v3786 = vld [vmem:[%s3380 + $0x4c] sm:$0xf]
      %v3787 = vld [vmem:[%s3380 + $0x50] sm:$0x1]
      %v3788 = vld [vmem:[%s3380 + $0x54] sm:$0xf]
      %v3789 = vld [vmem:[%s3380 + $0x58] sm:$0xf]
      %v3790 = vld [vmem:[%s3380 + $0x5c] sm:$0x1]
      %v3791 = vld [vmem:[%s3380 + $0x60] sm:$0xf]
      %v3792 = vld [vmem:[%s3380 + $0x64] sm:$0xf]
      %v3793 = vld [vmem:[%s3380 + $0x68] sm:$0x1]
      %v3794 = vld [vmem:[%s3380 + $0x6c] sm:$0xf]
      %v3795 = vld [vmem:[%s3380 + $0x70] sm:$0xf]
      %v3796 = vld [vmem:[%s3380 + $0x74] sm:$0x1]
      %v3797 = vld [vmem:[%s3380 + $0x78] sm:$0xf]
      %v3798 = vld [vmem:[%s3380 + $0x7c] sm:$0xf]
      %v3799 = vld [vmem:[%s3380 + $0x80] sm:$0x1]
      %v3800 = vld [vmem:[%s3380 + $0x84] sm:$0xf]
      %v3801 = vld [vmem:[%s3380 + $0x88] sm:$0xf]
      %v3802 = vld [vmem:[%s3380 + $0x8c] sm:$0x1]
      %v3803 = vld [vmem:[%s3380 + $0x90] sm:$0xf]
      %v3804 = vld [vmem:[%s3380 + $0x94] sm:$0xf]
      %v3805 = vld [vmem:[%s3380 + $0x98] sm:$0x1]
      %v3806 = vld [vmem:[%s3380 + $0x9c] sm:$0xf]
      %v3807 = vld [vmem:[%s3380 + $0xa0] sm:$0xf]
      %v3808 = vld [vmem:[%s3380 + $0xa4] sm:$0x1]
      %v3809 = vld [vmem:[%s3380 + $0xa8] sm:$0xf]
      %v3810 = vld [vmem:[%s3380 + $0xac] sm:$0xf]
      %v3811 = vld [vmem:[%s3380 + $0xb0] sm:$0x1]
      %v3812 = vld [vmem:[%s3380 + $0xb4] sm:$0xf]
      %v3813 = vld [vmem:[%s3380 + $0xb8] sm:$0xf]
      %v3814 = vld [vmem:[%s3380 + $0xbc] sm:$0x1]
      %v3816 = vshrl.u32 %v3767, 16
      %v3818 = vrot.slane %v3816, 4
      %v3819 = vshll.u32 %v3767, 16
      %v3821 = vrot.slane %v3819, 5
      %v3822 = vor.u32 %v3818, %v3821
      %v3823 = vrot.slane %v3822, 4
      %v3825 = vshll.u32 %v3768, 16
      %v3827 = vrot.slane %v3825, 5
      %v3828 = vsel %vm276, %v3823, %v3827
      %v3829 = vshrl.u32 %v3768, 16
      %v3831 = vrot.slane %v3829, 4
      %v3832 = vor.u32 %v3831, %v3827
      %v3833 = vrot.slane %v3832, 4
      %v3835 = vshll.u32 %v3769, 16
      %v3837 = vrot.slane %v3835, 5
      %v3838 = vsel %vm276, %v3833, %v3837
      %v3840 = vshrl.u32 %v3770, 16
      %v3842 = vrot.slane %v3840, 4
      %v3843 = vshll.u32 %v3770, 16
      %v3845 = vrot.slane %v3843, 5
      %v3846 = vor.u32 %v3842, %v3845
      %v3847 = vrot.slane %v3846, 4
      %v3849 = vshll.u32 %v3771, 16
      %v3851 = vrot.slane %v3849, 5
      %v3852 = vsel %vm276, %v3847, %v3851
      %v3853 = vshrl.u32 %v3771, 16
      %v3855 = vrot.slane %v3853, 4
      %v3856 = vor.u32 %v3855, %v3851
      %v3857 = vrot.slane %v3856, 4
      %v3859 = vshll.u32 %v3772, 16
      %v3861 = vrot.slane %v3859, 5
      %v3862 = vsel %vm276, %v3857, %v3861
      %v3864 = vshrl.u32 %v3773, 16
      %v3866 = vrot.slane %v3864, 4
      %v3867 = vshll.u32 %v3773, 16
      %v3869 = vrot.slane %v3867, 5
      %v3870 = vor.u32 %v3866, %v3869
      %v3871 = vrot.slane %v3870, 4
      %v3873 = vshll.u32 %v3774, 16
      %v3875 = vrot.slane %v3873, 5
      %v3876 = vsel %vm276, %v3871, %v3875
      %v3877 = vshrl.u32 %v3774, 16
      %v3879 = vrot.slane %v3877, 4
      %v3880 = vor.u32 %v3879, %v3875
      %v3881 = vrot.slane %v3880, 4
      %v3883 = vshll.u32 %v3775, 16
      %v3885 = vrot.slane %v3883, 5
      %v3886 = vsel %vm276, %v3881, %v3885
      %v3888 = vshrl.u32 %v3776, 16
      %v3890 = vrot.slane %v3888, 4
      %v3891 = vshll.u32 %v3776, 16
      %v3893 = vrot.slane %v3891, 5
      %v3894 = vor.u32 %v3890, %v3893
      %v3895 = vrot.slane %v3894, 4
      %v3897 = vshll.u32 %v3777, 16
      %v3899 = vrot.slane %v3897, 5
      %v3900 = vsel %vm276, %v3895, %v3899
      %v3901 = vshrl.u32 %v3777, 16
      %v3903 = vrot.slane %v3901, 4
      %v3904 = vor.u32 %v3903, %v3899
      %v3905 = vrot.slane %v3904, 4
      %v3907 = vshll.u32 %v3778, 16
      %v3909 = vrot.slane %v3907, 5
      %v3910 = vsel %vm276, %v3905, %v3909
      %v3912 = vshrl.u32 %v3779, 16
      %v3914 = vrot.slane %v3912, 4
      %v3915 = vshll.u32 %v3779, 16
      %v3917 = vrot.slane %v3915, 5
      %v3918 = vor.u32 %v3914, %v3917
      %v3919 = vrot.slane %v3918, 4
      %v3921 = vshll.u32 %v3780, 16
      %v3923 = vrot.slane %v3921, 5
      %v3924 = vsel %vm276, %v3919, %v3923
      %v3925 = vshrl.u32 %v3780, 16
      %v3927 = vrot.slane %v3925, 4
      %v3928 = vor.u32 %v3927, %v3923
      %v3929 = vrot.slane %v3928, 4
      %v3931 = vshll.u32 %v3781, 16
      %v3933 = vrot.slane %v3931, 5
      %v3934 = vsel %vm276, %v3929, %v3933
      %v3936 = vshrl.u32 %v3782, 16
      %v3938 = vrot.slane %v3936, 4
      %v3939 = vshll.u32 %v3782, 16
      %v3941 = vrot.slane %v3939, 5
      %v3942 = vor.u32 %v3938, %v3941
      %v3943 = vrot.slane %v3942, 4
      %v3945 = vshll.u32 %v3783, 16
      %v3947 = vrot.slane %v3945, 5
      %v3948 = vsel %vm276, %v3943, %v3947
      %v3949 = vshrl.u32 %v3783, 16
      %v3951 = vrot.slane %v3949, 4
      %v3952 = vor.u32 %v3951, %v3947
      %v3953 = vrot.slane %v3952, 4
      %v3955 = vshll.u32 %v3784, 16
      %v3957 = vrot.slane %v3955, 5
      %v3958 = vsel %vm276, %v3953, %v3957
      %v3960 = vshrl.u32 %v3785, 16
      %v3962 = vrot.slane %v3960, 4
      %v3963 = vshll.u32 %v3785, 16
      %v3965 = vrot.slane %v3963, 5
      %v3966 = vor.u32 %v3962, %v3965
      %v3967 = vrot.slane %v3966, 4
      %v3969 = vshll.u32 %v3786, 16
      %v3971 = vrot.slane %v3969, 5
      %v3972 = vsel %vm276, %v3967, %v3971
      %v3973 = vshrl.u32 %v3786, 16
      %v3975 = vrot.slane %v3973, 4
      %v3976 = vor.u32 %v3975, %v3971
      %v3977 = vrot.slane %v3976, 4
      %v3979 = vshll.u32 %v3787, 16
      %v3981 = vrot.slane %v3979, 5
      %v3982 = vsel %vm276, %v3977, %v3981
      %v3984 = vshrl.u32 %v3788, 16
      %v3986 = vrot.slane %v3984, 4
      %v3987 = vshll.u32 %v3788, 16
      %v3989 = vrot.slane %v3987, 5
      %v3990 = vor.u32 %v3986, %v3989
      %v3991 = vrot.slane %v3990, 4
      %v3993 = vshll.u32 %v3789, 16
      %v3995 = vrot.slane %v3993, 5
      %v3996 = vsel %vm276, %v3991, %v3995
      %v3997 = vshrl.u32 %v3789, 16
      %v3999 = vrot.slane %v3997, 4
      %v4000 = vor.u32 %v3999, %v3995
      %v4001 = vrot.slane %v4000, 4
      %v4003 = vshll.u32 %v3790, 16
      %v4005 = vrot.slane %v4003, 5
      %v4006 = vsel %vm276, %v4001, %v4005
      %v4008 = vshrl.u32 %v3791, 16
      %v4010 = vrot.slane %v4008, 4
      %v4011 = vshll.u32 %v3791, 16
      %v4013 = vrot.slane %v4011, 5
      %v4014 = vor.u32 %v4010, %v4013
      %v4015 = vrot.slane %v4014, 4
      %v4017 = vshll.u32 %v3792, 16
      %v4019 = vrot.slane %v4017, 5
      %v4020 = vsel %vm276, %v4015, %v4019
      %v4021 = vshrl.u32 %v3792, 16
      %v4023 = vrot.slane %v4021, 4
      %v4024 = vor.u32 %v4023, %v4019
      %v4025 = vrot.slane %v4024, 4
      %v4027 = vshll.u32 %v3793, 16
      %v4029 = vrot.slane %v4027, 5
      %v4030 = vsel %vm276, %v4025, %v4029
      %v4032 = vshrl.u32 %v3794, 16
      %v4034 = vrot.slane %v4032, 4
      %v4035 = vshll.u32 %v3794, 16
      %v4037 = vrot.slane %v4035, 5
      %v4038 = vor.u32 %v4034, %v4037
      %v4039 = vrot.slane %v4038, 4
      %v4041 = vshll.u32 %v3795, 16
      %v4043 = vrot.slane %v4041, 5
      %v4044 = vsel %vm276, %v4039, %v4043
      %v4045 = vshrl.u32 %v3795, 16
      %v4047 = vrot.slane %v4045, 4
      %v4048 = vor.u32 %v4047, %v4043
      %v4049 = vrot.slane %v4048, 4
      %v4051 = vshll.u32 %v3796, 16
      %v4053 = vrot.slane %v4051, 5
      %v4054 = vsel %vm276, %v4049, %v4053
      %v4056 = vshrl.u32 %v3797, 16
      %v4058 = vrot.slane %v4056, 4
      %v4059 = vshll.u32 %v3797, 16
      %v4061 = vrot.slane %v4059, 5
      %v4062 = vor.u32 %v4058, %v4061
      %v4063 = vrot.slane %v4062, 4
      %v4065 = vshll.u32 %v3798, 16
      %v4067 = vrot.slane %v4065, 5
      %v4068 = vsel %vm276, %v4063, %v4067
      %v4069 = vshrl.u32 %v3798, 16
      %v4071 = vrot.slane %v4069, 4
      %v4072 = vor.u32 %v4071, %v4067
      %v4073 = vrot.slane %v4072, 4
      %v4075 = vshll.u32 %v3799, 16
      %v4077 = vrot.slane %v4075, 5
      %v4078 = vsel %vm276, %v4073, %v4077
      %v4080 = vshrl.u32 %v3800, 16
      %v4082 = vrot.slane %v4080, 4
      %v4083 = vshll.u32 %v3800, 16
      %v4085 = vrot.slane %v4083, 5
      %v4086 = vor.u32 %v4082, %v4085
      %v4087 = vrot.slane %v4086, 4
      %v4089 = vshll.u32 %v3801, 16
      %v4091 = vrot.slane %v4089, 5
      %v4092 = vsel %vm276, %v4087, %v4091
      %v4093 = vshrl.u32 %v3801, 16
      %v4095 = vrot.slane %v4093, 4
      %v4096 = vor.u32 %v4095, %v4091
      %v4097 = vrot.slane %v4096, 4
      %v4099 = vshll.u32 %v3802, 16
      %v4101 = vrot.slane %v4099, 5
      %v4102 = vsel %vm276, %v4097, %v4101
      %v4104 = vshrl.u32 %v3803, 16
      %v4106 = vrot.slane %v4104, 4
      %v4107 = vshll.u32 %v3803, 16
      %v4109 = vrot.slane %v4107, 5
      %v4110 = vor.u32 %v4106, %v4109
      %v4111 = vrot.slane %v4110, 4
      %v4113 = vshll.u32 %v3804, 16
      %v4115 = vrot.slane %v4113, 5
      %v4116 = vsel %vm276, %v4111, %v4115
      %v4117 = vshrl.u32 %v3804, 16
      %v4119 = vrot.slane %v4117, 4
      %v4120 = vor.u32 %v4119, %v4115
      %v4121 = vrot.slane %v4120, 4
      %v4123 = vshll.u32 %v3805, 16
      %v4125 = vrot.slane %v4123, 5
      %v4126 = vsel %vm276, %v4121, %v4125
      %v4128 = vshrl.u32 %v3806, 16
      %v4130 = vrot.slane %v4128, 4
      %v4131 = vshll.u32 %v3806, 16
      %v4133 = vrot.slane %v4131, 5
      %v4134 = vor.u32 %v4130, %v4133
      %v4135 = vrot.slane %v4134, 4
      %v4137 = vshll.u32 %v3807, 16
      %v4139 = vrot.slane %v4137, 5
      %v4140 = vsel %vm276, %v4135, %v4139
      %v4141 = vshrl.u32 %v3807, 16
      %v4143 = vrot.slane %v4141, 4
      %v4144 = vor.u32 %v4143, %v4139
      %v4145 = vrot.slane %v4144, 4
      %v4147 = vshll.u32 %v3808, 16
      %v4149 = vrot.slane %v4147, 5
      %v4150 = vsel %vm276, %v4145, %v4149
      %v4152 = vshrl.u32 %v3809, 16
      %v4154 = vrot.slane %v4152, 4
      %v4155 = vshll.u32 %v3809, 16
      %v4157 = vrot.slane %v4155, 5
      %v4158 = vor.u32 %v4154, %v4157
      %v4159 = vrot.slane %v4158, 4
      %v4161 = vshll.u32 %v3810, 16
      %v4163 = vrot.slane %v4161, 5
      %v4164 = vsel %vm276, %v4159, %v4163
      %v4165 = vshrl.u32 %v3810, 16
      %v4167 = vrot.slane %v4165, 4
      %v4168 = vor.u32 %v4167, %v4163
      %v4169 = vrot.slane %v4168, 4
      %v4171 = vshll.u32 %v3811, 16
      %v4173 = vrot.slane %v4171, 5
      %v4174 = vsel %vm276, %v4169, %v4173
      %v4176 = vshrl.u32 %v3812, 16
      %v4178 = vrot.slane %v4176, 4
      %v4179 = vshll.u32 %v3812, 16
      %v4181 = vrot.slane %v4179, 5
      %v4182 = vor.u32 %v4178, %v4181
      %v4183 = vrot.slane %v4182, 4
      %v4185 = vshll.u32 %v3813, 16
      %v4187 = vrot.slane %v4185, 5
      %v4188 = vsel %vm276, %v4183, %v4187
      %v4189 = vshrl.u32 %v3813, 16
      %v4191 = vrot.slane %v4189, 4
      %v4192 = vor.u32 %v4191, %v4187
      %v4193 = vrot.slane %v4192, 4
      %v4195 = vshll.u32 %v3814, 16
      %v4197 = vrot.slane %v4195, 5
      %v4198 = vsel %vm276, %v4193, %v4197
      %s4199 = scalar_lea.vmem %s1, 448
      %v4200 = vld [vmem:[%s4199] sm:$0xf]
      %v4201 = vld [vmem:[%s4199 + $0x4] sm:$0xf]
      %v4202 = vld [vmem:[%s4199 + $0x8] sm:$0xf]
      %v4203 = vld [vmem:[%s4199 + $0xc] sm:$0xf]
      %v4204 = vld [vmem:[%s4199 + $0x10] sm:$0xf]
      %v4205 = vld [vmem:[%s4199 + $0x14] sm:$0xf]
      %v4206 = vld [vmem:[%s4199 + $0x18] sm:$0xf]
      %v4207 = vld [vmem:[%s4199 + $0x1c] sm:$0xf]
      %v4208 = vld [vmem:[%s4199 + $0x20] sm:$0xf]
      %v4209 = vld [vmem:[%s4199 + $0x24] sm:$0xf]
      %v4210 = vld [vmem:[%s4199 + $0x28] sm:$0xf]
      %v4211 = vld [vmem:[%s4199 + $0x2c] sm:$0xf]
      %v4212 = vld [vmem:[%s4199 + $0x30] sm:$0xf]
      %v4213 = vld [vmem:[%s4199 + $0x34] sm:$0xf]
      %v4214 = vld [vmem:[%s4199 + $0x38] sm:$0xf]
      %v4215 = vld [vmem:[%s4199 + $0x3c] sm:$0xf]
      %v4216 = vunpack.c.l.b16 %v3828
      %v4217 = vunpack.c.l.b16 %v3838
      %v4218 = vunpack.c.l.b16 %v3852
      %v4219 = vunpack.c.l.b16 %v3862
      %v4220 = vunpack.c.l.b16 %v3876
      %v4221 = vunpack.c.l.b16 %v3886
      %v4222 = vunpack.c.l.b16 %v3900
      %v4223 = vunpack.c.l.b16 %v3910
      %v4224 = vunpack.c.l.b16 %v3924
      %v4225 = vunpack.c.l.b16 %v3934
      %v4226 = vunpack.c.l.b16 %v3948
      %v4227 = vunpack.c.l.b16 %v3958
      %v4228 = vunpack.c.l.b16 %v3972
      %v4229 = vunpack.c.l.b16 %v3982
      %v4230 = vunpack.c.l.b16 %v3996
      %v4231 = vunpack.c.l.b16 %v4006
      %v4232 = vunpack.c.l.b16 %v4020
      %v4233 = vunpack.c.l.b16 %v4030
      %v4234 = vunpack.c.l.b16 %v4044
      %v4235 = vunpack.c.l.b16 %v4054
      %v4236 = vunpack.c.l.b16 %v4068
      %v4237 = vunpack.c.l.b16 %v4078
      %v4238 = vunpack.c.l.b16 %v4092
      %v4239 = vunpack.c.l.b16 %v4102
      %v4240 = vunpack.c.l.b16 %v4116
      %v4241 = vunpack.c.l.b16 %v4126
      %v4242 = vunpack.c.l.b16 %v4140
      %v4243 = vunpack.c.l.b16 %v4150
      %v4244 = vunpack.c.l.b16 %v4164
      %v4245 = vunpack.c.l.b16 %v4174
      %v4246 = vunpack.c.l.b16 %v4188
      %v4247 = vunpack.c.l.b16 %v4198
      %v4248 = vpack.c.b16 %v4217, %v4216
      %v4249 = vpack.c.b16 %v4219, %v4218
      %v4250 = vpack.c.b16 %v4221, %v4220
      %v4251 = vpack.c.b16 %v4223, %v4222
      %v4252 = vpack.c.b16 %v4225, %v4224
      %v4253 = vpack.c.b16 %v4227, %v4226
      %v4254 = vpack.c.b16 %v4229, %v4228
      %v4255 = vpack.c.b16 %v4231, %v4230
      %v4256 = vpack.c.b16 %v4233, %v4232
      %v4257 = vpack.c.b16 %v4235, %v4234
      %v4258 = vpack.c.b16 %v4237, %v4236
      %v4259 = vpack.c.b16 %v4239, %v4238
      %v4260 = vpack.c.b16 %v4241, %v4240
      %v4261 = vpack.c.b16 %v4243, %v4242
      %v4262 = vpack.c.b16 %v4245, %v4244
      %v4263 = vpack.c.b16 %v4247, %v4246
      %v4296 = vunpack.c.l.b16 %v4200
      %v4297 = vunpack.c.l.b16 %v4201
      %v4298 = vunpack.c.l.b16 %v4202
      %v4299 = vunpack.c.l.b16 %v4203
      %v4300 = vunpack.c.l.b16 %v4204
      %v4301 = vunpack.c.l.b16 %v4205
      %v4302 = vunpack.c.l.b16 %v4206
      %v4303 = vunpack.c.l.b16 %v4207
      %v4304 = vunpack.c.l.b16 %v4208
      %v4305 = vunpack.c.l.b16 %v4209
      %v4306 = vunpack.c.l.b16 %v4210
      %v4307 = vunpack.c.l.b16 %v4211
      %v4308 = vunpack.c.l.b16 %v4212
      %v4309 = vunpack.c.l.b16 %v4213
      %v4310 = vunpack.c.l.b16 %v4214
      %v4311 = vunpack.c.l.b16 %v4215
      %v4312 = vpack.c.b16 %v4297, %v4296
      %v4313 = vpack.c.b16 %v4299, %v4298
      %v4314 = vpack.c.b16 %v4301, %v4300
      %v4315 = vpack.c.b16 %v4303, %v4302
      %v4316 = vpack.c.b16 %v4305, %v4304
      %v4317 = vpack.c.b16 %v4307, %v4306
      %v4318 = vpack.c.b16 %v4309, %v4308
      %v4319 = vpack.c.b16 %v4311, %v4310
      %4328 = vmatprep.subr.bf16.mxu0 0
      %4329 = vmatpush1.bf16.msra.mxu0 %v4312
      %4330 = vmatprep.subr.bf16.mxu0 0
      %4331 = vmatpush1.bf16.msra.mxu0 %v4313
      %4332 = vmatprep.subr.bf16.mxu0 0
      %4333 = vmatpush1.bf16.msra.mxu0 %v4314
      %4334 = vmatprep.subr.bf16.mxu0 0
      %4335 = vmatpush1.bf16.msra.mxu0 %v4315
      %4336 = vmatprep.subr.bf16.mxu0 0
      %4337 = vmatpush1.bf16.msra.mxu0 %v4316
      %4338 = vmatprep.subr.bf16.mxu0 0
      %4339 = vmatpush1.bf16.msra.mxu0 %v4317
      %4340 = vmatprep.subr.bf16.mxu0 0
      %4341 = vmatpush1.bf16.msra.mxu0 %v4318
      %4342 = vmatprep.subr.bf16.mxu0 0
      %4343 = vmatpush1.bf16.msra.mxu0 %v4319
      %4344 = vmatprep.subr.bf16.mxu0 0
      %4345 = vmatpush1.bf16.msra.mxu0 0
      %4346 = vmatprep.subr.bf16.mxu0 0
      %4347 = vmatpush1.bf16.msra.mxu0 0
      %4348 = vmatprep.subr.bf16.mxu0 0
      %4349 = vmatpush1.bf16.msra.mxu0 0
      %4350 = vmatprep.subr.bf16.mxu0 0
      %4351 = vmatpush1.bf16.msra.mxu0 0
      %4352 = vmatprep.subr.bf16.mxu0 0
      %4353 = vmatpush1.bf16.msra.mxu0 0
      %4354 = vmatprep.subr.bf16.mxu0 0
      %4355 = vmatpush1.bf16.msra.mxu0 0
      %4356 = vmatprep.subr.bf16.mxu0 0
      %4357 = vmatpush1.bf16.msra.mxu0 0
      %4358 = vmatprep.subr.bf16.mxu0 0
      %4359 = vmatpush1.bf16.msra.mxu0 0
      %4360 = vmatprep.mubr.bf16.mxu0 0
      %4361 = vmatmul.mubr.bf16.gmra.mrb[0].mxu0 %v4248
      %v4362 = vpop.f32.mrb[0].mxu0
      %v4363 = vadd.f32 0.0, %v4362
      %v4364 = vpop.f32.mrb[0].mxu0
      %v4365 = vpop.f32.mrb[0].mxu0
      %v4366 = vadd.f32 0.0, %v4365
      %v4367 = vpop.f32.mrb[0].mxu0
      %4368 = vmatprep.mubr.bf16.mxu0 0
      %4369 = vmatmul.mubr.bf16.gmra.mrb[0].mxu0 %v4249
      %v4370 = vpop.f32.mrb[0].mxu0
      %v4371 = vadd.f32 0.0, %v4370
      %v4372 = vpop.f32.mrb[0].mxu0
      %v4373 = vpop.f32.mrb[0].mxu0
      %v4374 = vadd.f32 0.0, %v4373
      %v4375 = vpop.f32.mrb[0].mxu0
      %4376 = vmatprep.mubr.bf16.mxu0 0
      %4377 = vmatmul.mubr.bf16.gmra.mrb[0].mxu0 %v4250
      %v4378 = vpop.f32.mrb[0].mxu0
      %v4379 = vadd.f32 0.0, %v4378
      %v4380 = vpop.f32.mrb[0].mxu0
      %v4381 = vpop.f32.mrb[0].mxu0
      %v4382 = vadd.f32 0.0, %v4381
      %v4383 = vpop.f32.mrb[0].mxu0
      %4384 = vmatprep.mubr.bf16.mxu0 0
      %4385 = vmatmul.mubr.bf16.gmra.mrb[0].mxu0 %v4251
      %v4386 = vpop.f32.mrb[0].mxu0
      %v4387 = vadd.f32 0.0, %v4386
      %v4388 = vpop.f32.mrb[0].mxu0
      %v4389 = vpop.f32.mrb[0].mxu0
      %v4390 = vadd.f32 0.0, %v4389
      %v4391 = vpop.f32.mrb[0].mxu0
      %4392 = vmatprep.mubr.bf16.mxu0 0
      %4393 = vmatmul.mubr.bf16.gmra.mrb[0].mxu0 %v4252
      %v4394 = vpop.f32.mrb[0].mxu0
      %v4395 = vadd.f32 0.0, %v4394
      %v4396 = vpop.f32.mrb[0].mxu0
      %v4397 = vpop.f32.mrb[0].mxu0
      %v4398 = vadd.f32 0.0, %v4397
      %v4399 = vpop.f32.mrb[0].mxu0
      %4400 = vmatprep.mubr.bf16.mxu0 0
      %4401 = vmatmul.mubr.bf16.gmra.mrb[0].mxu0 %v4253
      %v4402 = vpop.f32.mrb[0].mxu0
      %v4403 = vadd.f32 0.0, %v4402
      %v4404 = vpop.f32.mrb[0].mxu0
      %v4405 = vpop.f32.mrb[0].mxu0
      %v4406 = vadd.f32 0.0, %v4405
      %v4407 = vpop.f32.mrb[0].mxu0
      %4408 = vmatprep.mubr.bf16.mxu0 0
      %4409 = vmatmul.mubr.bf16.gmra.mrb[0].mxu0 %v4254
      %v4410 = vpop.f32.mrb[0].mxu0
      %v4411 = vadd.f32 0.0, %v4410
      %v4412 = vpop.f32.mrb[0].mxu0
      %v4413 = vpop.f32.mrb[0].mxu0
      %v4414 = vadd.f32 0.0, %v4413
      %v4415 = vpop.f32.mrb[0].mxu0
      %4416 = vmatprep.mubr.bf16.mxu0 0
      %4417 = vmatmul.mubr.bf16.gmra.mrb[0].mxu0 %v4255
      %v4418 = vpop.f32.mrb[0].mxu0
      %v4419 = vadd.f32 0.0, %v4418
      %v4420 = vpop.f32.mrb[0].mxu0
      %v4421 = vpop.f32.mrb[0].mxu0
      %v4422 = vadd.f32 0.0, %v4421
      %v4423 = vpop.f32.mrb[0].mxu0
      %4424 = vmatprep.mubr.bf16.mxu0 0
      %4425 = vmatmul.mubr.bf16.gmra.mrb[0].mxu0 %v4256
      %v4426 = vpop.f32.mrb[0].mxu0
      %v4427 = vadd.f32 0.0, %v4426
      %v4428 = vpop.f32.mrb[0].mxu0
      %v4429 = vpop.f32.mrb[0].mxu0
      %v4430 = vadd.f32 0.0, %v4429
      %v4431 = vpop.f32.mrb[0].mxu0
      %4432 = vmatprep.mubr.bf16.mxu0 0
      %4433 = vmatmul.mubr.bf16.gmra.mrb[0].mxu0 %v4257
      %v4434 = vpop.f32.mrb[0].mxu0
      %v4435 = vadd.f32 0.0, %v4434
      %v4436 = vpop.f32.mrb[0].mxu0
      %v4437 = vpop.f32.mrb[0].mxu0
      %v4438 = vadd.f32 0.0, %v4437
      %v4439 = vpop.f32.mrb[0].mxu0
      %4440 = vmatprep.mubr.bf16.mxu0 0
      %4441 = vmatmul.mubr.bf16.gmra.mrb[0].mxu0 %v4258
      %v4442 = vpop.f32.mrb[0].mxu0
      %v4443 = vadd.f32 0.0, %v4442
      %v4444 = vpop.f32.mrb[0].mxu0
      %v4445 = vpop.f32.mrb[0].mxu0
      %v4446 = vadd.f32 0.0, %v4445
      %v4447 = vpop.f32.mrb[0].mxu0
      %4448 = vmatprep.mubr.bf16.mxu0 0
      %4449 = vmatmul.mubr.bf16.gmra.mrb[0].mxu0 %v4259
      %v4450 = vpop.f32.mrb[0].mxu0
      %v4451 = vadd.f32 0.0, %v4450
      %v4452 = vpop.f32.mrb[0].mxu0
      %v4453 = vpop.f32.mrb[0].mxu0
      %v4454 = vadd.f32 0.0, %v4453
      %v4455 = vpop.f32.mrb[0].mxu0
      %4456 = vmatprep.mubr.bf16.mxu0 0
      %4457 = vmatmul.mubr.bf16.gmra.mrb[0].mxu0 %v4260
      %v4458 = vpop.f32.mrb[0].mxu0
      %v4459 = vadd.f32 0.0, %v4458
      %v4460 = vpop.f32.mrb[0].mxu0
      %v4461 = vpop.f32.mrb[0].mxu0
      %v4462 = vadd.f32 0.0, %v4461
      %v4463 = vpop.f32.mrb[0].mxu0
      %4464 = vmatprep.mubr.bf16.mxu0 0
      %4465 = vmatmul.mubr.bf16.gmra.mrb[0].mxu0 %v4261
      %v4466 = vpop.f32.mrb[0].mxu0
      %v4467 = vadd.f32 0.0, %v4466
      %v4468 = vpop.f32.mrb[0].mxu0
      %v4469 = vpop.f32.mrb[0].mxu0
      %v4470 = vadd.f32 0.0, %v4469
      %v4471 = vpop.f32.mrb[0].mxu0
      %4472 = vmatprep.mubr.bf16.mxu0 0
      %4473 = vmatmul.mubr.bf16.gmra.mrb[0].mxu0 %v4262
      %v4474 = vpop.f32.mrb[0].mxu0
      %v4475 = vadd.f32 0.0, %v4474
      %v4476 = vpop.f32.mrb[0].mxu0
      %v4477 = vpop.f32.mrb[0].mxu0
      %v4478 = vadd.f32 0.0, %v4477
      %v4479 = vpop.f32.mrb[0].mxu0
      %4480 = vmatprep.mubr.bf16.mxu0 0
      %4481 = vmatmul.mubr.bf16.gmra.mrb[0].mxu0 %v4263
      %v4482 = vpop.f32.mrb[0].mxu0
      %v4483 = vadd.f32 0.0, %v4482
      %v4484 = vpop.f32.mrb[0].mxu0
      %v4485 = vpop.f32.mrb[0].mxu0
      %v4486 = vadd.f32 0.0, %v4485
      %v4487 = vpop.f32.mrb[0].mxu0
      %4488 = vdwg.mxu0
      %v4489 = vadd.f32 %v3735, %v4363
      %v4490 = vadd.f32 %v3736, %v4366
      %v4491 = vadd.f32 %v3737, %v4371
      %v4492 = vadd.f32 %v3738, %v4374
      %v4493 = vadd.f32 %v3739, %v4379
      %v4494 = vadd.f32 %v3740, %v4382
      %v4495 = vadd.f32 %v3741, %v4387
      %v4496 = vadd.f32 %v3742, %v4390
      %v4497 = vadd.f32 %v3743, %v4395
      %v4498 = vadd.f32 %v3744, %v4398
      %v4499 = vadd.f32 %v3745, %v4403
      %v4500 = vadd.f32 %v3746, %v4406
      %v4501 = vadd.f32 %v3747, %v4411
      %v4502 = vadd.f32 %v3748, %v4414
      %v4503 = vadd.f32 %v3749, %v4419
      %v4504 = vadd.f32 %v3750, %v4422
      %v4505 = vadd.f32 %v3751, %v4427
      %v4506 = vadd.f32 %v3752, %v4430
      %v4507 = vadd.f32 %v3753, %v4435
      %v4508 = vadd.f32 %v3754, %v4438
      %v4509 = vadd.f32 %v3755, %v4443
      %v4510 = vadd.f32 %v3756, %v4446
      %v4511 = vadd.f32 %v3757, %v4451
      %v4512 = vadd.f32 %v3758, %v4454
      %v4513 = vadd.f32 %v3759, %v4459
      %v4514 = vadd.f32 %v3760, %v4462
      %v4515 = vadd.f32 %v3761, %v4467
      %v4516 = vadd.f32 %v3762, %v4470
      %v4517 = vadd.f32 %v3763, %v4475
      %v4518 = vadd.f32 %v3764, %v4478
      %v4519 = vadd.f32 %v3765, %v4483
      %v4520 = vadd.f32 %v3766, %v4486
      %v4521 = vld [vmem:[%s3380] sm:$0xe]
      %v4522 = vld [vmem:[%s3380 + $0xc] sm:$0xe]
      %v4523 = vld [vmem:[%s3380 + $0x18] sm:$0xe]
      %v4524 = vld [vmem:[%s3380 + $0x24] sm:$0xe]
      %v4525 = vld [vmem:[%s3380 + $0x30] sm:$0xe]
      %v4526 = vld [vmem:[%s3380 + $0x3c] sm:$0xe]
      %v4527 = vld [vmem:[%s3380 + $0x48] sm:$0xe]
      %v4528 = vld [vmem:[%s3380 + $0x54] sm:$0xe]
      %v4529 = vld [vmem:[%s3380 + $0x60] sm:$0xe]
      %v4530 = vld [vmem:[%s3380 + $0x6c] sm:$0xe]
      %v4531 = vld [vmem:[%s3380 + $0x78] sm:$0xe]
      %v4532 = vld [vmem:[%s3380 + $0x84] sm:$0xe]
      %v4533 = vld [vmem:[%s3380 + $0x90] sm:$0xe]
      %v4534 = vld [vmem:[%s3380 + $0x9c] sm:$0xe]
      %v4535 = vld [vmem:[%s3380 + $0xa8] sm:$0xe]
      %v4536 = vld [vmem:[%s3380 + $0xb4] sm:$0xe]
      %v4585 = vrot.slane %v4521, 5
      %v4586 = vrot.slane %v4585, 4
      %v4587 = vrot.slane %v3768, 5
      %v4588 = vsel %vm1306, %v4586, %v4587
      %v4589 = vrot.slane %v4587, 4
      %v4590 = vrot.slane %v3769, 5
      %v4591 = vsel %vm1306, %v4589, %v4590
      %v4592 = vrot.slane %v4522, 5
      %v4593 = vrot.slane %v4592, 4
      %v4594 = vrot.slane %v3771, 5
      %v4595 = vsel %vm1306, %v4593, %v4594
      %v4596 = vrot.slane %v4594, 4
      %v4597 = vrot.slane %v3772, 5
      %v4598 = vsel %vm1306, %v4596, %v4597
      %v4599 = vrot.slane %v4523, 5
      %v4600 = vrot.slane %v4599, 4
      %v4601 = vrot.slane %v3774, 5
      %v4602 = vsel %vm1306, %v4600, %v4601
      %v4603 = vrot.slane %v4601, 4
      %v4604 = vrot.slane %v3775, 5
      %v4605 = vsel %vm1306, %v4603, %v4604
      %v4606 = vrot.slane %v4524, 5
      %v4607 = vrot.slane %v4606, 4
      %v4608 = vrot.slane %v3777, 5
      %v4609 = vsel %vm1306, %v4607, %v4608
      %v4610 = vrot.slane %v4608, 4
      %v4611 = vrot.slane %v3778, 5
      %v4612 = vsel %vm1306, %v4610, %v4611
      %v4613 = vrot.slane %v4525, 5
      %v4614 = vrot.slane %v4613, 4
      %v4615 = vrot.slane %v3780, 5
      %v4616 = vsel %vm1306, %v4614, %v4615
      %v4617 = vrot.slane %v4615, 4
      %v4618 = vrot.slane %v3781, 5
      %v4619 = vsel %vm1306, %v4617, %v4618
      %v4620 = vrot.slane %v4526, 5
      %v4621 = vrot.slane %v4620, 4
      %v4622 = vrot.slane %v3783, 5
      %v4623 = vsel %vm1306, %v4621, %v4622
      %v4624 = vrot.slane %v4622, 4
      %v4625 = vrot.slane %v3784, 5
      %v4626 = vsel %vm1306, %v4624, %v4625
      %v4627 = vrot.slane %v4527, 5
      %v4628 = vrot.slane %v4627, 4
      %v4629 = vrot.slane %v3786, 5
      %v4630 = vsel %vm1306, %v4628, %v4629
      %v4631 = vrot.slane %v4629, 4
      %v4632 = vrot.slane %v3787, 5
      %v4633 = vsel %vm1306, %v4631, %v4632
      %v4634 = vrot.slane %v4528, 5
      %v4635 = vrot.slane %v4634, 4
      %v4636 = vrot.slane %v3789, 5
      %v4637 = vsel %vm1306, %v4635, %v4636
      %v4638 = vrot.slane %v4636, 4
      %v4639 = vrot.slane %v3790, 5
      %v4640 = vsel %vm1306, %v4638, %v4639
      %v4641 = vrot.slane %v4529, 5
      %v4642 = vrot.slane %v4641, 4
      %v4643 = vrot.slane %v3792, 5
      %v4644 = vsel %vm1306, %v4642, %v4643
      %v4645 = vrot.slane %v4643, 4
      %v4646 = vrot.slane %v3793, 5
      %v4647 = vsel %vm1306, %v4645, %v4646
      %v4648 = vrot.slane %v4530, 5
      %v4649 = vrot.slane %v4648, 4
      %v4650 = vrot.slane %v3795, 5
      %v4651 = vsel %vm1306, %v4649, %v4650
      %v4652 = vrot.slane %v4650, 4
      %v4653 = vrot.slane %v3796, 5
      %v4654 = vsel %vm1306, %v4652, %v4653
      %v4655 = vrot.slane %v4531, 5
      %v4656 = vrot.slane %v4655, 4
      %v4657 = vrot.slane %v3798, 5
      %v4658 = vsel %vm1306, %v4656, %v4657
      %v4659 = vrot.slane %v4657, 4
      %v4660 = vrot.slane %v3799, 5
      %v4661 = vsel %vm1306, %v4659, %v4660
      %v4662 = vrot.slane %v4532, 5
      %v4663 = vrot.slane %v4662, 4
      %v4664 = vrot.slane %v3801, 5
      %v4665 = vsel %vm1306, %v4663, %v4664
      %v4666 = vrot.slane %v4664, 4
      %v4667 = vrot.slane %v3802, 5
      %v4668 = vsel %vm1306, %v4666, %v4667
      %v4669 = vrot.slane %v4533, 5
      %v4670 = vrot.slane %v4669, 4
      %v4671 = vrot.slane %v3804, 5
      %v4672 = vsel %vm1306, %v4670, %v4671
      %v4673 = vrot.slane %v4671, 4
      %v4674 = vrot.slane %v3805, 5
      %v4675 = vsel %vm1306, %v4673, %v4674
      %v4676 = vrot.slane %v4534, 5
      %v4677 = vrot.slane %v4676, 4
      %v4678 = vrot.slane %v3807, 5
      %v4679 = vsel %vm1306, %v4677, %v4678
      %v4680 = vrot.slane %v4678, 4
      %v4681 = vrot.slane %v3808, 5
      %v4682 = vsel %vm1306, %v4680, %v4681
      %v4683 = vrot.slane %v4535, 5
      %v4684 = vrot.slane %v4683, 4
      %v4685 = vrot.slane %v3810, 5
      %v4686 = vsel %vm1306, %v4684, %v4685
      %v4687 = vrot.slane %v4685, 4
      %v4688 = vrot.slane %v3811, 5
      %v4689 = vsel %vm1306, %v4687, %v4688
      %v4690 = vrot.slane %v4536, 5
      %v4691 = vrot.slane %v4690, 4
      %v4692 = vrot.slane %v3813, 5
      %v4693 = vsel %vm1306, %v4691, %v4692
      %v4694 = vrot.slane %v4692, 4
      %v4695 = vrot.slane %v3814, 5
      %v4696 = vsel %vm1306, %v4694, %v4695
      %s4697 = scalar_lea.vmem %s1, 512
      %v4698 = vld [vmem:[%s4697] sm:$0xf]
      %v4699 = vld [vmem:[%s4697 + $0x4] sm:$0xf]
      %v4700 = vld [vmem:[%s4697 + $0x8] sm:$0xf]
      %v4701 = vld [vmem:[%s4697 + $0xc] sm:$0xf]
      %v4702 = vld [vmem:[%s4697 + $0x10] sm:$0xf]
      %v4703 = vld [vmem:[%s4697 + $0x14] sm:$0xf]
      %v4704 = vld [vmem:[%s4697 + $0x18] sm:$0xf]
      %v4705 = vld [vmem:[%s4697 + $0x1c] sm:$0xf]
      %v4706 = vld [vmem:[%s4697 + $0x20] sm:$0xf]
      %v4707 = vld [vmem:[%s4697 + $0x24] sm:$0xf]
      %v4708 = vld [vmem:[%s4697 + $0x28] sm:$0xf]
      %v4709 = vld [vmem:[%s4697 + $0x2c] sm:$0xf]
      %v4710 = vld [vmem:[%s4697 + $0x30] sm:$0xf]
      %v4711 = vld [vmem:[%s4697 + $0x34] sm:$0xf]
      %v4712 = vld [vmem:[%s4697 + $0x38] sm:$0xf]
      %v4713 = vld [vmem:[%s4697 + $0x3c] sm:$0xf]
      %v4714 = vunpack.c.l.b16 %v4588
      %v4715 = vunpack.c.l.b16 %v4591
      %v4716 = vunpack.c.l.b16 %v4595
      %v4717 = vunpack.c.l.b16 %v4598
      %v4718 = vunpack.c.l.b16 %v4602
      %v4719 = vunpack.c.l.b16 %v4605
      %v4720 = vunpack.c.l.b16 %v4609
      %v4721 = vunpack.c.l.b16 %v4612
      %v4722 = vunpack.c.l.b16 %v4616
      %v4723 = vunpack.c.l.b16 %v4619
      %v4724 = vunpack.c.l.b16 %v4623
      %v4725 = vunpack.c.l.b16 %v4626
      %v4726 = vunpack.c.l.b16 %v4630
      %v4727 = vunpack.c.l.b16 %v4633
      %v4728 = vunpack.c.l.b16 %v4637
      %v4729 = vunpack.c.l.b16 %v4640
      %v4730 = vunpack.c.l.b16 %v4644
      %v4731 = vunpack.c.l.b16 %v4647
      %v4732 = vunpack.c.l.b16 %v4651
      %v4733 = vunpack.c.l.b16 %v4654
      %v4734 = vunpack.c.l.b16 %v4658
      %v4735 = vunpack.c.l.b16 %v4661
      %v4736 = vunpack.c.l.b16 %v4665
      %v4737 = vunpack.c.l.b16 %v4668
      %v4738 = vunpack.c.l.b16 %v4672
      %v4739 = vunpack.c.l.b16 %v4675
      %v4740 = vunpack.c.l.b16 %v4679
      %v4741 = vunpack.c.l.b16 %v4682
      %v4742 = vunpack.c.l.b16 %v4686
      %v4743 = vunpack.c.l.b16 %v4689
      %v4744 = vunpack.c.l.b16 %v4693
      %v4745 = vunpack.c.l.b16 %v4696
      %v4746 = vpack.c.b16 %v4715, %v4714
      %v4747 = vpack.c.b16 %v4717, %v4716
      %v4748 = vpack.c.b16 %v4719, %v4718
      %v4749 = vpack.c.b16 %v4721, %v4720
      %v4750 = vpack.c.b16 %v4723, %v4722
      %v4751 = vpack.c.b16 %v4725, %v4724
      %v4752 = vpack.c.b16 %v4727, %v4726
      %v4753 = vpack.c.b16 %v4729, %v4728
      %v4754 = vpack.c.b16 %v4731, %v4730
      %v4755 = vpack.c.b16 %v4733, %v4732
      %v4756 = vpack.c.b16 %v4735, %v4734
      %v4757 = vpack.c.b16 %v4737, %v4736
      %v4758 = vpack.c.b16 %v4739, %v4738
      %v4759 = vpack.c.b16 %v4741, %v4740
      %v4760 = vpack.c.b16 %v4743, %v4742
      %v4761 = vpack.c.b16 %v4745, %v4744
      %v4794 = vunpack.c.l.b16 %v4698
      %v4795 = vunpack.c.l.b16 %v4699
      %v4796 = vunpack.c.l.b16 %v4700
      %v4797 = vunpack.c.l.b16 %v4701
      %v4798 = vunpack.c.l.b16 %v4702
      %v4799 = vunpack.c.l.b16 %v4703
      %v4800 = vunpack.c.l.b16 %v4704
      %v4801 = vunpack.c.l.b16 %v4705
      %v4802 = vunpack.c.l.b16 %v4706
      %v4803 = vunpack.c.l.b16 %v4707
      %v4804 = vunpack.c.l.b16 %v4708
      %v4805 = vunpack.c.l.b16 %v4709
      %v4806 = vunpack.c.l.b16 %v4710
      %v4807 = vunpack.c.l.b16 %v4711
      %v4808 = vunpack.c.l.b16 %v4712
      %v4809 = vunpack.c.l.b16 %v4713
      %v4810 = vpack.c.b16 %v4795, %v4794
      %v4811 = vpack.c.b16 %v4797, %v4796
      %v4812 = vpack.c.b16 %v4799, %v4798
      %v4813 = vpack.c.b16 %v4801, %v4800
      %v4814 = vpack.c.b16 %v4803, %v4802
      %v4815 = vpack.c.b16 %v4805, %v4804
      %v4816 = vpack.c.b16 %v4807, %v4806
      %v4817 = vpack.c.b16 %v4809, %v4808
      %4826 = vmatprep.subr.bf16.mxu0 0
      %4827 = vmatpush1.bf16.msra.mxu0 %v4810
      %4828 = vmatprep.subr.bf16.mxu0 0
      %4829 = vmatpush1.bf16.msra.mxu0 %v4811
      %4830 = vmatprep.subr.bf16.mxu0 0
      %4831 = vmatpush1.bf16.msra.mxu0 %v4812
      %4832 = vmatprep.subr.bf16.mxu0 0
      %4833 = vmatpush1.bf16.msra.mxu0 %v4813
      %4834 = vmatprep.subr.bf16.mxu0 0
      %4835 = vmatpush1.bf16.msra.mxu0 %v4814
      %4836 = vmatprep.subr.bf16.mxu0 0
      %4837 = vmatpush1.bf16.msra.mxu0 %v4815
      %4838 = vmatprep.subr.bf16.mxu0 0
      %4839 = vmatpush1.bf16.msra.mxu0 %v4816
      %4840 = vmatprep.subr.bf16.mxu0 0
      %4841 = vmatpush1.bf16.msra.mxu0 %v4817
      %4842 = vmatprep.subr.bf16.mxu0 0
      %4843 = vmatpush1.bf16.msra.mxu0 0
      %4844 = vmatprep.subr.bf16.mxu0 0
      %4845 = vmatpush1.bf16.msra.mxu0 0
      %4846 = vmatprep.subr.bf16.mxu0 0
      %4847 = vmatpush1.bf16.msra.mxu0 0
      %4848 = vmatprep.subr.bf16.mxu0 0
      %4849 = vmatpush1.bf16.msra.mxu0 0
      %4850 = vmatprep.subr.bf16.mxu0 0
      %4851 = vmatpush1.bf16.msra.mxu0 0
      %4852 = vmatprep.subr.bf16.mxu0 0
      %4853 = vmatpush1.bf16.msra.mxu0 0
      %4854 = vmatprep.subr.bf16.mxu0 0
      %4855 = vmatpush1.bf16.msra.mxu0 0
      %4856 = vmatprep.subr.bf16.mxu0 0
      %4857 = vmatpush1.bf16.msra.mxu0 0
      %4858 = vmatprep.mubr.bf16.mxu0 0
      %4859 = vmatmul.mubr.bf16.gmra.mrb[0].mxu0 %v4746
      %v4860 = vpop.f32.mrb[0].mxu0
      %v4861 = vadd.f32 0.0, %v4860
      %v4862 = vpop.f32.mrb[0].mxu0
      %v4863 = vpop.f32.mrb[0].mxu0
      %v4864 = vadd.f32 0.0, %v4863
      %v4865 = vpop.f32.mrb[0].mxu0
      %4866 = vmatprep.mubr.bf16.mxu0 0
      %4867 = vmatmul.mubr.bf16.gmra.mrb[0].mxu0 %v4747
      %v4868 = vpop.f32.mrb[0].mxu0
      %v4869 = vadd.f32 0.0, %v4868
      %v4870 = vpop.f32.mrb[0].mxu0
      %v4871 = vpop.f32.mrb[0].mxu0
      %v4872 = vadd.f32 0.0, %v4871
      %v4873 = vpop.f32.mrb[0].mxu0
      %4874 = vmatprep.mubr.bf16.mxu0 0
      %4875 = vmatmul.mubr.bf16.gmra.mrb[0].mxu0 %v4748
      %v4876 = vpop.f32.mrb[0].mxu0
      %v4877 = vadd.f32 0.0, %v4876
      %v4878 = vpop.f32.mrb[0].mxu0
      %v4879 = vpop.f32.mrb[0].mxu0
      %v4880 = vadd.f32 0.0, %v4879
      %v4881 = vpop.f32.mrb[0].mxu0
      %4882 = vmatprep.mubr.bf16.mxu0 0
      %4883 = vmatmul.mubr.bf16.gmra.mrb[0].mxu0 %v4749
      %v4884 = vpop.f32.mrb[0].mxu0
      %v4885 = vadd.f32 0.0, %v4884
      %v4886 = vpop.f32.mrb[0].mxu0
      %v4887 = vpop.f32.mrb[0].mxu0
      %v4888 = vadd.f32 0.0, %v4887
      %v4889 = vpop.f32.mrb[0].mxu0
      %4890 = vmatprep.mubr.bf16.mxu0 0
      %4891 = vmatmul.mubr.bf16.gmra.mrb[0].mxu0 %v4750
      %v4892 = vpop.f32.mrb[0].mxu0
      %v4893 = vadd.f32 0.0, %v4892
      %v4894 = vpop.f32.mrb[0].mxu0
      %v4895 = vpop.f32.mrb[0].mxu0
      %v4896 = vadd.f32 0.0, %v4895
      %v4897 = vpop.f32.mrb[0].mxu0
      %4898 = vmatprep.mubr.bf16.mxu0 0
      %4899 = vmatmul.mubr.bf16.gmra.mrb[0].mxu0 %v4751
      %v4900 = vpop.f32.mrb[0].mxu0
      %v4901 = vadd.f32 0.0, %v4900
      %v4902 = vpop.f32.mrb[0].mxu0
      %v4903 = vpop.f32.mrb[0].mxu0
      %v4904 = vadd.f32 0.0, %v4903
      %v4905 = vpop.f32.mrb[0].mxu0
      %4906 = vmatprep.mubr.bf16.mxu0 0
      %4907 = vmatmul.mubr.bf16.gmra.mrb[0].mxu0 %v4752
      %v4908 = vpop.f32.mrb[0].mxu0
      %v4909 = vadd.f32 0.0, %v4908
      %v4910 = vpop.f32.mrb[0].mxu0
      %v4911 = vpop.f32.mrb[0].mxu0
      %v4912 = vadd.f32 0.0, %v4911
      %v4913 = vpop.f32.mrb[0].mxu0
      %4914 = vmatprep.mubr.bf16.mxu0 0
      %4915 = vmatmul.mubr.bf16.gmra.mrb[0].mxu0 %v4753
      %v4916 = vpop.f32.mrb[0].mxu0
      %v4917 = vadd.f32 0.0, %v4916
      %v4918 = vpop.f32.mrb[0].mxu0
      %v4919 = vpop.f32.mrb[0].mxu0
      %v4920 = vadd.f32 0.0, %v4919
      %v4921 = vpop.f32.mrb[0].mxu0
      %4922 = vmatprep.mubr.bf16.mxu0 0
      %4923 = vmatmul.mubr.bf16.gmra.mrb[0].mxu0 %v4754
      %v4924 = vpop.f32.mrb[0].mxu0
      %v4925 = vadd.f32 0.0, %v4924
      %v4926 = vpop.f32.mrb[0].mxu0
      %v4927 = vpop.f32.mrb[0].mxu0
      %v4928 = vadd.f32 0.0, %v4927
      %v4929 = vpop.f32.mrb[0].mxu0
      %4930 = vmatprep.mubr.bf16.mxu0 0
      %4931 = vmatmul.mubr.bf16.gmra.mrb[0].mxu0 %v4755
      %v4932 = vpop.f32.mrb[0].mxu0
      %v4933 = vadd.f32 0.0, %v4932
      %v4934 = vpop.f32.mrb[0].mxu0
      %v4935 = vpop.f32.mrb[0].mxu0
      %v4936 = vadd.f32 0.0, %v4935
      %v4937 = vpop.f32.mrb[0].mxu0
      %4938 = vmatprep.mubr.bf16.mxu0 0
      %4939 = vmatmul.mubr.bf16.gmra.mrb[0].mxu0 %v4756
      %v4940 = vpop.f32.mrb[0].mxu0
      %v4941 = vadd.f32 0.0, %v4940
      %v4942 = vpop.f32.mrb[0].mxu0
      %v4943 = vpop.f32.mrb[0].mxu0
      %v4944 = vadd.f32 0.0, %v4943
      %v4945 = vpop.f32.mrb[0].mxu0
      %4946 = vmatprep.mubr.bf16.mxu0 0
      %4947 = vmatmul.mubr.bf16.gmra.mrb[0].mxu0 %v4757
      %v4948 = vpop.f32.mrb[0].mxu0
      %v4949 = vadd.f32 0.0, %v4948
      %v4950 = vpop.f32.mrb[0].mxu0
      %v4951 = vpop.f32.mrb[0].mxu0
      %v4952 = vadd.f32 0.0, %v4951
      %v4953 = vpop.f32.mrb[0].mxu0
      %4954 = vmatprep.mubr.bf16.mxu0 0
      %4955 = vmatmul.mubr.bf16.gmra.mrb[0].mxu0 %v4758
      %v4956 = vpop.f32.mrb[0].mxu0
      %v4957 = vadd.f32 0.0, %v4956
      %v4958 = vpop.f32.mrb[0].mxu0
      %v4959 = vpop.f32.mrb[0].mxu0
      %v4960 = vadd.f32 0.0, %v4959
      %v4961 = vpop.f32.mrb[0].mxu0
      %4962 = vmatprep.mubr.bf16.mxu0 0
      %4963 = vmatmul.mubr.bf16.gmra.mrb[0].mxu0 %v4759
      %v4964 = vpop.f32.mrb[0].mxu0
      %v4965 = vadd.f32 0.0, %v4964
      %v4966 = vpop.f32.mrb[0].mxu0
      %v4967 = vpop.f32.mrb[0].mxu0
      %v4968 = vadd.f32 0.0, %v4967
      %v4969 = vpop.f32.mrb[0].mxu0
      %4970 = vmatprep.mubr.bf16.mxu0 0
      %4971 = vmatmul.mubr.bf16.gmra.mrb[0].mxu0 %v4760
      %v4972 = vpop.f32.mrb[0].mxu0
      %v4973 = vadd.f32 0.0, %v4972
      %v4974 = vpop.f32.mrb[0].mxu0
      %v4975 = vpop.f32.mrb[0].mxu0
      %v4976 = vadd.f32 0.0, %v4975
      %v4977 = vpop.f32.mrb[0].mxu0
      %4978 = vmatprep.mubr.bf16.mxu0 0
      %4979 = vmatmul.mubr.bf16.gmra.mrb[0].mxu0 %v4761
      %v4980 = vpop.f32.mrb[0].mxu0
      %v4981 = vadd.f32 0.0, %v4980
      %v4982 = vpop.f32.mrb[0].mxu0
      %v4983 = vpop.f32.mrb[0].mxu0
      %v4984 = vadd.f32 0.0, %v4983
      %v4985 = vpop.f32.mrb[0].mxu0
      %4986 = vdwg.mxu0
      %v4987 = vadd.f32 %v4489, %v4861
      %v4988 = vadd.f32 %v4490, %v4864
      %v4989 = vadd.f32 %v4491, %v4869
      %v4990 = vadd.f32 %v4492, %v4872
      %v4991 = vadd.f32 %v4493, %v4877
      %v4992 = vadd.f32 %v4494, %v4880
      %v4993 = vadd.f32 %v4495, %v4885
      %v4994 = vadd.f32 %v4496, %v4888
      %v4995 = vadd.f32 %v4497, %v4893
      %v4996 = vadd.f32 %v4498, %v4896
      %v4997 = vadd.f32 %v4499, %v4901
      %v4998 = vadd.f32 %v4500, %v4904
      %v4999 = vadd.f32 %v4501, %v4909
      %v5000 = vadd.f32 %v4502, %v4912
      %v5001 = vadd.f32 %v4503, %v4917
      %v5002 = vadd.f32 %v4504, %v4920
      %v5003 = vadd.f32 %v4505, %v4925
      %v5004 = vadd.f32 %v4506, %v4928
      %v5005 = vadd.f32 %v4507, %v4933
      %v5006 = vadd.f32 %v4508, %v4936
      %v5007 = vadd.f32 %v4509, %v4941
      %v5008 = vadd.f32 %v4510, %v4944
      %v5009 = vadd.f32 %v4511, %v4949
      %v5010 = vadd.f32 %v4512, %v4952
      %v5011 = vadd.f32 %v4513, %v4957
      %v5012 = vadd.f32 %v4514, %v4960
      %v5013 = vadd.f32 %v4515, %v4965
      %v5014 = vadd.f32 %v4516, %v4968
      %v5015 = vadd.f32 %v4517, %v4973
      %v5016 = vadd.f32 %v4518, %v4976
      %v5017 = vadd.f32 %v4519, %v4981
      %v5018 = vadd.f32 %v4520, %v4984
      %v5019 = vld [vmem:[%s2] sm:$0x1]
      %v5021 = vlaneseq
      %v5022 = vshrl.u32 %v5021, 7
      %v5023 = vsub.s32 0, %v5022
      %v5024 = vrot.slane %v5019, %v5023
      %v5026 = vadd.f32 %v4987, %v5024
      %v5027 = vadd.f32 %v4988, %v5024
      %v5028 = vadd.f32 %v4989, %v5024
      %v5029 = vadd.f32 %v4990, %v5024
      %v5030 = vadd.f32 %v4991, %v5024
      %v5031 = vadd.f32 %v4992, %v5024
      %v5032 = vadd.f32 %v4993, %v5024
      %v5033 = vadd.f32 %v4994, %v5024
      %v5034 = vadd.f32 %v4995, %v5024
      %v5035 = vadd.f32 %v4996, %v5024
      %v5036 = vadd.f32 %v4997, %v5024
      %v5037 = vadd.f32 %v4998, %v5024
      %v5038 = vadd.f32 %v4999, %v5024
      %v5039 = vadd.f32 %v5000, %v5024
      %v5040 = vadd.f32 %v5001, %v5024
      %v5041 = vadd.f32 %v5002, %v5024
      %v5042 = vadd.f32 %v5003, %v5024
      %v5043 = vadd.f32 %v5004, %v5024
      %v5044 = vadd.f32 %v5005, %v5024
      %v5045 = vadd.f32 %v5006, %v5024
      %v5046 = vadd.f32 %v5007, %v5024
      %v5047 = vadd.f32 %v5008, %v5024
      %v5048 = vadd.f32 %v5009, %v5024
      %v5049 = vadd.f32 %v5010, %v5024
      %v5050 = vadd.f32 %v5011, %v5024
      %v5051 = vadd.f32 %v5012, %v5024
      %v5052 = vadd.f32 %v5013, %v5024
      %v5053 = vadd.f32 %v5014, %v5024
      %v5054 = vadd.f32 %v5015, %v5024
      %v5055 = vadd.f32 %v5016, %v5024
      %v5056 = vadd.f32 %v5017, %v5024
      %v5057 = vadd.f32 %v5018, %v5024
      %5058 = vst [vmem:[%s204] sm:$0xff] %v5026
      %5059 = vst [vmem:[%s204 + $0x8] sm:$0xff] %v5027
      %5060 = vst [vmem:[%s204 + $0x10] sm:$0xff] %v5028
      %5061 = vst [vmem:[%s204 + $0x18] sm:$0xff] %v5029
      %5062 = vst [vmem:[%s204 + $0x20] sm:$0xff] %v5030
      %5063 = vst [vmem:[%s204 + $0x28] sm:$0xff] %v5031
      %5064 = vst [vmem:[%s204 + $0x30] sm:$0xff] %v5032
      %5065 = vst [vmem:[%s204 + $0x38] sm:$0xff] %v5033
      %5066 = vst [vmem:[%s204 + $0x40] sm:$0xff] %v5034
      %5067 = vst [vmem:[%s204 + $0x48] sm:$0xff] %v5035
      %5068 = vst [vmem:[%s204 + $0x50] sm:$0xff] %v5036
      %5069 = vst [vmem:[%s204 + $0x58] sm:$0xff] %v5037
      %5070 = vst [vmem:[%s204 + $0x60] sm:$0xff] %v5038
      %5071 = vst [vmem:[%s204 + $0x68] sm:$0xff] %v5039
      %5072 = vst [vmem:[%s204 + $0x70] sm:$0xff] %v5040
      %5073 = vst [vmem:[%s204 + $0x78] sm:$0xff] %v5041
      %5074 = vst [vmem:[%s204 + $0x80] sm:$0xff] %v5042
      %5075 = vst [vmem:[%s204 + $0x88] sm:$0xff] %v5043
      %5076 = vst [vmem:[%s204 + $0x90] sm:$0xff] %v5044
      %5077 = vst [vmem:[%s204 + $0x98] sm:$0xff] %v5045
      %5078 = vst [vmem:[%s204 + $0xa0] sm:$0xff] %v5046
      %5079 = vst [vmem:[%s204 + $0xa8] sm:$0xff] %v5047
      %5080 = vst [vmem:[%s204 + $0xb0] sm:$0xff] %v5048
      %5081 = vst [vmem:[%s204 + $0xb8] sm:$0xff] %v5049
      %5082 = vst [vmem:[%s204 + $0xc0] sm:$0xff] %v5050
      %5083 = vst [vmem:[%s204 + $0xc8] sm:$0xff] %v5051
      %5084 = vst [vmem:[%s204 + $0xd0] sm:$0xff] %v5052
      %5085 = vst [vmem:[%s204 + $0xd8] sm:$0xff] %v5053
      %5086 = vst [vmem:[%s204 + $0xe0] sm:$0xff] %v5054
      %5087 = vst [vmem:[%s204 + $0xe8] sm:$0xff] %v5055
      %5088 = vst [vmem:[%s204 + $0xf0] sm:$0xff] %v5056
      %5089 = vst [vmem:[%s204 + $0xf8] sm:$0xff] %v5057
      %v5090 = vadd.f32 %v5026, %v5027
      %v5091 = vadd.f32 %v5090, %v5028
      %v5092 = vadd.f32 %v5091, %v5029
      %v5093 = vadd.f32 %v5092, %v5030
      %v5094 = vadd.f32 %v5093, %v5031
      %v5095 = vadd.f32 %v5094, %v5032
      %v5096 = vadd.f32 %v5095, %v5033
      %v5097 = vadd.f32 %v5096, %v5034
      %v5098 = vadd.f32 %v5097, %v5035
      %v5099 = vadd.f32 %v5098, %v5036
      %v5100 = vadd.f32 %v5099, %v5037
      %v5101 = vadd.f32 %v5100, %v5038
      %v5102 = vadd.f32 %v5101, %v5039
      %v5103 = vadd.f32 %v5102, %v5040
      %v5104 = vadd.f32 %v5103, %v5041
      %v5105 = vadd.f32 %v5104, %v5042
      %v5106 = vadd.f32 %v5105, %v5043
      %v5107 = vadd.f32 %v5106, %v5044
      %v5108 = vadd.f32 %v5107, %v5045
      %v5109 = vadd.f32 %v5108, %v5046
      %v5110 = vadd.f32 %v5109, %v5047
      %v5111 = vadd.f32 %v5110, %v5048
      %v5112 = vadd.f32 %v5111, %v5049
      %v5113 = vadd.f32 %v5112, %v5050
      %v5114 = vadd.f32 %v5113, %v5051
      %v5115 = vadd.f32 %v5114, %v5052
      %v5116 = vadd.f32 %v5115, %v5053
      %v5117 = vadd.f32 %v5116, %v5054
      %v5118 = vadd.f32 %v5117, %v5055
      %v5119 = vadd.f32 %v5118, %v5056
      %v5120 = vadd.f32 %v5119, %v5057
      %v5121 = vrot.slane %v5120, 4
      %v5122 = vadd.f32 %v5120, %v5121
      %v5123 = vrot.slane %v5122, 2
      %v5124 = vadd.f32 %v5122, %v5123
      %v5125 = vrot.slane %v5124, 1
      %v5126 = vadd.f32 %v5124, %v5125
      %5127 = vst [vmem:[%s208] sm:$0x1] %v5126
      %v5128 = vmul.f32 %v5026, %v5026
      %v5129 = vmul.f32 %v5027, %v5027
      %v5130 = vmul.f32 %v5028, %v5028
      %v5131 = vmul.f32 %v5029, %v5029
      %v5132 = vmul.f32 %v5030, %v5030
      %v5133 = vmul.f32 %v5031, %v5031
      %v5134 = vmul.f32 %v5032, %v5032
      %v5135 = vmul.f32 %v5033, %v5033
      %v5136 = vmul.f32 %v5034, %v5034
      %v5137 = vmul.f32 %v5035, %v5035
      %v5138 = vmul.f32 %v5036, %v5036
      %v5139 = vmul.f32 %v5037, %v5037
      %v5140 = vmul.f32 %v5038, %v5038
      %v5141 = vmul.f32 %v5039, %v5039
      %v5142 = vmul.f32 %v5040, %v5040
      %v5143 = vmul.f32 %v5041, %v5041
      %v5144 = vmul.f32 %v5042, %v5042
      %v5145 = vmul.f32 %v5043, %v5043
      %v5146 = vmul.f32 %v5044, %v5044
      %v5147 = vmul.f32 %v5045, %v5045
      %v5148 = vmul.f32 %v5046, %v5046
      %v5149 = vmul.f32 %v5047, %v5047
      %v5150 = vmul.f32 %v5048, %v5048
      %v5151 = vmul.f32 %v5049, %v5049
      %v5152 = vmul.f32 %v5050, %v5050
      %v5153 = vmul.f32 %v5051, %v5051
      %v5154 = vmul.f32 %v5052, %v5052
      %v5155 = vmul.f32 %v5053, %v5053
      %v5156 = vmul.f32 %v5054, %v5054
      %v5157 = vmul.f32 %v5055, %v5055
      %v5158 = vmul.f32 %v5056, %v5056
      %v5159 = vmul.f32 %v5057, %v5057
      %v5160 = vadd.f32 %v5128, %v5129
      %v5161 = vadd.f32 %v5160, %v5130
      %v5162 = vadd.f32 %v5161, %v5131
      %v5163 = vadd.f32 %v5162, %v5132
      %v5164 = vadd.f32 %v5163, %v5133
      %v5165 = vadd.f32 %v5164, %v5134
      %v5166 = vadd.f32 %v5165, %v5135
      %v5167 = vadd.f32 %v5166, %v5136
      %v5168 = vadd.f32 %v5167, %v5137
      %v5169 = vadd.f32 %v5168, %v5138
      %v5170 = vadd.f32 %v5169, %v5139
      %v5171 = vadd.f32 %v5170, %v5140
      %v5172 = vadd.f32 %v5171, %v5141
      %v5173 = vadd.f32 %v5172, %v5142
      %v5174 = vadd.f32 %v5173, %v5143
      %v5175 = vadd.f32 %v5174, %v5144
      %v5176 = vadd.f32 %v5175, %v5145
      %v5177 = vadd.f32 %v5176, %v5146
      %v5178 = vadd.f32 %v5177, %v5147
      %v5179 = vadd.f32 %v5178, %v5148
      %v5180 = vadd.f32 %v5179, %v5149
      %v5181 = vadd.f32 %v5180, %v5150
      %v5182 = vadd.f32 %v5181, %v5151
      %v5183 = vadd.f32 %v5182, %v5152
      %v5184 = vadd.f32 %v5183, %v5153
      %v5185 = vadd.f32 %v5184, %v5154
      %v5186 = vadd.f32 %v5185, %v5155
      %v5187 = vadd.f32 %v5186, %v5156
      %v5188 = vadd.f32 %v5187, %v5157
      %v5189 = vadd.f32 %v5188, %v5158
      %v5190 = vadd.f32 %v5189, %v5159
      %v5191 = vrot.slane %v5190, 4
      %v5192 = vadd.f32 %v5190, %v5191
      %v5193 = vrot.slane %v5192, 2
      %v5194 = vadd.f32 %v5192, %v5193
      %v5195 = vrot.slane %v5194, 1
      %v5196 = vadd.f32 %v5194, %v5195
      %5197 = vst [vmem:[%s208 + $0x1] sm:$0x1] %v5196
      %p5198 = scmp.lt.s32.totalorder %s16, 1
      %s5199 = scalar_select %p5198, %s16, 1
      %s5200 = smul.addr %s5199, 32
      %s5201 = smul.addr %s5200, 8
      %s5202 = scalar_lea.vmem %s3, %s5201
      %p5203 = scmp.lt.s32.totalorder %s16, 1
      %s5204 = scalar_select %p5203, %s16, 1
      %s5205 = smul.addr %s5204, 2
      %s5206 = scalar_lea.vmem %s4, %s5205
      // Predicated region
      $region33: #{conv_block.2} parent=31 // pred_check
        %p5207 = pneg %p102
      $region34: #{conv_block.2} parent=31 // pred_check_branch
        %5209 = sbr.rel (%p5207) target = $region36
      $region35: #{conv_block.2} parent=31 // pred_region
        _
      $region36: #{conv_block.2} parent=31 // pred_fallthru
        _
      // Predicated region
      $region37: #{conv_block.2} parent=31 // pred_check
        %p5210 = pneg %p128
      $region38: #{conv_block.2} parent=31 // pred_check_branch
        %5212 = sbr.rel (%p5210) target = $region40
      $region39: #{conv_block.2} parent=31 // pred_region
        _
      $region40: #{conv_block.2} parent=31 // pred_fallthru
        _
    $region32: #{conv_block.2} parent=5 // pred_fallthru
      _
    %p5213 = scmp.le.s32.totalorder 2, %s11
    // Predicated region
    $region41: #{conv_block.2} parent=5 // pred_check
      %p5214 = pneg %p5213
    $region42: #{conv_block.2} parent=5 // pred_check_branch
      %5216 = sbr.rel (%p5214) target = $region44
    $region43: #{conv_block.2} parent=5 // pred_region
      %s5217 = ssub.s32 %s11, 2
      // Predicated region
      $region45: #{conv_block.2} parent=43 // pred_check
        %p5218 = pneg %p108
      $region46: #{conv_block.2} parent=43 // pred_check_branch
        %5220 = sbr.rel (%p5218) target = $region48
      $region47: #{conv_block.2} parent=43 // pred_region
        %p5221 = scmp.lt.s32.totalorder %s17, 1
        %s5222 = scalar_select %p5221, %s17, 1
        %s5223 = smul.addr %s5222, 32
        %s5224 = smul.addr %s5223, 8
        %s5225 = scalar_lea.vmem %s3, %s5224
      $region48: #{conv_block.2} parent=43 // pred_fallthru
        _
      // Predicated region
      $region49: #{conv_block.2} parent=43 // pred_check
        %p5226 = pneg %p134
      $region50: #{conv_block.2} parent=43 // pred_check_branch
        %5228 = sbr.rel (%p5226) target = $region52
      $region51: #{conv_block.2} parent=43 // pred_region
        %p5229 = scmp.lt.s32.totalorder %s17, 1
        %s5230 = scalar_select %p5229, %s17, 1
        %s5231 = smul.addr %s5230, 2
        %s5232 = scalar_lea.vmem %s4, %s5231
      $region52: #{conv_block.2} parent=43 // pred_fallthru
        _
    $region44: #{conv_block.2} parent=5 // pred_fallthru
      _
  $region6: #{conv_block.2} parent=0 // loop_footer
    %s15 = sadd.s32 1, %s11
  $region7: #{conv_block.2} parent=0 // loop_footer_branch
    %10 = sbr.rel target = $region3
  $region8: #{conv_block.2} parent=0 // loop_exit
    _

</llo_original>
